<compile_context>
chip_gen: v6e
topology: v6e:2x2x1
jax: 0.10.0
libtpu: 0.0.40
codegen_flags: <defaults>
</compile_context>

<pallas_src>
import functools

import jax
import jax.numpy as jnp
from jax.experimental import pallas as pl
from jax.experimental.pallas import tpu as pltpu

CPAD = 128  # lane-dense padded output-channel count for every conv's GEMM result


def _round_up(x, m):
    return (x + m - 1) // m * m


# ----------------------------------------------------------------------------
# Pallas kernel: fused (BN-affine + LReLU prologue) -> GEMM -> (bias / LReLU /
# per-channel batch-stats) epilogue.
# ----------------------------------------------------------------------------
def _conv_gemm_kernel(*refs, has_prologue, has_bias, epilogue_lrelu,
                      compute_stats, slope):
    it = iter(refs)
    a_ref = next(it)                                   # (tile_m, K)  bf16
    b_ref = next(it)                                   # (K, 128)     bf16
    scale_ref = next(it) if has_prologue else None     # (1, K)       f32
    shift_ref = next(it) if has_prologue else None     # (1, K)       f32
    bias_ref = next(it) if has_bias else None          # (1, 128)     f32
    o_ref = next(it)                                   # (tile_m, 128)
    sum_ref = next(it) if compute_stats else None      # (1, 128)     f32 partial
    ssq_ref = next(it) if compute_stats else None      # (1, 128)     f32 partial

    a = a_ref[...]
    if has_prologue:
        # Previous block's BatchNorm affine (batch stats) + LeakyReLU, applied per
        # K column (per input channel, replicated over the 4x4 taps).  Kept in f32:
        # after the K shrink this touches few elements and v5e has no bf16 VALU.
        av = a.astype(jnp.float32) * scale_ref[...] + shift_ref[...]
        av = jnp.where(av >= 0, av, slope * av)
        a = av.astype(a_ref.dtype)

    acc = jnp.dot(a, b_ref[...], preferred_element_type=jnp.float32)

    if has_bias:
        acc = acc + bias_ref[...]
    if epilogue_lrelu:
        acc = jnp.where(acc >= 0, acc, slope * acc)
    out = acc.astype(o_ref.dtype)
    o_ref[...] = out

    if compute_stats:
        # Per-channel partial sum / sum-of-squares of THIS tile, taken on the exact
        # (bf16-rounded) values the next layer will consume.  One block per grid
        # step ("parallel" axis); the tiny (grid_m, 128) reduction happens in XLA.
        of = out.astype(jnp.float32)
        sum_ref[...] = jnp.sum(of, axis=0, keepdims=True)
        ssq_ref[...] = jnp.sum(of * of, axis=0, keepdims=True)


# ----------------------------------------------------------------------------
# Wrapper around the fused GEMM
# ----------------------------------------------------------------------------
def _conv_gemm(a, b, *, scale_k=None, shift_k=None, bias=None, lrelu=False,
               stats=False, slope=0.2, out_dtype=jnp.bfloat16, max_tile=1024):
    M, K = a.shape
    Kb, Cout = b.shape
    assert K == Kb and Cout == CPAD

    # Big layers: 1024-row tiles (two steps for the M=2048 first conv: one per TC
    # on v7x, only one extra serial step on v5e/v6e).  Tiny layers: one full-M
    # block -> no padding / slicing round trips and no extra grid-step overhead.
    if M > max_tile and M % max_tile == 0:
        tile_m = max_tile
    else:
        tile_m = M
    grid_m = M // tile_m

    in_specs = [pl.BlockSpec((tile_m, K), lambda i: (i, 0)),
                pl.BlockSpec((K, Cout), lambda i: (0, 0))]
    args = [a, b]
    has_prologue = scale_k is not None
    if has_prologue:
        in_specs += [pl.BlockSpec((1, K), lambda i: (0, 0)),
                     pl.BlockSpec((1, K), lambda i: (0, 0))]
        args += [scale_k, shift_k]
    has_bias = bias is not None
    if has_bias:
        in_specs.append(pl.BlockSpec((1, Cout), lambda i: (0, 0)))
        args.append(bias)

    main_spec = pl.BlockSpec((tile_m, Cout), lambda i: (i, 0))
    if stats:
        out_shape = (jax.ShapeDtypeStruct((M, Cout), out_dtype),
                     jax.ShapeDtypeStruct((grid_m, Cout), jnp.float32),
                     jax.ShapeDtypeStruct((grid_m, Cout), jnp.float32))
        out_specs = (main_spec,
                     pl.BlockSpec((1, Cout), lambda i: (i, 0)),
                     pl.BlockSpec((1, Cout), lambda i: (i, 0)))
    else:
        out_shape = jax.ShapeDtypeStruct((M, Cout), out_dtype)
        out_specs = main_spec

    kernel = functools.partial(
        _conv_gemm_kernel, has_prologue=has_prologue, has_bias=has_bias,
        epilogue_lrelu=lrelu, compute_stats=stats, slope=slope)
    return pl.pallas_call(
        kernel,
        out_shape=out_shape,
        grid=(grid_m,),
        in_specs=in_specs,
        out_specs=out_specs,
        compiler_params=pltpu.CompilerParams(dimension_semantics=("parallel",)),
    )(*args)


# ----------------------------------------------------------------------------
# XLA glue: im2col patch gather (single fused op) and one-time weight preparation
# ----------------------------------------------------------------------------
def _im2col(x_nhwc, ksize, stride, pad, pad_mode):
    if pad > 0:
        mode = "reflect" if pad_mode == "reflect" else "constant"
        x_nhwc = jnp.pad(x_nhwc, ((0, 0), (pad, pad), (pad, pad), (0, 0)), mode=mode)
    n, h, w, c = x_nhwc.shape
    ho = (h - ksize) // stride + 1
    wo = (w - ksize) // stride + 1
    cols = []
    for kh in range(ksize):
        for kw in range(ksize):
            cols.append(x_nhwc[:, kh:kh + (ho - 1) * stride + 1:stride,
                                  kw:kw + (wo - 1) * stride + 1:stride, :])
    # column order = (kh*KW + kw)*C + c  (channel fastest)
    a = jnp.stack(cols, axis=3).reshape(n * ho * wo, ksize * ksize * c)
    return a, (n, ho, wo)


def _prep_weight(w_pt, cin_pad, cout_pad=CPAD):
    """PyTorch (Cout,Cin,KH,KW) -> (KH*KW*cin_pad, cout_pad) bf16, zero padded."""
    cout, cin, kh, kw = w_pt.shape
    b = jnp.transpose(w_pt, (2, 3, 1, 0))                                # HWIO
    b = jnp.pad(b, ((0, 0), (0, 0), (0, cin_pad - cin), (0, cout_pad - cout)))
    return b.reshape(kh * kw * cin_pad, cout_pad).astype(jnp.bfloat16)


def prepare_params(params):
    """One-time (call OUTSIDE jit) conversion to padded bf16 GEMM operands."""
    cin0 = _round_up(params["w_init"].shape[1], 8)
    prep = {"b0": _prep_weight(params["w_init"], cin_pad=cin0), "blocks": []}
    prev_cout = params["w_init"].shape[0]
    for blk in params["blocks"]:
        cin_pad = _round_up(prev_cout, 8)
        prep["blocks"].append({
            "b": _prep_weight(blk["w"], cin_pad=cin_pad),
            "gamma": blk["gamma"].astype(jnp.float32),
            "beta": blk["beta"].astype(jnp.float32),
        })
        prev_cout = blk["w"].shape[0]
    prep["bF"] = _prep_weight(params["w_final"], cin_pad=_round_up(prev_cout, 8))
    prep["biasF"] = jnp.pad(params["b_final"].astype(jnp.float32),
                            (0, CPAD - params["b_final"].shape[0])).reshape(1, CPAD)
    return prep


def _expand_affine(scale_c, shift_c, cin_pad):
    """Per-channel scale/shift -> per-K (channel fastest, 16 taps) row vectors."""
    pad = cin_pad - scale_c.shape[0]
    if pad:
        # extra channels are exactly zero activations with zero weight rows;
        # scale=1 / shift=0 keeps them zero (no 1/sqrt(eps) blow-up anywhere).
        scale_c = jnp.pad(scale_c, (0, pad), constant_values=1.0)
        shift_c = jnp.pad(shift_c, (0, pad))
    return (jnp.tile(scale_c, 16).reshape(1, -1),
            jnp.tile(shift_c, 16).reshape(1, -1))


# ----------------------------------------------------------------------------
# Parameters (deterministic synthetic init — PyTorch weight layout (Cout,Cin,KH,KW))
# ----------------------------------------------------------------------------
def init_params(key, in_ch=3, features=(8, 16, 32, 64)):
    n_blocks = len(features) - 1
    keys = jax.random.split(key, 2 + 3 * n_blocks)
    params = {
        "w_init": 0.02 * jax.random.normal(keys[0], (features[0], in_ch * 2, 4, 4), jnp.float32),
        "blocks": [],
    }
    ch = features[0]
    for i, f in enumerate(features[1:]):
        kw_, kg_, kb_ = keys[1 + 3 * i], keys[2 + 3 * i], keys[3 + 3 * i]
        params["blocks"].append({
            "w": 0.02 * jax.random.normal(kw_, (f, ch, 4, 4), jnp.float32),
            "gamma": 1.0 + 0.1 * jax.random.normal(kg_, (f,), jnp.float32),
            "beta": 0.05 * jax.random.normal(kb_, (f,), jnp.float32),
        })
        ch = f
    params["w_final"] = 0.02 * jax.random.normal(keys[-1], (1, features[-1], 4, 4), jnp.float32)
    params["b_final"] = 0.01 * jnp.ones((1,), jnp.float32)
    return params


# ----------------------------------------------------------------------------
# Forward pass (Pallas) — takes the pre-prepared (hoisted) parameter pytree.
# ----------------------------------------------------------------------------
def descriminator_forward(prep, x_nchw, y_nchw):
    eps = 1e-5
    nblk = len(prep["blocks"])

    inp = jnp.concatenate([x_nchw, y_nchw], axis=1)               # (N, 2*in_ch, H, W)
    h = jnp.transpose(inp, (0, 2, 3, 1)).astype(jnp.bfloat16)     # NCHW -> NHWC, bf16
    cin0 = prep["b0"].shape[0] // 16                              # padded first-conv Cin
    if h.shape[-1] < cin0:
        h = jnp.pad(h, ((0, 0), (0, 0), (0, 0), (0, cin0 - h.shape[-1])))

    # initial: conv(k4 s2 p1 reflect, no bias) + LReLU(0.2) fused as GEMM epilogue.
    a, (n, ho, wo) = _im2col(h, 4, 2, 1, "reflect")
    h = _conv_gemm(a, prep["b0"], lrelu=True).reshape(n, ho, wo, CPAD)

    # pending per-channel BN affine of the previous block (applied as next prologue)
    scale_c = shift_c = None
    for i, blk in enumerate(prep["blocks"]):
        st = 1 if i == nblk - 1 else 2      # matches: st=1 iff feature == features[-1]
        cin_pad = blk["b"].shape[0] // 16   # this conv's padded real Cin
        # Slice away the zero padded lanes BEFORE im2col: K = 16*cin_pad, not 16*128.
        a, (n, ho, wo) = _im2col(h[..., :cin_pad], 4, st, 0, "zeros")
        sk = sh = None
        if scale_c is not None:
            sk, sh = _expand_affine(scale_c, shift_c, cin_pad)
        raw, psum, pssq = _conv_gemm(a, blk["b"], scale_k=sk, shift_k=sh, stats=True)

        # tiny per-channel math: training-mode BN batch stats (biased variance)
        cout = blk["gamma"].shape[0]
        cnt = a.shape[0]                                      # N*Ho*Wo (static)
        s = jnp.sum(psum, axis=0)[:cout]
        q = jnp.sum(pssq, axis=0)[:cout]
        mean = s / cnt
        var = jnp.maximum(q / cnt - mean * mean, 0.0)
        scale_c = blk["gamma"] / jnp.sqrt(var + eps)
        shift_c = blk["beta"] - mean * scale_c

        h = raw.reshape(n, ho, wo, CPAD)                      # raw conv out (pre-BN)

    # final: conv(k4 s1 p1 reflect, bias); last block's BN+LReLU fused as prologue
    # (reflect padding only duplicates values, so the per-channel prologue is exact).
    cin_pad = prep["bF"].shape[0] // 16
    a, (n, ho, wo) = _im2col(h[..., :cin_pad], 4, 1, 1, "reflect")
    sk, sh = _expand_affine(scale_c, shift_c, cin_pad)
    out = _conv_gemm(a, prep["bF"], scale_k=sk, shift_k=sh, bias=prep["biasF"],
                     out_dtype=jnp.float32)
    out = out[:, :1].reshape(n, ho, wo, 1)                    # single lane slice at the end
    return jnp.transpose(out, (0, 3, 1, 2))                   # back to NCHW


# ----------------------------------------------------------------------------
# Pure-JAX f32 reference
# ----------------------------------------------------------------------------
def _conv_ref(x_nhwc, w_pt, stride, pad, pad_mode="zeros", bias=None):
    if pad > 0:
        mode = "reflect" if pad_mode == "reflect" else "constant"
        x_nhwc = jnp.pad(x_nhwc, ((0, 0), (pad, pad), (pad, pad), (0, 0)), mode=mode)
    w = jnp.transpose(w_pt, (2, 3, 1, 0))  # HWIO
    out = jax.lax.conv_general_dilated(x_nhwc, w, (stride, stride), "VALID",
                                       dimension_numbers=("NHWC", "HWIO", "NHWC"))
    if bias is not None:
        out = out + bias.reshape(1, 1, 1, -1)
    return out


def descriminator_forward_ref(params, x_nchw, y_nchw):
    def lrelu(v):
        return jnp.where(v >= 0, v, 0.2 * v)

    nblk = len(params["blocks"])
    inp = jnp.concatenate([x_nchw, y_nchw], axis=1)
    h = jnp.transpose(inp, (0, 2, 3, 1)).astype(jnp.float32)
    h = lrelu(_conv_ref(h, params["w_init"], 2, 1, "reflect"))
    for i, blk in enumerate(params["blocks"]):
        st = 1 if i == nblk - 1 else 2
        h = _conv_ref(h, blk["w"], st, 0)
        mean = jnp.mean(h, axis=(0, 1, 2))
        var = jnp.mean((h - mean) ** 2, axis=(0, 1, 2))
        h = lrelu((h - mean) / jnp.sqrt(var + 1e-5) * blk["gamma"] + blk["beta"])
    h = _conv_ref(h, params["w_final"], 1, 1, "reflect", bias=params["b_final"])
    return jnp.transpose(h, (0, 3, 1, 2))


# ----------------------------------------------------------------------------
if __name__ == "__main__":
    key = jax.random.PRNGKey(0)
    kx, ky, kp = jax.random.split(key, 3)
    # SMALL shapes: batch=2, in_ch=3, spatial=64 (smallest H keeping every unpadded
    # ConvBlock output positive), features scaled down to (8,16,32,64).
    x = jax.random.normal(kx, (2, 3, 64, 64), jnp.float32)
    y = jax.random.normal(ky, (2, 3, 64, 64), jnp.float32)
    params = init_params(kp, in_ch=3, features=(8, 16, 32, 64))
    prep = prepare_params(params)            # hoisted weight prep (runs once)

    fwd = jax.jit(descriminator_forward)
    out = jax.block_until_ready(fwd(prep, x, y))
    assert out.shape == (2, 1, 2, 2), out.shape

    ref = descriminator_forward_ref(params, x, y)
    # bf16 GEMM operands / bf16 activation storage vs. the all-f32 XLA reference;
    # tolerance widened accordingly (the f32-operand variant meets 5e-3).
    max_err = float(jnp.max(jnp.abs(out - ref)))
    assert max_err < 5e-2, f"max abs error vs reference: {max_err}"

    print("KERNEL_OK")
</pallas_src>

<mosaic_0001>
module attributes {stable_mosaic.version = 11 : i64} {
  func.func @_conv_gemm_kernel(%arg0: i32, %arg1: memref<1024x128xbf16, #tpu.memory_space<vmem>>, %arg2: memref<128x128xbf16, #tpu.memory_space<vmem>>, %arg3: memref<1024x128xbf16, #tpu.memory_space<vmem>>) attributes {dimension_semantics = [#tpu.dimension_semantics<parallel>], iteration_bounds = array<i64: 2>, scalar_prefetch = 0 : i64, scratch_operands = 0 : i64, tpu.core_type = #tpu.core_type<tc>, window_params = [{transform_indices = @transform_0, window_bounds = array<i64: 1024, 128>}, {pipeline_mode = #tpu.pipeline_mode<synchronous>, transform_indices = @transform_1, window_bounds = array<i64: 128, 128>}, {transform_indices = @transform_2, window_bounds = array<i64: 1024, 128>}]} {
    %c0 = arith.constant 0 : index
    %c0_0 = arith.constant 0 : index
    %0 = vector.load %arg1[%c0, %c0_0] : memref<1024x128xbf16, #tpu.memory_space<vmem>>, vector<1024x128xbf16>
    %c0_1 = arith.constant 0 : index
    %c0_2 = arith.constant 0 : index
    %1 = vector.load %arg2[%c0_1, %c0_2] : memref<128x128xbf16, #tpu.memory_space<vmem>>, vector<128x128xbf16>
    %cst = arith.constant dense<0.000000e+00> : vector<1024x128xf32>
    %2 = tpu.matmul %0, %1, %cst {dimension_numbers = #tpu.dot_dimension_numbers<[1], [0], [0], [1], [0, 0, 1, 1], [], []>} : vector<1024x128xbf16>, vector<128x128xbf16>, vector<1024x128xf32> -> vector<1024x128xf32>
    %cst_3 = arith.constant 0.000000e+00 : f32
    %3 = vector.broadcast %cst_3 : f32 to vector<1024x128xf32>
    %4 = arith.cmpf oge, %2, %3 : vector<1024x128xf32>
    %cst_4 = arith.constant 2.000000e-01 : f32
    %5 = vector.broadcast %cst_4 : f32 to vector<1024x128xf32>
    %6 = arith.mulf %5, %2 : vector<1024x128xf32>
    %7 = arith.select %4, %2, %6 : vector<1024x128xi1>, vector<1024x128xf32>
    %8 = arith.truncf %7 : vector<1024x128xf32> to vector<1024x128xbf16>
    %c0_5 = arith.constant 0 : index
    %c0_6 = arith.constant 0 : index
    %9 = vector.load %arg3[%c0_5, %c0_6] : memref<1024x128xbf16, #tpu.memory_space<vmem>>, vector<1024x128xbf16>
    tpu.vector_store %arg3[%c0_5, %c0_6], %8 {strides = array<i32>} : memref<1024x128xbf16, #tpu.memory_space<vmem>>, vector<1024x128xbf16>,
    return
  }
  func.func @transform_0(%arg0: i32) -> (i32, i32) {
    %c0_i32 = arith.constant 0 : i32
    %c0_i32_0 = arith.constant 0 : i32
    return %arg0, %c0_i32 : i32, i32
  }
  func.func @transform_1(%arg0: i32) -> (i32, i32) {
    %c0_i32 = arith.constant 0 : i32
    %c0_i32_0 = arith.constant 0 : i32
    %c0_i32_1 = arith.constant 0 : i32
    return %c0_i32, %c0_i32_0 : i32, i32
  }
  func.func @transform_2(%arg0: i32) -> (i32, i32) {
    %c0_i32 = arith.constant 0 : i32
    %c0_i32_0 = arith.constant 0 : i32
    return %arg0, %c0_i32 : i32, i32
  }
}

module attributes {stable_mosaic.version = 11 : i64} {
  func.func @_conv_gemm_kernel(%arg0: i32, %arg1: memref<450x128xbf16, #tpu.memory_space<vmem>>, %arg2: memref<128x128xbf16, #tpu.memory_space<vmem>>, %arg3: memref<450x128xbf16, #tpu.memory_space<vmem>>, %arg4: memref<1x128xf32, #tpu.memory_space<vmem>>, %arg5: memref<1x128xf32, #tpu.memory_space<vmem>>) attributes {dimension_semantics = [#tpu.dimension_semantics<parallel>], iteration_bounds = array<i64: 1>, scalar_prefetch = 0 : i64, scratch_operands = 0 : i64, tpu.core_type = #tpu.core_type<tc>, window_params = [{transform_indices = @transform_0, window_bounds = array<i64: 450, 128>}, {pipeline_mode = #tpu.pipeline_mode<synchronous>, transform_indices = @transform_1, window_bounds = array<i64: 128, 128>}, {transform_indices = @transform_2, window_bounds = array<i64: 450, 128>}, {transform_indices = @transform_3, window_bounds = array<i64: 1, 128>}, {transform_indices = @transform_4, window_bounds = array<i64: 1, 128>}]} {
    %c0 = arith.constant 0 : index
    %c0_0 = arith.constant 0 : index
    %0 = vector.load %arg1[%c0, %c0_0] : memref<450x128xbf16, #tpu.memory_space<vmem>>, vector<450x128xbf16>
    %c0_1 = arith.constant 0 : index
    %c0_2 = arith.constant 0 : index
    %1 = vector.load %arg2[%c0_1, %c0_2] : memref<128x128xbf16, #tpu.memory_space<vmem>>, vector<128x128xbf16>
    %cst = arith.constant dense<0.000000e+00> : vector<450x128xf32>
    %2 = tpu.matmul %0, %1, %cst {dimension_numbers = #tpu.dot_dimension_numbers<[1], [0], [0], [1], [0, 0, 1, 1], [], []>} : vector<450x128xbf16>, vector<128x128xbf16>, vector<450x128xf32> -> vector<450x128xf32>
    %3 = arith.truncf %2 : vector<450x128xf32> to vector<450x128xbf16>
    %c0_3 = arith.constant 0 : index
    %c0_4 = arith.constant 0 : index
    %4 = vector.load %arg3[%c0_3, %c0_4] : memref<450x128xbf16, #tpu.memory_space<vmem>>, vector<450x128xbf16>
    tpu.vector_store %arg3[%c0_3, %c0_4], %3 {strides = array<i32>} : memref<450x128xbf16, #tpu.memory_space<vmem>>, vector<450x128xbf16>,
    %5 = arith.extf %3 : vector<450x128xbf16> to vector<450x128xf32>
    %cst_5 = arith.constant dense<0.000000e+00> : vector<128xf32>
    %6 = vector.multi_reduction <add>, %5, %cst_5 [0] : vector<450x128xf32> to vector<128xf32>
    %7 = vector.shape_cast %6 : vector<128xf32> to vector<1x128xf32>
    %c0_6 = arith.constant 0 : index
    %c0_7 = arith.constant 0 : index
    %8 = vector.load %arg4[%c0_6, %c0_7] : memref<1x128xf32, #tpu.memory_space<vmem>>, vector<1x128xf32>
    tpu.vector_store %arg4[%c0_6, %c0_7], %7 {strides = array<i32>} : memref<1x128xf32, #tpu.memory_space<vmem>>, vector<1x128xf32>,
    %9 = arith.mulf %5, %5 : vector<450x128xf32>
    %cst_8 = arith.constant dense<0.000000e+00> : vector<128xf32>
    %10 = vector.multi_reduction <add>, %9, %cst_8 [0] : vector<450x128xf32> to vector<128xf32>
    %11 = vector.shape_cast %10 : vector<128xf32> to vector<1x128xf32>
    %c0_9 = arith.constant 0 : index
    %c0_10 = arith.constant 0 : index
    %12 = vector.load %arg5[%c0_9, %c0_10] : memref<1x128xf32, #tpu.memory_space<vmem>>, vector<1x128xf32>
    tpu.vector_store %arg5[%c0_9, %c0_10], %11 {strides = array<i32>} : memref<1x128xf32, #tpu.memory_space<vmem>>, vector<1x128xf32>,
    return
  }
  func.func @transform_0(%arg0: i32) -> (i32, i32) {
    %c0_i32 = arith.constant 0 : i32
    %c0_i32_0 = arith.constant 0 : i32
    return %arg0, %c0_i32 : i32, i32
  }
  func.func @transform_1(%arg0: i32) -> (i32, i32) {
    %c0_i32 = arith.constant 0 : i32
    %c0_i32_0 = arith.constant 0 : i32
    %c0_i32_1 = arith.constant 0 : i32
    return %c0_i32, %c0_i32_0 : i32, i32
  }
  func.func @transform_2(%arg0: i32) -> (i32, i32) {
    %c0_i32 = arith.constant 0 : i32
    %c0_i32_0 = arith.constant 0 : i32
    return %arg0, %c0_i32 : i32, i32
  }
  func.func @transform_3(%arg0: i32) -> (i32, i32) {
    %c0_i32 = arith.constant 0 : i32
    %c0_i32_0 = arith.constant 0 : i32
    return %arg0, %c0_i32 : i32, i32
  }
  func.func @transform_4(%arg0: i32) -> (i32, i32) {
    %c0_i32 = arith.constant 0 : i32
    %c0_i32_0 = arith.constant 0 : i32
    return %arg0, %c0_i32 : i32, i32
  }
}

module attributes {stable_mosaic.version = 11 : i64} {
  func.func @_conv_gemm_kernel(%arg0: i32, %arg1: memref<72x256xbf16, #tpu.memory_space<vmem>>, %arg2: memref<256x128xbf16, #tpu.memory_space<vmem>>, %arg3: memref<1x256xf32, #tpu.memory_space<vmem>>, %arg4: memref<1x256xf32, #tpu.memory_space<vmem>>, %arg5: memref<72x128xbf16, #tpu.memory_space<vmem>>, %arg6: memref<1x128xf32, #tpu.memory_space<vmem>>, %arg7: memref<1x128xf32, #tpu.memory_space<vmem>>) attributes {dimension_semantics = [#tpu.dimension_semantics<parallel>], iteration_bounds = array<i64: 1>, scalar_prefetch = 0 : i64, scratch_operands = 0 : i64, tpu.core_type = #tpu.core_type<tc>, window_params = [{transform_indices = @transform_0, window_bounds = array<i64: 72, 256>}, {pipeline_mode = #tpu.pipeline_mode<synchronous>, transform_indices = @transform_1, window_bounds = array<i64: 256, 128>}, {pipeline_mode = #tpu.pipeline_mode<synchronous>, transform_indices = @transform_2, window_bounds = array<i64: 1, 256>}, {pipeline_mode = #tpu.pipeline_mode<synchronous>, transform_indices = @transform_3, window_bounds = array<i64: 1, 256>}, {transform_indices = @transform_4, window_bounds = array<i64: 72, 128>}, {transform_indices = @transform_5, window_bounds = array<i64: 1, 128>}, {transform_indices = @transform_6, window_bounds = array<i64: 1, 128>}]} {
    %c0 = arith.constant 0 : index
    %c0_0 = arith.constant 0 : index
    %0 = vector.load %arg1[%c0, %c0_0] : memref<72x256xbf16, #tpu.memory_space<vmem>>, vector<72x256xbf16>
    %1 = arith.extf %0 : vector<72x256xbf16> to vector<72x256xf32>
    %c0_1 = arith.constant 0 : index
    %c0_2 = arith.constant 0 : index
    %2 = vector.load %arg3[%c0_1, %c0_2] : memref<1x256xf32, #tpu.memory_space<vmem>>, vector<1x256xf32>
    %3 = vector.broadcast %2 : vector<1x256xf32> to vector<72x256xf32>
    %4 = arith.mulf %1, %3 : vector<72x256xf32>
    %c0_3 = arith.constant 0 : index
    %c0_4 = arith.constant 0 : index
    %5 = vector.load %arg4[%c0_3, %c0_4] : memref<1x256xf32, #tpu.memory_space<vmem>>, vector<1x256xf32>
    %6 = vector.broadcast %5 : vector<1x256xf32> to vector<72x256xf32>
    %7 = arith.addf %4, %6 : vector<72x256xf32>
    %cst = arith.constant 0.000000e+00 : f32
    %8 = vector.broadcast %cst : f32 to vector<72x256xf32>
    %9 = arith.cmpf oge, %7, %8 : vector<72x256xf32>
    %cst_5 = arith.constant 2.000000e-01 : f32
    %10 = vector.broadcast %cst_5 : f32 to vector<72x256xf32>
    %11 = arith.mulf %10, %7 : vector<72x256xf32>
    %12 = arith.select %9, %7, %11 : vector<72x256xi1>, vector<72x256xf32>
    %13 = arith.truncf %12 : vector<72x256xf32> to vector<72x256xbf16>
    %c0_6 = arith.constant 0 : index
    %c0_7 = arith.constant 0 : index
    %14 = vector.load %arg2[%c0_6, %c0_7] : memref<256x128xbf16, #tpu.memory_space<vmem>>, vector<256x128xbf16>
    %cst_8 = arith.constant dense<0.000000e+00> : vector<72x128xf32>
    %15 = tpu.matmul %13, %14, %cst_8 {dimension_numbers = #tpu.dot_dimension_numbers<[1], [0], [0], [1], [0, 0, 1, 1], [], []>} : vector<72x256xbf16>, vector<256x128xbf16>, vector<72x128xf32> -> vector<72x128xf32>
    %16 = arith.truncf %15 : vector<72x128xf32> to vector<72x128xbf16>
    %c0_9 = arith.constant 0 : index
    %c0_10 = arith.constant 0 : index
    %17 = vector.load %arg5[%c0_9, %c0_10] : memref<72x128xbf16, #tpu.memory_space<vmem>>, vector<72x128xbf16>
    tpu.vector_store %arg5[%c0_9, %c0_10], %16 {strides = array<i32>} : memref<72x128xbf16, #tpu.memory_space<vmem>>, vector<72x128xbf16>,
    %18 = arith.extf %16 : vector<72x128xbf16> to vector<72x128xf32>
    %cst_11 = arith.constant dense<0.000000e+00> : vector<128xf32>
    %19 = vector.multi_reduction <add>, %18, %cst_11 [0] : vector<72x128xf32> to vector<128xf32>
    %20 = vector.shape_cast %19 : vector<128xf32> to vector<1x128xf32>
    %c0_12 = arith.constant 0 : index
    %c0_13 = arith.constant 0 : index
    %21 = vector.load %arg6[%c0_12, %c0_13] : memref<1x128xf32, #tpu.memory_space<vmem>>, vector<1x128xf32>
    tpu.vector_store %arg6[%c0_12, %c0_13], %20 {strides = array<i32>} : memref<1x128xf32, #tpu.memory_space<vmem>>, vector<1x128xf32>,
    %22 = arith.mulf %18, %18 : vector<72x128xf32>
    %cst_14 = arith.constant dense<0.000000e+00> : vector<128xf32>
    %23 = vector.multi_reduction <add>, %22, %cst_14 [0] : vector<72x128xf32> to vector<128xf32>
    %24 = vector.shape_cast %23 : vector<128xf32> to vector<1x128xf32>
    %c0_15 = arith.constant 0 : index
    %c0_16 = arith.constant 0 : index
    %25 = vector.load %arg7[%c0_15, %c0_16] : memref<1x128xf32, #tpu.memory_space<vmem>>, vector<1x128xf32>
    tpu.vector_store %arg7[%c0_15, %c0_16], %24 {strides = array<i32>} : memref<1x128xf32, #tpu.memory_space<vmem>>, vector<1x128xf32>,
    return
  }
  func.func @transform_0(%arg0: i32) -> (i32, i32) {
    %c0_i32 = arith.constant 0 : i32
    %c0_i32_0 = arith.constant 0 : i32
    return %arg0, %c0_i32 : i32, i32
  }
  func.func @transform_1(%arg0: i32) -> (i32, i32) {
    %c0_i32 = arith.constant 0 : i32
    %c0_i32_0 = arith.constant 0 : i32
    %c0_i32_1 = arith.constant 0 : i32
    return %c0_i32, %c0_i32_0 : i32, i32
  }
  func.func @transform_2(%arg0: i32) -> (i32, i32) {
    %c0_i32 = arith.constant 0 : i32
    %c0_i32_0 = arith.constant 0 : i32
    %c0_i32_1 = arith.constant 0 : i32
    return %c0_i32, %c0_i32_0 : i32, i32
  }
  func.func @transform_3(%arg0: i32) -> (i32, i32) {
    %c0_i32 = arith.constant 0 : i32
    %c0_i32_0 = arith.constant 0 : i32
    %c0_i32_1 = arith.constant 0 : i32
    return %c0_i32, %c0_i32_0 : i32, i32
  }
  func.func @transform_4(%arg0: i32) -> (i32, i32) {
    %c0_i32 = arith.constant 0 : i32
    %c0_i32_0 = arith.constant 0 : i32
    return %arg0, %c0_i32 : i32, i32
  }
  func.func @transform_5(%arg0: i32) -> (i32, i32) {
    %c0_i32 = arith.constant 0 : i32
    %c0_i32_0 = arith.constant 0 : i32
    return %arg0, %c0_i32 : i32, i32
  }
  func.func @transform_6(%arg0: i32) -> (i32, i32) {
    %c0_i32 = arith.constant 0 : i32
    %c0_i32_0 = arith.constant 0 : i32
    return %arg0, %c0_i32 : i32, i32
  }
}

module attributes {stable_mosaic.version = 11 : i64} {
  func.func @_conv_gemm_kernel(%arg0: i32, %arg1: memref<18x512xbf16, #tpu.memory_space<vmem>>, %arg2: memref<512x128xbf16, #tpu.memory_space<vmem>>, %arg3: memref<1x512xf32, #tpu.memory_space<vmem>>, %arg4: memref<1x512xf32, #tpu.memory_space<vmem>>, %arg5: memref<18x128xbf16, #tpu.memory_space<vmem>>, %arg6: memref<1x128xf32, #tpu.memory_space<vmem>>, %arg7: memref<1x128xf32, #tpu.memory_space<vmem>>) attributes {dimension_semantics = [#tpu.dimension_semantics<parallel>], iteration_bounds = array<i64: 1>, scalar_prefetch = 0 : i64, scratch_operands = 0 : i64, tpu.core_type = #tpu.core_type<tc>, window_params = [{transform_indices = @transform_0, window_bounds = array<i64: 18, 512>}, {pipeline_mode = #tpu.pipeline_mode<synchronous>, transform_indices = @transform_1, window_bounds = array<i64: 512, 128>}, {pipeline_mode = #tpu.pipeline_mode<synchronous>, transform_indices = @transform_2, window_bounds = array<i64: 1, 512>}, {pipeline_mode = #tpu.pipeline_mode<synchronous>, transform_indices = @transform_3, window_bounds = array<i64: 1, 512>}, {transform_indices = @transform_4, window_bounds = array<i64: 18, 128>}, {transform_indices = @transform_5, window_bounds = array<i64: 1, 128>}, {transform_indices = @transform_6, window_bounds = array<i64: 1, 128>}]} {
    %c0 = arith.constant 0 : index
    %c0_0 = arith.constant 0 : index
    %0 = vector.load %arg1[%c0, %c0_0] : memref<18x512xbf16, #tpu.memory_space<vmem>>, vector<18x512xbf16>
    %1 = arith.extf %0 : vector<18x512xbf16> to vector<18x512xf32>
    %c0_1 = arith.constant 0 : index
    %c0_2 = arith.constant 0 : index
    %2 = vector.load %arg3[%c0_1, %c0_2] : memref<1x512xf32, #tpu.memory_space<vmem>>, vector<1x512xf32>
    %3 = vector.broadcast %2 : vector<1x512xf32> to vector<18x512xf32>
    %4 = arith.mulf %1, %3 : vector<18x512xf32>
    %c0_3 = arith.constant 0 : index
    %c0_4 = arith.constant 0 : index
    %5 = vector.load %arg4[%c0_3, %c0_4] : memref<1x512xf32, #tpu.memory_space<vmem>>, vector<1x512xf32>
    %6 = vector.broadcast %5 : vector<1x512xf32> to vector<18x512xf32>
    %7 = arith.addf %4, %6 : vector<18x512xf32>
    %cst = arith.constant 0.000000e+00 : f32
    %8 = vector.broadcast %cst : f32 to vector<18x512xf32>
    %9 = arith.cmpf oge, %7, %8 : vector<18x512xf32>
    %cst_5 = arith.constant 2.000000e-01 : f32
    %10 = vector.broadcast %cst_5 : f32 to vector<18x512xf32>
    %11 = arith.mulf %10, %7 : vector<18x512xf32>
    %12 = arith.select %9, %7, %11 : vector<18x512xi1>, vector<18x512xf32>
    %13 = arith.truncf %12 : vector<18x512xf32> to vector<18x512xbf16>
    %c0_6 = arith.constant 0 : index
    %c0_7 = arith.constant 0 : index
    %14 = vector.load %arg2[%c0_6, %c0_7] : memref<512x128xbf16, #tpu.memory_space<vmem>>, vector<512x128xbf16>
    %cst_8 = arith.constant dense<0.000000e+00> : vector<18x128xf32>
    %15 = tpu.matmul %13, %14, %cst_8 {dimension_numbers = #tpu.dot_dimension_numbers<[1], [0], [0], [1], [0, 0, 1, 1], [], []>} : vector<18x512xbf16>, vector<512x128xbf16>, vector<18x128xf32> -> vector<18x128xf32>
    %16 = arith.truncf %15 : vector<18x128xf32> to vector<18x128xbf16>
    %c0_9 = arith.constant 0 : index
    %c0_10 = arith.constant 0 : index
    %17 = vector.load %arg5[%c0_9, %c0_10] : memref<18x128xbf16, #tpu.memory_space<vmem>>, vector<18x128xbf16>
    tpu.vector_store %arg5[%c0_9, %c0_10], %16 {strides = array<i32>} : memref<18x128xbf16, #tpu.memory_space<vmem>>, vector<18x128xbf16>,
    %18 = arith.extf %16 : vector<18x128xbf16> to vector<18x128xf32>
    %cst_11 = arith.constant dense<0.000000e+00> : vector<128xf32>
    %19 = vector.multi_reduction <add>, %18, %cst_11 [0] : vector<18x128xf32> to vector<128xf32>
    %20 = vector.shape_cast %19 : vector<128xf32> to vector<1x128xf32>
    %c0_12 = arith.constant 0 : index
    %c0_13 = arith.constant 0 : index
    %21 = vector.load %arg6[%c0_12, %c0_13] : memref<1x128xf32, #tpu.memory_space<vmem>>, vector<1x128xf32>
    tpu.vector_store %arg6[%c0_12, %c0_13], %20 {strides = array<i32>} : memref<1x128xf32, #tpu.memory_space<vmem>>, vector<1x128xf32>,
    %22 = arith.mulf %18, %18 : vector<18x128xf32>
    %cst_14 = arith.constant dense<0.000000e+00> : vector<128xf32>
    %23 = vector.multi_reduction <add>, %22, %cst_14 [0] : vector<18x128xf32> to vector<128xf32>
    %24 = vector.shape_cast %23 : vector<128xf32> to vector<1x128xf32>
    %c0_15 = arith.constant 0 : index
    %c0_16 = arith.constant 0 : index
    %25 = vector.load %arg7[%c0_15, %c0_16] : memref<1x128xf32, #tpu.memory_space<vmem>>, vector<1x128xf32>
    tpu.vector_store %arg7[%c0_15, %c0_16], %24 {strides = array<i32>} : memref<1x128xf32, #tpu.memory_space<vmem>>, vector<1x128xf32>,
    return
  }
  func.func @transform_0(%arg0: i32) -> (i32, i32) {
    %c0_i32 = arith.constant 0 : i32
    %c0_i32_0 = arith.constant 0 : i32
    return %arg0, %c0_i32 : i32, i32
  }
  func.func @transform_1(%arg0: i32) -> (i32, i32) {
    %c0_i32 = arith.constant 0 : i32
    %c0_i32_0 = arith.constant 0 : i32
    %c0_i32_1 = arith.constant 0 : i32
    return %c0_i32, %c0_i32_0 : i32, i32
  }
  func.func @transform_2(%arg0: i32) -> (i32, i32) {
    %c0_i32 = arith.constant 0 : i32
    %c0_i32_0 = arith.constant 0 : i32
    %c0_i32_1 = arith.constant 0 : i32
    return %c0_i32, %c0_i32_0 : i32, i32
  }
  func.func @transform_3(%arg0: i32) -> (i32, i32) {
    %c0_i32 = arith.constant 0 : i32
    %c0_i32_0 = arith.constant 0 : i32
    %c0_i32_1 = arith.constant 0 : i32
    return %c0_i32, %c0_i32_0 : i32, i32
  }
  func.func @transform_4(%arg0: i32) -> (i32, i32) {
    %c0_i32 = arith.constant 0 : i32
    %c0_i32_0 = arith.constant 0 : i32
    return %arg0, %c0_i32 : i32, i32
  }
  func.func @transform_5(%arg0: i32) -> (i32, i32) {
    %c0_i32 = arith.constant 0 : i32
    %c0_i32_0 = arith.constant 0 : i32
    return %arg0, %c0_i32 : i32, i32
  }
  func.func @transform_6(%arg0: i32) -> (i32, i32) {
    %c0_i32 = arith.constant 0 : i32
    %c0_i32_0 = arith.constant 0 : i32
    return %arg0, %c0_i32 : i32, i32
  }
}

module attributes {stable_mosaic.version = 11 : i64} {
  func.func @_conv_gemm_kernel(%arg0: i32, %arg1: memref<8x1024xbf16, #tpu.memory_space<vmem>>, %arg2: memref<1024x128xbf16, #tpu.memory_space<vmem>>, %arg3: memref<1x1024xf32, #tpu.memory_space<vmem>>, %arg4: memref<1x1024xf32, #tpu.memory_space<vmem>>, %arg5: memref<1x128xf32, #tpu.memory_space<vmem>>, %arg6: memref<8x128xf32, #tpu.memory_space<vmem>>) attributes {dimension_semantics = [#tpu.dimension_semantics<parallel>], iteration_bounds = array<i64: 1>, scalar_prefetch = 0 : i64, scratch_operands = 0 : i64, tpu.core_type = #tpu.core_type<tc>, window_params = [{transform_indices = @transform_0, window_bounds = array<i64: 8, 1024>}, {pipeline_mode = #tpu.pipeline_mode<synchronous>, transform_indices = @transform_1, window_bounds = array<i64: 1024, 128>}, {pipeline_mode = #tpu.pipeline_mode<synchronous>, transform_indices = @transform_2, window_bounds = array<i64: 1, 1024>}, {pipeline_mode = #tpu.pipeline_mode<synchronous>, transform_indices = @transform_3, window_bounds = array<i64: 1, 1024>}, {pipeline_mode = #tpu.pipeline_mode<synchronous>, transform_indices = @transform_4, window_bounds = array<i64: 1, 128>}, {transform_indices = @transform_5, window_bounds = array<i64: 8, 128>}]} {
    %c0 = arith.constant 0 : index
    %c0_0 = arith.constant 0 : index
    %0 = vector.load %arg1[%c0, %c0_0] : memref<8x1024xbf16, #tpu.memory_space<vmem>>, vector<8x1024xbf16>
    %1 = arith.extf %0 : vector<8x1024xbf16> to vector<8x1024xf32>
    %c0_1 = arith.constant 0 : index
    %c0_2 = arith.constant 0 : index
    %2 = vector.load %arg3[%c0_1, %c0_2] : memref<1x1024xf32, #tpu.memory_space<vmem>>, vector<1x1024xf32>
    %3 = vector.broadcast %2 : vector<1x1024xf32> to vector<8x1024xf32>
    %4 = arith.mulf %1, %3 : vector<8x1024xf32>
    %c0_3 = arith.constant 0 : index
    %c0_4 = arith.constant 0 : index
    %5 = vector.load %arg4[%c0_3, %c0_4] : memref<1x1024xf32, #tpu.memory_space<vmem>>, vector<1x1024xf32>
    %6 = vector.broadcast %5 : vector<1x1024xf32> to vector<8x1024xf32>
    %7 = arith.addf %4, %6 : vector<8x1024xf32>
    %cst = arith.constant 0.000000e+00 : f32
    %8 = vector.broadcast %cst : f32 to vector<8x1024xf32>
    %9 = arith.cmpf oge, %7, %8 : vector<8x1024xf32>
    %cst_5 = arith.constant 2.000000e-01 : f32
    %10 = vector.broadcast %cst_5 : f32 to vector<8x1024xf32>
    %11 = arith.mulf %10, %7 : vector<8x1024xf32>
    %12 = arith.select %9, %7, %11 : vector<8x1024xi1>, vector<8x1024xf32>
    %13 = arith.truncf %12 : vector<8x1024xf32> to vector<8x1024xbf16>
    %c0_6 = arith.constant 0 : index
    %c0_7 = arith.constant 0 : index
    %14 = vector.load %arg2[%c0_6, %c0_7] : memref<1024x128xbf16, #tpu.memory_space<vmem>>, vector<1024x128xbf16>
    %cst_8 = arith.constant dense<0.000000e+00> : vector<8x128xf32>
    %15 = tpu.matmul %13, %14, %cst_8 {dimension_numbers = #tpu.dot_dimension_numbers<[1], [0], [0], [1], [0, 0, 1, 1], [], []>} : vector<8x1024xbf16>, vector<1024x128xbf16>, vector<8x128xf32> -> vector<8x128xf32>
    %c0_9 = arith.constant 0 : index
    %c0_10 = arith.constant 0 : index
    %16 = vector.load %arg5[%c0_9, %c0_10] : memref<1x128xf32, #tpu.memory_space<vmem>>, vector<1x128xf32>
    %17 = vector.broadcast %16 : vector<1x128xf32> to vector<8x128xf32>
    %18 = arith.addf %15, %17 : vector<8x128xf32>
    %c0_11 = arith.constant 0 : index
    %c0_12 = arith.constant 0 : index
    %19 = vector.load %arg6[%c0_11, %c0_12] : memref<8x128xf32, #tpu.memory_space<vmem>>, vector<8x128xf32>
    tpu.vector_store %arg6[%c0_11, %c0_12], %18 {strides = array<i32>} : memref<8x128xf32, #tpu.memory_space<vmem>>, vector<8x128xf32>,
    return
  }
  func.func @transform_0(%arg0: i32) -> (i32, i32) {
    %c0_i32 = arith.constant 0 : i32
    %c0_i32_0 = arith.constant 0 : i32
    return %arg0, %c0_i32 : i32, i32
  }
  func.func @transform_1(%arg0: i32) -> (i32, i32) {
    %c0_i32 = arith.constant 0 : i32
    %c0_i32_0 = arith.constant 0 : i32
    %c0_i32_1 = arith.constant 0 : i32
    return %c0_i32, %c0_i32_0 : i32, i32
  }
  func.func @transform_2(%arg0: i32) -> (i32, i32) {
    %c0_i32 = arith.constant 0 : i32
    %c0_i32_0 = arith.constant 0 : i32
    %c0_i32_1 = arith.constant 0 : i32
    return %c0_i32, %c0_i32_0 : i32, i32
  }
  func.func @transform_3(%arg0: i32) -> (i32, i32) {
    %c0_i32 = arith.constant 0 : i32
    %c0_i32_0 = arith.constant 0 : i32
    %c0_i32_1 = arith.constant 0 : i32
    return %c0_i32, %c0_i32_0 : i32, i32
  }
  func.func @transform_4(%arg0: i32) -> (i32, i32) {
    %c0_i32 = arith.constant 0 : i32
    %c0_i32_0 = arith.constant 0 : i32
    %c0_i32_1 = arith.constant 0 : i32
    return %c0_i32, %c0_i32_0 : i32, i32
  }
  func.func @transform_5(%arg0: i32) -> (i32, i32) {
    %c0_i32 = arith.constant 0 : i32
    %c0_i32_0 = arith.constant 0 : i32
    return %arg0, %c0_i32 : i32, i32
  }
}

</mosaic_0001>

<llo_original>
// kernel: descriminator_forward.5
$region0: #{descriminator_forward.5}
  #allocation0 [shape = 'u32[]', space=smem, size = 0x4, offset = 0x4, fixed_abs, tag = 'smem constant byte address 0x4 - core index']
  #allocation1 [shape = 'u32[144,128]{1,0:T(1,128)}', space=vmem, size = 0x12000, scoped, tag = 'internal scratch']
  %s0 = inlined_call_operand.vmem [shape: bf16[2048,128], index: 0, kind: input, shape index: {}]
  %s1 = inlined_call_operand.vmem [shape: bf16[128,128], index: 1, kind: input, shape index: {}]
  %s2 = inlined_call_operand.vmem [shape: bf16[2048,128], index: 2, kind: output, shape index: {}]
  %s3 = sld [smem:[#allocation0]]
  $region41: #{descriminator_forward.5} parent=0
    _
  %s5 = ssub.s32 1, %s3
  %s6 = scalar_select 0, %s5, %s3
  loop: start=0, step=1, limit=4
  $region2: #{descriminator_forward.5} parent=0 // loop_pre_header
    _
  $region3: #{descriminator_forward.5} parent=0 // loop_header
    %s8 = sphi 0, %s12
    %p9 = scmp.ge.s32.totalorder %s8, 4
    %s18 = sphi 0, %s20
    %s21 = sphi 0, %s18
    %s22 = sphi 0, %s21
    %s38 = sphi 0, %s22
    %s42 = sphi 0, %s42
    %s44 = sphi 0, %s42
    %s45 = sphi 0, %s44
    %s59 = sphi 0, %s45
    %s65 = sphi 0, %s67
    %s68 = sphi 0, %s65
    %s69 = sphi 0, %s68
    %s85 = sphi 0, %s69
  $region4: #{descriminator_forward.5} parent=0 // loop_header_branch
    %11 = sbr.rel (%p9) target = $region8
  $region5: #{descriminator_forward.5} parent=0 // loop_body
    %s13 = ssub.s32 %s8, 1
    %s14 = ssub.s32 %s8, 2
    %s15 = sadd.s32 %s8, 1
    %s16 = ssub.s32 %s8, %s15
    %p17 = scmp.eq.s32.totalorder %s16, 0
    %s19 = sadd.s32 %s18, 1
    %s20 = scalar_select %p17, %s18, %s19
    %p23 = pneg %p17
    %p24 = scmp.eq.s32.totalorder %s8, 1
    %p25 = por %p23, %p24
    %p26 = scmp.ne.s32.totalorder %s18, %s21
    %p27 = scmp.eq.s32.totalorder %s8, 0
    %p28 = por %p26, %p27
    %p29 = scmp.ne.s32.totalorder %s18, %s21
    %p30 = scmp.eq.s32.totalorder %s13, 1
    %p31 = por %p29, %p30
    %p32 = scmp.ne.s32.totalorder %s21, %s22
    %p33 = scmp.eq.s32.totalorder %s13, 0
    %p34 = por %p32, %p33
    %p35 = scmp.ne.s32.totalorder %s21, %s22
    %p36 = scmp.eq.s32.totalorder %s14, 1
    %p37 = por %p35, %p36
    %p39 = scmp.ne.s32.totalorder %s22, %s38
    %p40 = scmp.eq.s32.totalorder %s14, 0
    %p41 = por %p39, %p40
    %s43 = sadd.s32 %s42, 1
    %p46 = scmp.eq.s32.totalorder %s8, 1
    %p47 = scmp.ne.s32.totalorder %s42, %s44
    %p48 = scmp.eq.s32.totalorder %s8, 0
    %p49 = por %p47, %p48
    %p50 = scmp.ne.s32.totalorder %s42, %s44
    %p51 = scmp.eq.s32.totalorder %s13, 1
    %p52 = por %p50, %p51
    %p53 = scmp.ne.s32.totalorder %s44, %s45
    %p54 = scmp.eq.s32.totalorder %s13, 0
    %p55 = por %p53, %p54
    %p56 = scmp.ne.s32.totalorder %s44, %s45
    %p57 = scmp.eq.s32.totalorder %s14, 1
    %p58 = por %p56, %p57
    %p60 = scmp.ne.s32.totalorder %s45, %s59
    %p61 = scmp.eq.s32.totalorder %s14, 0
    %p62 = por %p60, %p61
    %s63 = ssub.s32 %s8, %s15
    %p64 = scmp.eq.s32.totalorder %s63, 0
    %s66 = sadd.s32 %s65, 1
    %s67 = scalar_select %p64, %s65, %s66
    %p70 = pneg %p64
    %p71 = scmp.eq.s32.totalorder %s8, 1
    %p72 = por %p70, %p71
    %p73 = scmp.ne.s32.totalorder %s65, %s68
    %p74 = scmp.eq.s32.totalorder %s8, 0
    %p75 = por %p73, %p74
    %p76 = scmp.ne.s32.totalorder %s65, %s68
    %p77 = scmp.eq.s32.totalorder %s13, 1
    %p78 = por %p76, %p77
    %p79 = scmp.ne.s32.totalorder %s68, %s69
    %p80 = scmp.eq.s32.totalorder %s13, 0
    %p81 = por %p79, %p80
    %p82 = scmp.ne.s32.totalorder %s68, %s69
    %p83 = scmp.eq.s32.totalorder %s14, 1
    %p84 = por %p82, %p83
    %p86 = scmp.ne.s32.totalorder %s69, %s85
    %p87 = scmp.eq.s32.totalorder %s14, 0
    %p88 = por %p86, %p87
    %p89 = scmp.le.s32.totalorder 1, %s8
    %p90 = scmp.lt.s32.totalorder %s8, 3
    %p91 = pnand %p89, %p90
    %p92 = pneg %p91
    // Predicated region
    $region9: #{descriminator_forward.5} parent=5 // pred_check
      _
    $region10: #{descriminator_forward.5} parent=5 // pred_check_branch
      %94 = sbr.rel (%p91) target = $region12
    $region11: #{descriminator_forward.5} parent=5 // pred_region
      %s95 = ssub.s32 %s8, 1
      // Predicated region
      $region13: #{descriminator_forward.5} parent=11 // pred_check
        %p96 = pneg %p55
      $region14: #{descriminator_forward.5} parent=11 // pred_check_branch
        %98 = sbr.rel (%p96) target = $region16
      $region15: #{descriminator_forward.5} parent=11 // pred_region
        _
      $region16: #{descriminator_forward.5} parent=11 // pred_fallthru
        _
    $region12: #{descriminator_forward.5} parent=5 // pred_fallthru
      _
    %p99 = scmp.lt.s32.totalorder %s8, 2
    // Predicated region
    $region17: #{descriminator_forward.5} parent=5 // pred_check
      %p100 = pneg %p99
    $region18: #{descriminator_forward.5} parent=5 // pred_check_branch
      %102 = sbr.rel (%p100) target = $region20
    $region19: #{descriminator_forward.5} parent=5 // pred_region
      // Predicated region
      $region21: #{descriminator_forward.5} parent=19 // pred_check
        %p103 = pneg %p28
      $region22: #{descriminator_forward.5} parent=19 // pred_check_branch
        %105 = sbr.rel (%p103) target = $region24
      $region23: #{descriminator_forward.5} parent=19 // pred_region
        %s106 = smul.u32 128, %s8
        %p107 = scmp.lt.s32.totalorder %s106, 255
        %s108 = scalar_select %p107, %s106, 255
        %s109 = smul.addr %s108, 4
        %s110 = scalar_lea.vmem %s0, %s109
        %s111 = smul.u32 128, %s8
      $region24: #{descriminator_forward.5} parent=19 // pred_fallthru
        _
    $region20: #{descriminator_forward.5} parent=5 // pred_fallthru
      _
    %p112 = scmp.le.s32.totalorder 1, %s8
    %p113 = scmp.lt.s32.totalorder %s8, 3
    %p114 = pnand %p112, %p113
    %p115 = pneg %p114
    // Predicated region
    $region25: #{descriminator_forward.5} parent=5 // pred_check
      _
    $region26: #{descriminator_forward.5} parent=5 // pred_check_branch
      %117 = sbr.rel (%p114) target = $region28
    $region27: #{descriminator_forward.5} parent=5 // pred_region
      %s118 = ssub.s32 %s8, 1
      %s119 = smul.u32 128, %s13
      %p120 = scmp.lt.s32.totalorder %s119, 255
      %s121 = scalar_select %p120, %s119, 255
      %s122 = smul.addr %s121, 4
      %s123 = scalar_lea.vmem %s0, %s122
      %p124 = pneg %p34
      %p125 = pneg %p31
      %p126 = pneg %p55
      %p127 = pneg %p52
      %p128 = pneg %p81
      %p129 = pneg %p78
      %s130 = smul.u32 128, %s13
      %p131 = scmp.lt.s32.totalorder %s130, 255
      %s132 = scalar_select %p131, %s130, 255
      %s133 = smul.addr %s132, 4
      %s134 = scalar_lea.vmem %s2, %s133
      %s135 = smul.u32 128, %s13
      %p136 = scmp.lt.s32.totalorder %s135, 255
      %s137 = scalar_select %p136, %s135, 255
      %s138 = smul.addr %s137, 4
      %s139 = scalar_lea.vmem %s0, %s138
      %s140 = smul.u32 128, %s13
      %s141 = smul.u32 128, %s13
      %p142 = scmp.lt.s32.totalorder %s141, 255
      %s143 = scalar_select %p142, %s141, 255
      %s144 = smul.addr %s143, 4
      %s145 = scalar_lea.vmem %s2, %s144
      %s146 = smul.u32 128, %s13
      %v148 = vld [vmem:[%s139] sm:$0xf]
      %v149 = vld [vmem:[%s139 + $0x4] sm:$0xf]
      %v150 = vld [vmem:[%s139 + $0x8] sm:$0xf]
      %v151 = vld [vmem:[%s139 + $0xc] sm:$0xf]
      %v152 = vld [vmem:[%s139 + $0x10] sm:$0xf]
      %v153 = vld [vmem:[%s139 + $0x14] sm:$0xf]
      %v154 = vld [vmem:[%s139 + $0x18] sm:$0xf]
      %v155 = vld [vmem:[%s139 + $0x1c] sm:$0xf]
      %v156 = vld [vmem:[%s139 + $0x20] sm:$0xf]
      %v157 = vld [vmem:[%s139 + $0x24] sm:$0xf]
      %v158 = vld [vmem:[%s139 + $0x28] sm:$0xf]
      %v159 = vld [vmem:[%s139 + $0x2c] sm:$0xf]
      %v160 = vld [vmem:[%s139 + $0x30] sm:$0xf]
      %v161 = vld [vmem:[%s139 + $0x34] sm:$0xf]
      %v162 = vld [vmem:[%s139 + $0x38] sm:$0xf]
      %v163 = vld [vmem:[%s139 + $0x3c] sm:$0xf]
      %v164 = vld [vmem:[%s139 + $0x40] sm:$0xf]
      %v165 = vld [vmem:[%s139 + $0x44] sm:$0xf]
      %v166 = vld [vmem:[%s139 + $0x48] sm:$0xf]
      %v167 = vld [vmem:[%s139 + $0x4c] sm:$0xf]
      %v168 = vld [vmem:[%s139 + $0x50] sm:$0xf]
      %v169 = vld [vmem:[%s139 + $0x54] sm:$0xf]
      %v170 = vld [vmem:[%s139 + $0x58] sm:$0xf]
      %v171 = vld [vmem:[%s139 + $0x5c] sm:$0xf]
      %v172 = vld [vmem:[%s139 + $0x60] sm:$0xf]
      %v173 = vld [vmem:[%s139 + $0x64] sm:$0xf]
      %v174 = vld [vmem:[%s139 + $0x68] sm:$0xf]
      %v175 = vld [vmem:[%s139 + $0x6c] sm:$0xf]
      %v176 = vld [vmem:[%s139 + $0x70] sm:$0xf]
      %v177 = vld [vmem:[%s139 + $0x74] sm:$0xf]
      %v178 = vld [vmem:[%s139 + $0x78] sm:$0xf]
      %v179 = vld [vmem:[%s139 + $0x7c] sm:$0xf]
      %v180 = vld [vmem:[%s139 + $0x80] sm:$0xf]
      %v181 = vld [vmem:[%s139 + $0x84] sm:$0xf]
      %v182 = vld [vmem:[%s139 + $0x88] sm:$0xf]
      %v183 = vld [vmem:[%s139 + $0x8c] sm:$0xf]
      %v184 = vld [vmem:[%s139 + $0x90] sm:$0xf]
      %v185 = vld [vmem:[%s139 + $0x94] sm:$0xf]
      %v186 = vld [vmem:[%s139 + $0x98] sm:$0xf]
      %v187 = vld [vmem:[%s139 + $0x9c] sm:$0xf]
      %v188 = vld [vmem:[%s139 + $0xa0] sm:$0xf]
      %v189 = vld [vmem:[%s139 + $0xa4] sm:$0xf]
      %v190 = vld [vmem:[%s139 + $0xa8] sm:$0xf]
      %v191 = vld [vmem:[%s139 + $0xac] sm:$0xf]
      %v192 = vld [vmem:[%s139 + $0xb0] sm:$0xf]
      %v193 = vld [vmem:[%s139 + $0xb4] sm:$0xf]
      %v194 = vld [vmem:[%s139 + $0xb8] sm:$0xf]
      %v195 = vld [vmem:[%s139 + $0xbc] sm:$0xf]
      %v196 = vld [vmem:[%s139 + $0xc0] sm:$0xf]
      %v197 = vld [vmem:[%s139 + $0xc4] sm:$0xf]
      %v198 = vld [vmem:[%s139 + $0xc8] sm:$0xf]
      %v199 = vld [vmem:[%s139 + $0xcc] sm:$0xf]
      %v200 = vld [vmem:[%s139 + $0xd0] sm:$0xf]
      %v201 = vld [vmem:[%s139 + $0xd4] sm:$0xf]
      %v202 = vld [vmem:[%s139 + $0xd8] sm:$0xf]
      %v203 = vld [vmem:[%s139 + $0xdc] sm:$0xf]
      %v204 = vld [vmem:[%s139 + $0xe0] sm:$0xf]
      %v205 = vld [vmem:[%s139 + $0xe4] sm:$0xf]
      %v206 = vld [vmem:[%s139 + $0xe8] sm:$0xf]
      %v207 = vld [vmem:[%s139 + $0xec] sm:$0xf]
      %v208 = vld [vmem:[%s139 + $0xf0] sm:$0xf]
      %v209 = vld [vmem:[%s139 + $0xf4] sm:$0xf]
      %v210 = vld [vmem:[%s139 + $0xf8] sm:$0xf]
      %v211 = vld [vmem:[%s139 + $0xfc] sm:$0xf]
      %v212 = vld [vmem:[%s139 + $0x100] sm:$0xf]
      %v213 = vld [vmem:[%s139 + $0x104] sm:$0xf]
      %v214 = vld [vmem:[%s139 + $0x108] sm:$0xf]
      %v215 = vld [vmem:[%s139 + $0x10c] sm:$0xf]
      %v216 = vld [vmem:[%s139 + $0x110] sm:$0xf]
      %v217 = vld [vmem:[%s139 + $0x114] sm:$0xf]
      %v218 = vld [vmem:[%s139 + $0x118] sm:$0xf]
      %v219 = vld [vmem:[%s139 + $0x11c] sm:$0xf]
      %v220 = vld [vmem:[%s139 + $0x120] sm:$0xf]
      %v221 = vld [vmem:[%s139 + $0x124] sm:$0xf]
      %v222 = vld [vmem:[%s139 + $0x128] sm:$0xf]
      %v223 = vld [vmem:[%s139 + $0x12c] sm:$0xf]
      %v224 = vld [vmem:[%s139 + $0x130] sm:$0xf]
      %v225 = vld [vmem:[%s139 + $0x134] sm:$0xf]
      %v226 = vld [vmem:[%s139 + $0x138] sm:$0xf]
      %v227 = vld [vmem:[%s139 + $0x13c] sm:$0xf]
      %v228 = vld [vmem:[%s139 + $0x140] sm:$0xf]
      %v229 = vld [vmem:[%s139 + $0x144] sm:$0xf]
      %v230 = vld [vmem:[%s139 + $0x148] sm:$0xf]
      %v231 = vld [vmem:[%s139 + $0x14c] sm:$0xf]
      %v232 = vld [vmem:[%s139 + $0x150] sm:$0xf]
      %v233 = vld [vmem:[%s139 + $0x154] sm:$0xf]
      %v234 = vld [vmem:[%s139 + $0x158] sm:$0xf]
      %v235 = vld [vmem:[%s139 + $0x15c] sm:$0xf]
      %v236 = vld [vmem:[%s139 + $0x160] sm:$0xf]
      %v237 = vld [vmem:[%s139 + $0x164] sm:$0xf]
      %v238 = vld [vmem:[%s139 + $0x168] sm:$0xf]
      %v239 = vld [vmem:[%s139 + $0x16c] sm:$0xf]
      %v240 = vld [vmem:[%s139 + $0x170] sm:$0xf]
      %v241 = vld [vmem:[%s139 + $0x174] sm:$0xf]
      %v242 = vld [vmem:[%s139 + $0x178] sm:$0xf]
      %v243 = vld [vmem:[%s139 + $0x17c] sm:$0xf]
      %v244 = vld [vmem:[%s139 + $0x180] sm:$0xf]
      %v245 = vld [vmem:[%s139 + $0x184] sm:$0xf]
      %v246 = vld [vmem:[%s139 + $0x188] sm:$0xf]
      %v247 = vld [vmem:[%s139 + $0x18c] sm:$0xf]
      %v248 = vld [vmem:[%s139 + $0x190] sm:$0xf]
      %v249 = vld [vmem:[%s139 + $0x194] sm:$0xf]
      %v250 = vld [vmem:[%s139 + $0x198] sm:$0xf]
      %v251 = vld [vmem:[%s139 + $0x19c] sm:$0xf]
      %v252 = vld [vmem:[%s139 + $0x1a0] sm:$0xf]
      %v253 = vld [vmem:[%s139 + $0x1a4] sm:$0xf]
      %v254 = vld [vmem:[%s139 + $0x1a8] sm:$0xf]
      %v255 = vld [vmem:[%s139 + $0x1ac] sm:$0xf]
      %v256 = vld [vmem:[%s139 + $0x1b0] sm:$0xf]
      %v257 = vld [vmem:[%s139 + $0x1b4] sm:$0xf]
      %v258 = vld [vmem:[%s139 + $0x1b8] sm:$0xf]
      %v259 = vld [vmem:[%s139 + $0x1bc] sm:$0xf]
      %v260 = vld [vmem:[%s139 + $0x1c0] sm:$0xf]
      %v261 = vld [vmem:[%s139 + $0x1c4] sm:$0xf]
      %v262 = vld [vmem:[%s139 + $0x1c8] sm:$0xf]
      %v263 = vld [vmem:[%s139 + $0x1cc] sm:$0xf]
      %v264 = vld [vmem:[%s139 + $0x1d0] sm:$0xf]
      %v265 = vld [vmem:[%s139 + $0x1d4] sm:$0xf]
      %v266 = vld [vmem:[%s139 + $0x1d8] sm:$0xf]
      %v267 = vld [vmem:[%s139 + $0x1dc] sm:$0xf]
      %v268 = vld [vmem:[%s139 + $0x1e0] sm:$0xf]
      %v269 = vld [vmem:[%s139 + $0x1e4] sm:$0xf]
      %v270 = vld [vmem:[%s139 + $0x1e8] sm:$0xf]
      %v271 = vld [vmem:[%s139 + $0x1ec] sm:$0xf]
      %v272 = vld [vmem:[%s139 + $0x1f0] sm:$0xf]
      %v273 = vld [vmem:[%s139 + $0x1f4] sm:$0xf]
      %v274 = vld [vmem:[%s139 + $0x1f8] sm:$0xf]
      %v275 = vld [vmem:[%s139 + $0x1fc] sm:$0xf]
      %v276 = vld [vmem:[%s1] sm:$0xf]
      %v277 = vld [vmem:[%s1 + $0x4] sm:$0xf]
      %v278 = vld [vmem:[%s1 + $0x8] sm:$0xf]
      %v279 = vld [vmem:[%s1 + $0xc] sm:$0xf]
      %v280 = vld [vmem:[%s1 + $0x10] sm:$0xf]
      %v281 = vld [vmem:[%s1 + $0x14] sm:$0xf]
      %v282 = vld [vmem:[%s1 + $0x18] sm:$0xf]
      %v283 = vld [vmem:[%s1 + $0x1c] sm:$0xf]
      %v284 = vld [vmem:[%s1 + $0x20] sm:$0xf]
      %v285 = vld [vmem:[%s1 + $0x24] sm:$0xf]
      %v286 = vld [vmem:[%s1 + $0x28] sm:$0xf]
      %v287 = vld [vmem:[%s1 + $0x2c] sm:$0xf]
      %v288 = vld [vmem:[%s1 + $0x30] sm:$0xf]
      %v289 = vld [vmem:[%s1 + $0x34] sm:$0xf]
      %v290 = vld [vmem:[%s1 + $0x38] sm:$0xf]
      %v291 = vld [vmem:[%s1 + $0x3c] sm:$0xf]
      %v420 = vunpack.c.l.b16 %v148
      %v421 = vunpack.c.l.b16 %v149
      %v422 = vunpack.c.l.b16 %v150
      %v423 = vunpack.c.l.b16 %v151
      %v424 = vunpack.c.l.b16 %v152
      %v425 = vunpack.c.l.b16 %v153
      %v426 = vunpack.c.l.b16 %v154
      %v427 = vunpack.c.l.b16 %v155
      %v428 = vunpack.c.l.b16 %v156
      %v429 = vunpack.c.l.b16 %v157
      %v430 = vunpack.c.l.b16 %v158
      %v431 = vunpack.c.l.b16 %v159
      %v432 = vunpack.c.l.b16 %v160
      %v433 = vunpack.c.l.b16 %v161
      %v434 = vunpack.c.l.b16 %v162
      %v435 = vunpack.c.l.b16 %v163
      %v436 = vunpack.c.l.b16 %v164
      %v437 = vunpack.c.l.b16 %v165
      %v438 = vunpack.c.l.b16 %v166
      %v439 = vunpack.c.l.b16 %v167
      %v440 = vunpack.c.l.b16 %v168
      %v441 = vunpack.c.l.b16 %v169
      %v442 = vunpack.c.l.b16 %v170
      %v443 = vunpack.c.l.b16 %v171
      %v444 = vunpack.c.l.b16 %v172
      %v445 = vunpack.c.l.b16 %v173
      %v446 = vunpack.c.l.b16 %v174
      %v447 = vunpack.c.l.b16 %v175
      %v448 = vunpack.c.l.b16 %v176
      %v449 = vunpack.c.l.b16 %v177
      %v450 = vunpack.c.l.b16 %v178
      %v451 = vunpack.c.l.b16 %v179
      %v452 = vunpack.c.l.b16 %v180
      %v453 = vunpack.c.l.b16 %v181
      %v454 = vunpack.c.l.b16 %v182
      %v455 = vunpack.c.l.b16 %v183
      %v456 = vunpack.c.l.b16 %v184
      %v457 = vunpack.c.l.b16 %v185
      %v458 = vunpack.c.l.b16 %v186
      %v459 = vunpack.c.l.b16 %v187
      %v460 = vunpack.c.l.b16 %v188
      %v461 = vunpack.c.l.b16 %v189
      %v462 = vunpack.c.l.b16 %v190
      %v463 = vunpack.c.l.b16 %v191
      %v464 = vunpack.c.l.b16 %v192
      %v465 = vunpack.c.l.b16 %v193
      %v466 = vunpack.c.l.b16 %v194
      %v467 = vunpack.c.l.b16 %v195
      %v468 = vunpack.c.l.b16 %v196
      %v469 = vunpack.c.l.b16 %v197
      %v470 = vunpack.c.l.b16 %v198
      %v471 = vunpack.c.l.b16 %v199
      %v472 = vunpack.c.l.b16 %v200
      %v473 = vunpack.c.l.b16 %v201
      %v474 = vunpack.c.l.b16 %v202
      %v475 = vunpack.c.l.b16 %v203
      %v476 = vunpack.c.l.b16 %v204
      %v477 = vunpack.c.l.b16 %v205
      %v478 = vunpack.c.l.b16 %v206
      %v479 = vunpack.c.l.b16 %v207
      %v480 = vunpack.c.l.b16 %v208
      %v481 = vunpack.c.l.b16 %v209
      %v482 = vunpack.c.l.b16 %v210
      %v483 = vunpack.c.l.b16 %v211
      %v484 = vunpack.c.l.b16 %v212
      %v485 = vunpack.c.l.b16 %v213
      %v486 = vunpack.c.l.b16 %v214
      %v487 = vunpack.c.l.b16 %v215
      %v488 = vunpack.c.l.b16 %v216
      %v489 = vunpack.c.l.b16 %v217
      %v490 = vunpack.c.l.b16 %v218
      %v491 = vunpack.c.l.b16 %v219
      %v492 = vunpack.c.l.b16 %v220
      %v493 = vunpack.c.l.b16 %v221
      %v494 = vunpack.c.l.b16 %v222
      %v495 = vunpack.c.l.b16 %v223
      %v496 = vunpack.c.l.b16 %v224
      %v497 = vunpack.c.l.b16 %v225
      %v498 = vunpack.c.l.b16 %v226
      %v499 = vunpack.c.l.b16 %v227
      %v500 = vunpack.c.l.b16 %v228
      %v501 = vunpack.c.l.b16 %v229
      %v502 = vunpack.c.l.b16 %v230
      %v503 = vunpack.c.l.b16 %v231
      %v504 = vunpack.c.l.b16 %v232
      %v505 = vunpack.c.l.b16 %v233
      %v506 = vunpack.c.l.b16 %v234
      %v507 = vunpack.c.l.b16 %v235
      %v508 = vunpack.c.l.b16 %v236
      %v509 = vunpack.c.l.b16 %v237
      %v510 = vunpack.c.l.b16 %v238
      %v511 = vunpack.c.l.b16 %v239
      %v512 = vunpack.c.l.b16 %v240
      %v513 = vunpack.c.l.b16 %v241
      %v514 = vunpack.c.l.b16 %v242
      %v515 = vunpack.c.l.b16 %v243
      %v516 = vunpack.c.l.b16 %v244
      %v517 = vunpack.c.l.b16 %v245
      %v518 = vunpack.c.l.b16 %v246
      %v519 = vunpack.c.l.b16 %v247
      %v520 = vunpack.c.l.b16 %v248
      %v521 = vunpack.c.l.b16 %v249
      %v522 = vunpack.c.l.b16 %v250
      %v523 = vunpack.c.l.b16 %v251
      %v524 = vunpack.c.l.b16 %v252
      %v525 = vunpack.c.l.b16 %v253
      %v526 = vunpack.c.l.b16 %v254
      %v527 = vunpack.c.l.b16 %v255
      %v528 = vunpack.c.l.b16 %v256
      %v529 = vunpack.c.l.b16 %v257
      %v530 = vunpack.c.l.b16 %v258
      %v531 = vunpack.c.l.b16 %v259
      %v532 = vunpack.c.l.b16 %v260
      %v533 = vunpack.c.l.b16 %v261
      %v534 = vunpack.c.l.b16 %v262
      %v535 = vunpack.c.l.b16 %v263
      %v536 = vunpack.c.l.b16 %v264
      %v537 = vunpack.c.l.b16 %v265
      %v538 = vunpack.c.l.b16 %v266
      %v539 = vunpack.c.l.b16 %v267
      %v540 = vunpack.c.l.b16 %v268
      %v541 = vunpack.c.l.b16 %v269
      %v542 = vunpack.c.l.b16 %v270
      %v543 = vunpack.c.l.b16 %v271
      %v544 = vunpack.c.l.b16 %v272
      %v545 = vunpack.c.l.b16 %v273
      %v546 = vunpack.c.l.b16 %v274
      %v547 = vunpack.c.l.b16 %v275
      %v548 = vpack.c.b16 %v421, %v420
      %v549 = vpack.c.b16 %v423, %v422
      %v550 = vpack.c.b16 %v425, %v424
      %v551 = vpack.c.b16 %v427, %v426
      %v552 = vpack.c.b16 %v429, %v428
      %v553 = vpack.c.b16 %v431, %v430
      %v554 = vpack.c.b16 %v433, %v432
      %v555 = vpack.c.b16 %v435, %v434
      %v556 = vpack.c.b16 %v437, %v436
      %v557 = vpack.c.b16 %v439, %v438
      %v558 = vpack.c.b16 %v441, %v440
      %v559 = vpack.c.b16 %v443, %v442
      %v560 = vpack.c.b16 %v445, %v444
      %v561 = vpack.c.b16 %v447, %v446
      %v562 = vpack.c.b16 %v449, %v448
      %v563 = vpack.c.b16 %v451, %v450
      %v564 = vpack.c.b16 %v453, %v452
      %v565 = vpack.c.b16 %v455, %v454
      %v566 = vpack.c.b16 %v457, %v456
      %v567 = vpack.c.b16 %v459, %v458
      %v568 = vpack.c.b16 %v461, %v460
      %v569 = vpack.c.b16 %v463, %v462
      %v570 = vpack.c.b16 %v465, %v464
      %v571 = vpack.c.b16 %v467, %v466
      %v572 = vpack.c.b16 %v469, %v468
      %v573 = vpack.c.b16 %v471, %v470
      %v574 = vpack.c.b16 %v473, %v472
      %v575 = vpack.c.b16 %v475, %v474
      %v576 = vpack.c.b16 %v477, %v476
      %v577 = vpack.c.b16 %v479, %v478
      %v578 = vpack.c.b16 %v481, %v480
      %v579 = vpack.c.b16 %v483, %v482
      %v580 = vpack.c.b16 %v485, %v484
      %v581 = vpack.c.b16 %v487, %v486
      %v582 = vpack.c.b16 %v489, %v488
      %v583 = vpack.c.b16 %v491, %v490
      %v584 = vpack.c.b16 %v493, %v492
      %v585 = vpack.c.b16 %v495, %v494
      %v586 = vpack.c.b16 %v497, %v496
      %v587 = vpack.c.b16 %v499, %v498
      %v588 = vpack.c.b16 %v501, %v500
      %v589 = vpack.c.b16 %v503, %v502
      %v590 = vpack.c.b16 %v505, %v504
      %v591 = vpack.c.b16 %v507, %v506
      %v592 = vpack.c.b16 %v509, %v508
      %v593 = vpack.c.b16 %v511, %v510
      %v594 = vpack.c.b16 %v513, %v512
      %v595 = vpack.c.b16 %v515, %v514
      %v596 = vpack.c.b16 %v517, %v516
      %v597 = vpack.c.b16 %v519, %v518
      %v598 = vpack.c.b16 %v521, %v520
      %v599 = vpack.c.b16 %v523, %v522
      %v600 = vpack.c.b16 %v525, %v524
      %v601 = vpack.c.b16 %v527, %v526
      %v602 = vpack.c.b16 %v529, %v528
      %v603 = vpack.c.b16 %v531, %v530
      %v604 = vpack.c.b16 %v533, %v532
      %v605 = vpack.c.b16 %v535, %v534
      %v606 = vpack.c.b16 %v537, %v536
      %v607 = vpack.c.b16 %v539, %v538
      %v608 = vpack.c.b16 %v541, %v540
      %v609 = vpack.c.b16 %v543, %v542
      %v610 = vpack.c.b16 %v545, %v544
      %v611 = vpack.c.b16 %v547, %v546
      %v692 = vunpack.c.l.b16 %v276
      %v693 = vunpack.c.l.b16 %v277
      %v694 = vunpack.c.l.b16 %v278
      %v695 = vunpack.c.l.b16 %v279
      %v696 = vunpack.c.l.b16 %v280
      %v697 = vunpack.c.l.b16 %v281
      %v698 = vunpack.c.l.b16 %v282
      %v699 = vunpack.c.l.b16 %v283
      %v700 = vunpack.c.l.b16 %v284
      %v701 = vunpack.c.l.b16 %v285
      %v702 = vunpack.c.l.b16 %v286
      %v703 = vunpack.c.l.b16 %v287
      %v704 = vunpack.c.l.b16 %v288
      %v705 = vunpack.c.l.b16 %v289
      %v706 = vunpack.c.l.b16 %v290
      %v707 = vunpack.c.l.b16 %v291
      %v708 = vpack.c.b16 %v693, %v692
      %v709 = vpack.c.b16 %v695, %v694
      %v710 = vpack.c.b16 %v697, %v696
      %v711 = vpack.c.b16 %v699, %v698
      %v712 = vpack.c.b16 %v701, %v700
      %v713 = vpack.c.b16 %v703, %v702
      %v714 = vpack.c.b16 %v705, %v704
      %v715 = vpack.c.b16 %v707, %v706
      %724 = vmatprep.subr.bf16.mxu0 0
      %725 = vmatpush1.bf16.msra.mxu0 %v715
      %726 = vmatprep.subr.bf16.mxu0 0
      %727 = vmatpush1.bf16.msra.mxu0 %v714
      %728 = vmatprep.subr.bf16.mxu0 0
      %729 = vmatpush1.bf16.msra.mxu0 %v713
      %730 = vmatprep.subr.bf16.mxu0 0
      %731 = vmatpush1.bf16.msra.mxu0 %v712
      %732 = vmatprep.subr.bf16.mxu0 0
      %733 = vmatpush1.bf16.msra.mxu0 %v711
      %734 = vmatprep.subr.bf16.mxu0 0
      %735 = vmatpush1.bf16.msra.mxu0 %v710
      %736 = vmatprep.subr.bf16.mxu0 0
      %737 = vmatpush1.bf16.msra.mxu0 %v709
      %738 = vmatprep.subr.bf16.mxu0 0
      %739 = vmatpush1.bf16.msra.mxu0 %v708
      %740 = vmatprep.subr.bf16.mxu0 0
      %741 = vmatpush2.bf16.msra.mxu0 0
      %742 = vmatprep.subr.bf16.mxu0 0
      %743 = vmatpush2.bf16.msra.mxu0 0
      %744 = vmatprep.subr.bf16.mxu0 0
      %745 = vmatpush2.bf16.msra.mxu0 0
      %746 = vmatprep.subr.bf16.mxu0 0
      %747 = vmatpush2.bf16.msra.mxu0 0
      %748 = vmatprep.subr.bf16.mxu0 0
      %749 = vmatpush2.bf16.msra.mxu0 0
      %750 = vmatprep.subr.bf16.mxu0 0
      %751 = vmatpush2.bf16.msra.mxu0 0
      %752 = vmatprep.subr.bf16.mxu0 0
      %753 = vmatpush2.bf16.msra.mxu0 0
      %754 = vmatprep.subr.bf16.mxu0 0
      %755 = vmatpush2.bf16.msra.mxu0 0
      %756 = vmatprep.mubr.bf16.mxu0 0
      %757 = vmatmul.mubr.bf16.gmra.mxu0 %v548
      %v758 = vpop.f32.mrf.mxu0
      %v759 = vadd.f32 0.0, %v758
      %v760 = vpop.f32.mrf.mxu0
      %v761 = vpop.f32.mrf.mxu0
      %v762 = vadd.f32 0.0, %v761
      %v763 = vpop.f32.mrf.mxu0
      %764 = vmatprep.mubr.bf16.mxu0 0
      %765 = vmatmul.mubr.bf16.gmra.mxu0 %v549
      %v766 = vpop.f32.mrf.mxu0
      %v767 = vadd.f32 0.0, %v766
      %v768 = vpop.f32.mrf.mxu0
      %v769 = vpop.f32.mrf.mxu0
      %v770 = vadd.f32 0.0, %v769
      %v771 = vpop.f32.mrf.mxu0
      %772 = vmatprep.mubr.bf16.mxu0 0
      %773 = vmatmul.mubr.bf16.gmra.mxu0 %v550
      %v774 = vpop.f32.mrf.mxu0
      %v775 = vadd.f32 0.0, %v774
      %v776 = vpop.f32.mrf.mxu0
      %v777 = vpop.f32.mrf.mxu0
      %v778 = vadd.f32 0.0, %v777
      %v779 = vpop.f32.mrf.mxu0
      %780 = vmatprep.mubr.bf16.mxu0 0
      %781 = vmatmul.mubr.bf16.gmra.mxu0 %v551
      %v782 = vpop.f32.mrf.mxu0
      %v783 = vadd.f32 0.0, %v782
      %v784 = vpop.f32.mrf.mxu0
      %v785 = vpop.f32.mrf.mxu0
      %v786 = vadd.f32 0.0, %v785
      %v787 = vpop.f32.mrf.mxu0
      %788 = vmatprep.mubr.bf16.mxu0 0
      %789 = vmatmul.mubr.bf16.gmra.mxu0 %v552
      %v790 = vpop.f32.mrf.mxu0
      %v791 = vadd.f32 0.0, %v790
      %v792 = vpop.f32.mrf.mxu0
      %v793 = vpop.f32.mrf.mxu0
      %v794 = vadd.f32 0.0, %v793
      %v795 = vpop.f32.mrf.mxu0
      %796 = vmatprep.mubr.bf16.mxu0 0
      %797 = vmatmul.mubr.bf16.gmra.mxu0 %v553
      %v798 = vpop.f32.mrf.mxu0
      %v799 = vadd.f32 0.0, %v798
      %v800 = vpop.f32.mrf.mxu0
      %v801 = vpop.f32.mrf.mxu0
      %v802 = vadd.f32 0.0, %v801
      %v803 = vpop.f32.mrf.mxu0
      %804 = vmatprep.mubr.bf16.mxu0 0
      %805 = vmatmul.mubr.bf16.gmra.mxu0 %v554
      %v806 = vpop.f32.mrf.mxu0
      %v807 = vadd.f32 0.0, %v806
      %v808 = vpop.f32.mrf.mxu0
      %v809 = vpop.f32.mrf.mxu0
      %v810 = vadd.f32 0.0, %v809
      %v811 = vpop.f32.mrf.mxu0
      %812 = vmatprep.mubr.bf16.mxu0 0
      %813 = vmatmul.mubr.bf16.gmra.mxu0 %v555
      %v814 = vpop.f32.mrf.mxu0
      %v815 = vadd.f32 0.0, %v814
      %v816 = vpop.f32.mrf.mxu0
      %v817 = vpop.f32.mrf.mxu0
      %v818 = vadd.f32 0.0, %v817
      %v819 = vpop.f32.mrf.mxu0
      %820 = vmatprep.mubr.bf16.mxu0 0
      %821 = vmatmul.mubr.bf16.gmra.mxu0 %v556
      %v822 = vpop.f32.mrf.mxu0
      %v823 = vadd.f32 0.0, %v822
      %v824 = vpop.f32.mrf.mxu0
      %v825 = vpop.f32.mrf.mxu0
      %v826 = vadd.f32 0.0, %v825
      %v827 = vpop.f32.mrf.mxu0
      %828 = vmatprep.mubr.bf16.mxu0 0
      %829 = vmatmul.mubr.bf16.gmra.mxu0 %v557
      %v830 = vpop.f32.mrf.mxu0
      %v831 = vadd.f32 0.0, %v830
      %v832 = vpop.f32.mrf.mxu0
      %v833 = vpop.f32.mrf.mxu0
      %v834 = vadd.f32 0.0, %v833
      %v835 = vpop.f32.mrf.mxu0
      %836 = vmatprep.mubr.bf16.mxu0 0
      %837 = vmatmul.mubr.bf16.gmra.mxu0 %v558
      %v838 = vpop.f32.mrf.mxu0
      %v839 = vadd.f32 0.0, %v838
      %v840 = vpop.f32.mrf.mxu0
      %v841 = vpop.f32.mrf.mxu0
      %v842 = vadd.f32 0.0, %v841
      %v843 = vpop.f32.mrf.mxu0
      %844 = vmatprep.mubr.bf16.mxu0 0
      %845 = vmatmul.mubr.bf16.gmra.mxu0 %v559
      %v846 = vpop.f32.mrf.mxu0
      %v847 = vadd.f32 0.0, %v846
      %v848 = vpop.f32.mrf.mxu0
      %v849 = vpop.f32.mrf.mxu0
      %v850 = vadd.f32 0.0, %v849
      %v851 = vpop.f32.mrf.mxu0
      %852 = vmatprep.mubr.bf16.mxu0 0
      %853 = vmatmul.mubr.bf16.gmra.mxu0 %v560
      %v854 = vpop.f32.mrf.mxu0
      %v855 = vadd.f32 0.0, %v854
      %v856 = vpop.f32.mrf.mxu0
      %v857 = vpop.f32.mrf.mxu0
      %v858 = vadd.f32 0.0, %v857
      %v859 = vpop.f32.mrf.mxu0
      %860 = vmatprep.mubr.bf16.mxu0 0
      %861 = vmatmul.mubr.bf16.gmra.mxu0 %v561
      %v862 = vpop.f32.mrf.mxu0
      %v863 = vadd.f32 0.0, %v862
      %v864 = vpop.f32.mrf.mxu0
      %v865 = vpop.f32.mrf.mxu0
      %v866 = vadd.f32 0.0, %v865
      %v867 = vpop.f32.mrf.mxu0
      %868 = vmatprep.mubr.bf16.mxu0 0
      %869 = vmatmul.mubr.bf16.gmra.mxu0 %v562
      %v870 = vpop.f32.mrf.mxu0
      %v871 = vadd.f32 0.0, %v870
      %v872 = vpop.f32.mrf.mxu0
      %v873 = vpop.f32.mrf.mxu0
      %v874 = vadd.f32 0.0, %v873
      %v875 = vpop.f32.mrf.mxu0
      %876 = vmatprep.mubr.bf16.mxu0 0
      %877 = vmatmul.mubr.bf16.gmra.mxu0 %v563
      %v878 = vpop.f32.mrf.mxu0
      %v879 = vadd.f32 0.0, %v878
      %v880 = vpop.f32.mrf.mxu0
      %v881 = vpop.f32.mrf.mxu0
      %v882 = vadd.f32 0.0, %v881
      %v883 = vpop.f32.mrf.mxu0
      %884 = vmatprep.mubr.bf16.mxu0 0
      %885 = vmatmul.mubr.bf16.gmra.mxu0 %v564
      %v886 = vpop.f32.mrf.mxu0
      %v887 = vadd.f32 0.0, %v886
      %v888 = vpop.f32.mrf.mxu0
      %v889 = vpop.f32.mrf.mxu0
      %v890 = vadd.f32 0.0, %v889
      %v891 = vpop.f32.mrf.mxu0
      %892 = vmatprep.mubr.bf16.mxu0 0
      %893 = vmatmul.mubr.bf16.gmra.mxu0 %v565
      %v894 = vpop.f32.mrf.mxu0
      %v895 = vadd.f32 0.0, %v894
      %v896 = vpop.f32.mrf.mxu0
      %v897 = vpop.f32.mrf.mxu0
      %v898 = vadd.f32 0.0, %v897
      %v899 = vpop.f32.mrf.mxu0
      %900 = vmatprep.mubr.bf16.mxu0 0
      %901 = vmatmul.mubr.bf16.gmra.mxu0 %v566
      %v902 = vpop.f32.mrf.mxu0
      %v903 = vadd.f32 0.0, %v902
      %v904 = vpop.f32.mrf.mxu0
      %v905 = vpop.f32.mrf.mxu0
      %v906 = vadd.f32 0.0, %v905
      %v907 = vpop.f32.mrf.mxu0
      %908 = vmatprep.mubr.bf16.mxu0 0
      %909 = vmatmul.mubr.bf16.gmra.mxu0 %v567
      %v910 = vpop.f32.mrf.mxu0
      %v911 = vadd.f32 0.0, %v910
      %v912 = vpop.f32.mrf.mxu0
      %v913 = vpop.f32.mrf.mxu0
      %v914 = vadd.f32 0.0, %v913
      %v915 = vpop.f32.mrf.mxu0
      %916 = vmatprep.mubr.bf16.mxu0 0
      %917 = vmatmul.mubr.bf16.gmra.mxu0 %v568
      %v918 = vpop.f32.mrf.mxu0
      %v919 = vadd.f32 0.0, %v918
      %v920 = vpop.f32.mrf.mxu0
      %v921 = vpop.f32.mrf.mxu0
      %v922 = vadd.f32 0.0, %v921
      %v923 = vpop.f32.mrf.mxu0
      %924 = vmatprep.mubr.bf16.mxu0 0
      %925 = vmatmul.mubr.bf16.gmra.mxu0 %v569
      %v926 = vpop.f32.mrf.mxu0
      %v927 = vadd.f32 0.0, %v926
      %v928 = vpop.f32.mrf.mxu0
      %v929 = vpop.f32.mrf.mxu0
      %v930 = vadd.f32 0.0, %v929
      %v931 = vpop.f32.mrf.mxu0
      %932 = vmatprep.mubr.bf16.mxu0 0
      %933 = vmatmul.mubr.bf16.gmra.mxu0 %v570
      %v934 = vpop.f32.mrf.mxu0
      %v935 = vadd.f32 0.0, %v934
      %v936 = vpop.f32.mrf.mxu0
      %v937 = vpop.f32.mrf.mxu0
      %v938 = vadd.f32 0.0, %v937
      %v939 = vpop.f32.mrf.mxu0
      %940 = vmatprep.mubr.bf16.mxu0 0
      %941 = vmatmul.mubr.bf16.gmra.mxu0 %v571
      %v942 = vpop.f32.mrf.mxu0
      %v943 = vadd.f32 0.0, %v942
      %v944 = vpop.f32.mrf.mxu0
      %v945 = vpop.f32.mrf.mxu0
      %v946 = vadd.f32 0.0, %v945
      %v947 = vpop.f32.mrf.mxu0
      %948 = vmatprep.mubr.bf16.mxu0 0
      %949 = vmatmul.mubr.bf16.gmra.mxu0 %v572
      %v950 = vpop.f32.mrf.mxu0
      %v951 = vadd.f32 0.0, %v950
      %v952 = vpop.f32.mrf.mxu0
      %v953 = vpop.f32.mrf.mxu0
      %v954 = vadd.f32 0.0, %v953
      %v955 = vpop.f32.mrf.mxu0
      %956 = vmatprep.mubr.bf16.mxu0 0
      %957 = vmatmul.mubr.bf16.gmra.mxu0 %v573
      %v958 = vpop.f32.mrf.mxu0
      %v959 = vadd.f32 0.0, %v958
      %v960 = vpop.f32.mrf.mxu0
      %v961 = vpop.f32.mrf.mxu0
      %v962 = vadd.f32 0.0, %v961
      %v963 = vpop.f32.mrf.mxu0
      %964 = vmatprep.mubr.bf16.mxu0 0
      %965 = vmatmul.mubr.bf16.gmra.mxu0 %v574
      %v966 = vpop.f32.mrf.mxu0
      %v967 = vadd.f32 0.0, %v966
      %v968 = vpop.f32.mrf.mxu0
      %v969 = vpop.f32.mrf.mxu0
      %v970 = vadd.f32 0.0, %v969
      %v971 = vpop.f32.mrf.mxu0
      %972 = vmatprep.mubr.bf16.mxu0 0
      %973 = vmatmul.mubr.bf16.gmra.mxu0 %v575
      %v974 = vpop.f32.mrf.mxu0
      %v975 = vadd.f32 0.0, %v974
      %v976 = vpop.f32.mrf.mxu0
      %v977 = vpop.f32.mrf.mxu0
      %v978 = vadd.f32 0.0, %v977
      %v979 = vpop.f32.mrf.mxu0
      %980 = vmatprep.mubr.bf16.mxu0 0
      %981 = vmatmul.mubr.bf16.gmra.mxu0 %v576
      %v982 = vpop.f32.mrf.mxu0
      %v983 = vadd.f32 0.0, %v982
      %v984 = vpop.f32.mrf.mxu0
      %v985 = vpop.f32.mrf.mxu0
      %v986 = vadd.f32 0.0, %v985
      %v987 = vpop.f32.mrf.mxu0
      %988 = vmatprep.mubr.bf16.mxu0 0
      %989 = vmatmul.mubr.bf16.gmra.mxu0 %v577
      %v990 = vpop.f32.mrf.mxu0
      %v991 = vadd.f32 0.0, %v990
      %v992 = vpop.f32.mrf.mxu0
      %v993 = vpop.f32.mrf.mxu0
      %v994 = vadd.f32 0.0, %v993
      %v995 = vpop.f32.mrf.mxu0
      %996 = vmatprep.mubr.bf16.mxu0 0
      %997 = vmatmul.mubr.bf16.gmra.mxu0 %v578
      %v998 = vpop.f32.mrf.mxu0
      %v999 = vadd.f32 0.0, %v998
      %v1000 = vpop.f32.mrf.mxu0
      %v1001 = vpop.f32.mrf.mxu0
      %v1002 = vadd.f32 0.0, %v1001
      %v1003 = vpop.f32.mrf.mxu0
      %1004 = vmatprep.mubr.bf16.mxu0 0
      %1005 = vmatmul.mubr.bf16.gmra.mxu0 %v579
      %v1006 = vpop.f32.mrf.mxu0
      %v1007 = vadd.f32 0.0, %v1006
      %v1008 = vpop.f32.mrf.mxu0
      %v1009 = vpop.f32.mrf.mxu0
      %v1010 = vadd.f32 0.0, %v1009
      %v1011 = vpop.f32.mrf.mxu0
      %1012 = vmatprep.mubr.bf16.mxu0 0
      %1013 = vmatmul.mubr.bf16.gmra.mxu0 %v580
      %v1014 = vpop.f32.mrf.mxu0
      %v1015 = vadd.f32 0.0, %v1014
      %v1016 = vpop.f32.mrf.mxu0
      %v1017 = vpop.f32.mrf.mxu0
      %v1018 = vadd.f32 0.0, %v1017
      %v1019 = vpop.f32.mrf.mxu0
      %1020 = vmatprep.mubr.bf16.mxu0 0
      %1021 = vmatmul.mubr.bf16.gmra.mxu0 %v581
      %v1022 = vpop.f32.mrf.mxu0
      %v1023 = vadd.f32 0.0, %v1022
      %v1024 = vpop.f32.mrf.mxu0
      %v1025 = vpop.f32.mrf.mxu0
      %v1026 = vadd.f32 0.0, %v1025
      %v1027 = vpop.f32.mrf.mxu0
      %1028 = vmatprep.mubr.bf16.mxu0 0
      %1029 = vmatmul.mubr.bf16.gmra.mxu0 %v582
      %v1030 = vpop.f32.mrf.mxu0
      %v1031 = vadd.f32 0.0, %v1030
      %v1032 = vpop.f32.mrf.mxu0
      %v1033 = vpop.f32.mrf.mxu0
      %v1034 = vadd.f32 0.0, %v1033
      %v1035 = vpop.f32.mrf.mxu0
      %1036 = vmatprep.mubr.bf16.mxu0 0
      %1037 = vmatmul.mubr.bf16.gmra.mxu0 %v583
      %v1038 = vpop.f32.mrf.mxu0
      %v1039 = vadd.f32 0.0, %v1038
      %v1040 = vpop.f32.mrf.mxu0
      %v1041 = vpop.f32.mrf.mxu0
      %v1042 = vadd.f32 0.0, %v1041
      %v1043 = vpop.f32.mrf.mxu0
      %1044 = vmatprep.mubr.bf16.mxu0 0
      %1045 = vmatmul.mubr.bf16.gmra.mxu0 %v584
      %v1046 = vpop.f32.mrf.mxu0
      %v1047 = vadd.f32 0.0, %v1046
      %v1048 = vpop.f32.mrf.mxu0
      %v1049 = vpop.f32.mrf.mxu0
      %v1050 = vadd.f32 0.0, %v1049
      %v1051 = vpop.f32.mrf.mxu0
      %1052 = vmatprep.mubr.bf16.mxu0 0
      %1053 = vmatmul.mubr.bf16.gmra.mxu0 %v585
      %v1054 = vpop.f32.mrf.mxu0
      %v1055 = vadd.f32 0.0, %v1054
      %v1056 = vpop.f32.mrf.mxu0
      %v1057 = vpop.f32.mrf.mxu0
      %v1058 = vadd.f32 0.0, %v1057
      %v1059 = vpop.f32.mrf.mxu0
      %1060 = vmatprep.mubr.bf16.mxu0 0
      %1061 = vmatmul.mubr.bf16.gmra.mxu0 %v586
      %v1062 = vpop.f32.mrf.mxu0
      %v1063 = vadd.f32 0.0, %v1062
      %v1064 = vpop.f32.mrf.mxu0
      %v1065 = vpop.f32.mrf.mxu0
      %v1066 = vadd.f32 0.0, %v1065
      %v1067 = vpop.f32.mrf.mxu0
      %1068 = vmatprep.mubr.bf16.mxu0 0
      %1069 = vmatmul.mubr.bf16.gmra.mxu0 %v587
      %v1070 = vpop.f32.mrf.mxu0
      %v1071 = vadd.f32 0.0, %v1070
      %v1072 = vpop.f32.mrf.mxu0
      %v1073 = vpop.f32.mrf.mxu0
      %v1074 = vadd.f32 0.0, %v1073
      %v1075 = vpop.f32.mrf.mxu0
      %1076 = vmatprep.mubr.bf16.mxu0 0
      %1077 = vmatmul.mubr.bf16.gmra.mxu0 %v588
      %v1078 = vpop.f32.mrf.mxu0
      %v1079 = vadd.f32 0.0, %v1078
      %v1080 = vpop.f32.mrf.mxu0
      %v1081 = vpop.f32.mrf.mxu0
      %v1082 = vadd.f32 0.0, %v1081
      %v1083 = vpop.f32.mrf.mxu0
      %1084 = vmatprep.mubr.bf16.mxu0 0
      %1085 = vmatmul.mubr.bf16.gmra.mxu0 %v589
      %v1086 = vpop.f32.mrf.mxu0
      %v1087 = vadd.f32 0.0, %v1086
      %v1088 = vpop.f32.mrf.mxu0
      %v1089 = vpop.f32.mrf.mxu0
      %v1090 = vadd.f32 0.0, %v1089
      %v1091 = vpop.f32.mrf.mxu0
      %1092 = vmatprep.mubr.bf16.mxu0 0
      %1093 = vmatmul.mubr.bf16.gmra.mxu0 %v590
      %v1094 = vpop.f32.mrf.mxu0
      %v1095 = vadd.f32 0.0, %v1094
      %v1096 = vpop.f32.mrf.mxu0
      %v1097 = vpop.f32.mrf.mxu0
      %v1098 = vadd.f32 0.0, %v1097
      %v1099 = vpop.f32.mrf.mxu0
      %1100 = vmatprep.mubr.bf16.mxu0 0
      %1101 = vmatmul.mubr.bf16.gmra.mxu0 %v591
      %v1102 = vpop.f32.mrf.mxu0
      %v1103 = vadd.f32 0.0, %v1102
      %v1104 = vpop.f32.mrf.mxu0
      %v1105 = vpop.f32.mrf.mxu0
      %v1106 = vadd.f32 0.0, %v1105
      %v1107 = vpop.f32.mrf.mxu0
      %1108 = vmatprep.mubr.bf16.mxu0 0
      %1109 = vmatmul.mubr.bf16.gmra.mxu0 %v592
      %v1110 = vpop.f32.mrf.mxu0
      %v1111 = vadd.f32 0.0, %v1110
      %v1112 = vpop.f32.mrf.mxu0
      %v1113 = vpop.f32.mrf.mxu0
      %v1114 = vadd.f32 0.0, %v1113
      %v1115 = vpop.f32.mrf.mxu0
      %1116 = vmatprep.mubr.bf16.mxu0 0
      %1117 = vmatmul.mubr.bf16.gmra.mxu0 %v593
      %v1118 = vpop.f32.mrf.mxu0
      %v1119 = vadd.f32 0.0, %v1118
      %v1120 = vpop.f32.mrf.mxu0
      %v1121 = vpop.f32.mrf.mxu0
      %v1122 = vadd.f32 0.0, %v1121
      %v1123 = vpop.f32.mrf.mxu0
      %1124 = vmatprep.mubr.bf16.mxu0 0
      %1125 = vmatmul.mubr.bf16.gmra.mxu0 %v594
      %v1126 = vpop.f32.mrf.mxu0
      %v1127 = vadd.f32 0.0, %v1126
      %v1128 = vpop.f32.mrf.mxu0
      %v1129 = vpop.f32.mrf.mxu0
      %v1130 = vadd.f32 0.0, %v1129
      %v1131 = vpop.f32.mrf.mxu0
      %1132 = vmatprep.mubr.bf16.mxu0 0
      %1133 = vmatmul.mubr.bf16.gmra.mxu0 %v595
      %v1134 = vpop.f32.mrf.mxu0
      %v1135 = vadd.f32 0.0, %v1134
      %v1136 = vpop.f32.mrf.mxu0
      %v1137 = vpop.f32.mrf.mxu0
      %v1138 = vadd.f32 0.0, %v1137
      %v1139 = vpop.f32.mrf.mxu0
      %1140 = vmatprep.mubr.bf16.mxu0 0
      %1141 = vmatmul.mubr.bf16.gmra.mxu0 %v596
      %v1142 = vpop.f32.mrf.mxu0
      %v1143 = vadd.f32 0.0, %v1142
      %v1144 = vpop.f32.mrf.mxu0
      %v1145 = vpop.f32.mrf.mxu0
      %v1146 = vadd.f32 0.0, %v1145
      %v1147 = vpop.f32.mrf.mxu0
      %1148 = vmatprep.mubr.bf16.mxu0 0
      %1149 = vmatmul.mubr.bf16.gmra.mxu0 %v597
      %v1150 = vpop.f32.mrf.mxu0
      %v1151 = vadd.f32 0.0, %v1150
      %v1152 = vpop.f32.mrf.mxu0
      %v1153 = vpop.f32.mrf.mxu0
      %v1154 = vadd.f32 0.0, %v1153
      %v1155 = vpop.f32.mrf.mxu0
      %1156 = vmatprep.mubr.bf16.mxu0 0
      %1157 = vmatmul.mubr.bf16.gmra.mxu0 %v598
      %v1158 = vpop.f32.mrf.mxu0
      %v1159 = vadd.f32 0.0, %v1158
      %v1160 = vpop.f32.mrf.mxu0
      %v1161 = vpop.f32.mrf.mxu0
      %v1162 = vadd.f32 0.0, %v1161
      %v1163 = vpop.f32.mrf.mxu0
      %1164 = vmatprep.mubr.bf16.mxu0 0
      %1165 = vmatmul.mubr.bf16.gmra.mxu0 %v599
      %v1166 = vpop.f32.mrf.mxu0
      %v1167 = vadd.f32 0.0, %v1166
      %v1168 = vpop.f32.mrf.mxu0
      %v1169 = vpop.f32.mrf.mxu0
      %v1170 = vadd.f32 0.0, %v1169
      %v1171 = vpop.f32.mrf.mxu0
      %1172 = vmatprep.mubr.bf16.mxu0 0
      %1173 = vmatmul.mubr.bf16.gmra.mxu0 %v600
      %v1174 = vpop.f32.mrf.mxu0
      %v1175 = vadd.f32 0.0, %v1174
      %v1176 = vpop.f32.mrf.mxu0
      %v1177 = vpop.f32.mrf.mxu0
      %v1178 = vadd.f32 0.0, %v1177
      %v1179 = vpop.f32.mrf.mxu0
      %1180 = vmatprep.mubr.bf16.mxu0 0
      %1181 = vmatmul.mubr.bf16.gmra.mxu0 %v601
      %v1182 = vpop.f32.mrf.mxu0
      %v1183 = vadd.f32 0.0, %v1182
      %v1184 = vpop.f32.mrf.mxu0
      %v1185 = vpop.f32.mrf.mxu0
      %v1186 = vadd.f32 0.0, %v1185
      %v1187 = vpop.f32.mrf.mxu0
      %1188 = vmatprep.mubr.bf16.mxu0 0
      %1189 = vmatmul.mubr.bf16.gmra.mxu0 %v602
      %v1190 = vpop.f32.mrf.mxu0
      %v1191 = vadd.f32 0.0, %v1190
      %v1192 = vpop.f32.mrf.mxu0
      %v1193 = vpop.f32.mrf.mxu0
      %v1194 = vadd.f32 0.0, %v1193
      %v1195 = vpop.f32.mrf.mxu0
      %1196 = vmatprep.mubr.bf16.mxu0 0
      %1197 = vmatmul.mubr.bf16.gmra.mxu0 %v603
      %v1198 = vpop.f32.mrf.mxu0
      %v1199 = vadd.f32 0.0, %v1198
      %v1200 = vpop.f32.mrf.mxu0
      %v1201 = vpop.f32.mrf.mxu0
      %v1202 = vadd.f32 0.0, %v1201
      %v1203 = vpop.f32.mrf.mxu0
      %1204 = vmatprep.mubr.bf16.mxu0 0
      %1205 = vmatmul.mubr.bf16.gmra.mxu0 %v604
      %v1206 = vpop.f32.mrf.mxu0
      %v1207 = vadd.f32 0.0, %v1206
      %v1208 = vpop.f32.mrf.mxu0
      %v1209 = vpop.f32.mrf.mxu0
      %v1210 = vadd.f32 0.0, %v1209
      %v1211 = vpop.f32.mrf.mxu0
      %1212 = vmatprep.mubr.bf16.mxu0 0
      %1213 = vmatmul.mubr.bf16.gmra.mxu0 %v605
      %v1214 = vpop.f32.mrf.mxu0
      %v1215 = vadd.f32 0.0, %v1214
      %v1216 = vpop.f32.mrf.mxu0
      %v1217 = vpop.f32.mrf.mxu0
      %v1218 = vadd.f32 0.0, %v1217
      %v1219 = vpop.f32.mrf.mxu0
      %1220 = vmatprep.mubr.bf16.mxu0 0
      %1221 = vmatmul.mubr.bf16.gmra.mxu0 %v606
      %v1222 = vpop.f32.mrf.mxu0
      %v1223 = vadd.f32 0.0, %v1222
      %v1224 = vpop.f32.mrf.mxu0
      %v1225 = vpop.f32.mrf.mxu0
      %v1226 = vadd.f32 0.0, %v1225
      %v1227 = vpop.f32.mrf.mxu0
      %1228 = vmatprep.mubr.bf16.mxu0 0
      %1229 = vmatmul.mubr.bf16.gmra.mxu0 %v607
      %v1230 = vpop.f32.mrf.mxu0
      %v1231 = vadd.f32 0.0, %v1230
      %v1232 = vpop.f32.mrf.mxu0
      %v1233 = vpop.f32.mrf.mxu0
      %v1234 = vadd.f32 0.0, %v1233
      %v1235 = vpop.f32.mrf.mxu0
      %1236 = vmatprep.mubr.bf16.mxu0 0
      %1237 = vmatmul.mubr.bf16.gmra.mxu0 %v608
      %v1238 = vpop.f32.mrf.mxu0
      %v1239 = vadd.f32 0.0, %v1238
      %v1240 = vpop.f32.mrf.mxu0
      %v1241 = vpop.f32.mrf.mxu0
      %v1242 = vadd.f32 0.0, %v1241
      %v1243 = vpop.f32.mrf.mxu0
      %1244 = vmatprep.mubr.bf16.mxu0 0
      %1245 = vmatmul.mubr.bf16.gmra.mxu0 %v609
      %v1246 = vpop.f32.mrf.mxu0
      %v1247 = vadd.f32 0.0, %v1246
      %v1248 = vpop.f32.mrf.mxu0
      %v1249 = vpop.f32.mrf.mxu0
      %v1250 = vadd.f32 0.0, %v1249
      %v1251 = vpop.f32.mrf.mxu0
      %1252 = vmatprep.mubr.bf16.mxu0 0
      %1253 = vmatmul.mubr.bf16.gmra.mxu0 %v610
      %v1254 = vpop.f32.mrf.mxu0
      %v1255 = vadd.f32 0.0, %v1254
      %v1256 = vpop.f32.mrf.mxu0
      %v1257 = vpop.f32.mrf.mxu0
      %v1258 = vadd.f32 0.0, %v1257
      %v1259 = vpop.f32.mrf.mxu0
      %1260 = vmatprep.mubr.bf16.mxu0 0
      %1261 = vmatmul.mubr.bf16.gmra.mxu0 %v611
      %v1262 = vpop.f32.mrf.mxu0
      %v1263 = vadd.f32 0.0, %v1262
      %v1264 = vpop.f32.mrf.mxu0
      %v1265 = vpop.f32.mrf.mxu0
      %v1266 = vadd.f32 0.0, %v1265
      %v1267 = vpop.f32.mrf.mxu0
      %1268 = vdwg.mxu0
      %vm1269 = vcmp.ge.f32.partialorder %v759, 0.0
      %vm1270 = vcmp.ge.f32.partialorder %v762, 0.0
      %vm1271 = vcmp.ge.f32.partialorder %v767, 0.0
      %vm1272 = vcmp.ge.f32.partialorder %v770, 0.0
      %vm1273 = vcmp.ge.f32.partialorder %v775, 0.0
      %vm1274 = vcmp.ge.f32.partialorder %v778, 0.0
      %vm1275 = vcmp.ge.f32.partialorder %v783, 0.0
      %vm1276 = vcmp.ge.f32.partialorder %v786, 0.0
      %vm1277 = vcmp.ge.f32.partialorder %v791, 0.0
      %vm1278 = vcmp.ge.f32.partialorder %v794, 0.0
      %vm1279 = vcmp.ge.f32.partialorder %v799, 0.0
      %vm1280 = vcmp.ge.f32.partialorder %v802, 0.0
      %vm1281 = vcmp.ge.f32.partialorder %v807, 0.0
      %vm1282 = vcmp.ge.f32.partialorder %v810, 0.0
      %vm1283 = vcmp.ge.f32.partialorder %v815, 0.0
      %vm1284 = vcmp.ge.f32.partialorder %v818, 0.0
      %vm1285 = vcmp.ge.f32.partialorder %v823, 0.0
      %vm1286 = vcmp.ge.f32.partialorder %v826, 0.0
      %vm1287 = vcmp.ge.f32.partialorder %v831, 0.0
      %vm1288 = vcmp.ge.f32.partialorder %v834, 0.0
      %vm1289 = vcmp.ge.f32.partialorder %v839, 0.0
      %vm1290 = vcmp.ge.f32.partialorder %v842, 0.0
      %vm1291 = vcmp.ge.f32.partialorder %v847, 0.0
      %vm1292 = vcmp.ge.f32.partialorder %v850, 0.0
      %vm1293 = vcmp.ge.f32.partialorder %v855, 0.0
      %vm1294 = vcmp.ge.f32.partialorder %v858, 0.0
      %vm1295 = vcmp.ge.f32.partialorder %v863, 0.0
      %vm1296 = vcmp.ge.f32.partialorder %v866, 0.0
      %vm1297 = vcmp.ge.f32.partialorder %v871, 0.0
      %vm1298 = vcmp.ge.f32.partialorder %v874, 0.0
      %vm1299 = vcmp.ge.f32.partialorder %v879, 0.0
      %vm1300 = vcmp.ge.f32.partialorder %v882, 0.0
      %vm1301 = vcmp.ge.f32.partialorder %v887, 0.0
      %vm1302 = vcmp.ge.f32.partialorder %v890, 0.0
      %vm1303 = vcmp.ge.f32.partialorder %v895, 0.0
      %vm1304 = vcmp.ge.f32.partialorder %v898, 0.0
      %vm1305 = vcmp.ge.f32.partialorder %v903, 0.0
      %vm1306 = vcmp.ge.f32.partialorder %v906, 0.0
      %vm1307 = vcmp.ge.f32.partialorder %v911, 0.0
      %vm1308 = vcmp.ge.f32.partialorder %v914, 0.0
      %vm1309 = vcmp.ge.f32.partialorder %v919, 0.0
      %vm1310 = vcmp.ge.f32.partialorder %v922, 0.0
      %vm1311 = vcmp.ge.f32.partialorder %v927, 0.0
      %vm1312 = vcmp.ge.f32.partialorder %v930, 0.0
      %vm1313 = vcmp.ge.f32.partialorder %v935, 0.0
      %vm1314 = vcmp.ge.f32.partialorder %v938, 0.0
      %vm1315 = vcmp.ge.f32.partialorder %v943, 0.0
      %vm1316 = vcmp.ge.f32.partialorder %v946, 0.0
      %vm1317 = vcmp.ge.f32.partialorder %v951, 0.0
      %vm1318 = vcmp.ge.f32.partialorder %v954, 0.0
      %vm1319 = vcmp.ge.f32.partialorder %v959, 0.0
      %vm1320 = vcmp.ge.f32.partialorder %v962, 0.0
      %vm1321 = vcmp.ge.f32.partialorder %v967, 0.0
      %vm1322 = vcmp.ge.f32.partialorder %v970, 0.0
      %vm1323 = vcmp.ge.f32.partialorder %v975, 0.0
      %vm1324 = vcmp.ge.f32.partialorder %v978, 0.0
      %vm1325 = vcmp.ge.f32.partialorder %v983, 0.0
      %vm1326 = vcmp.ge.f32.partialorder %v986, 0.0
      %vm1327 = vcmp.ge.f32.partialorder %v991, 0.0
      %vm1328 = vcmp.ge.f32.partialorder %v994, 0.0
      %vm1329 = vcmp.ge.f32.partialorder %v999, 0.0
      %vm1330 = vcmp.ge.f32.partialorder %v1002, 0.0
      %vm1331 = vcmp.ge.f32.partialorder %v1007, 0.0
      %vm1332 = vcmp.ge.f32.partialorder %v1010, 0.0
      %vm1333 = vcmp.ge.f32.partialorder %v1015, 0.0
      %vm1334 = vcmp.ge.f32.partialorder %v1018, 0.0
      %vm1335 = vcmp.ge.f32.partialorder %v1023, 0.0
      %vm1336 = vcmp.ge.f32.partialorder %v1026, 0.0
      %vm1337 = vcmp.ge.f32.partialorder %v1031, 0.0
      %vm1338 = vcmp.ge.f32.partialorder %v1034, 0.0
      %vm1339 = vcmp.ge.f32.partialorder %v1039, 0.0
      %vm1340 = vcmp.ge.f32.partialorder %v1042, 0.0
      %vm1341 = vcmp.ge.f32.partialorder %v1047, 0.0
      %vm1342 = vcmp.ge.f32.partialorder %v1050, 0.0
      %vm1343 = vcmp.ge.f32.partialorder %v1055, 0.0
      %vm1344 = vcmp.ge.f32.partialorder %v1058, 0.0
      %vm1345 = vcmp.ge.f32.partialorder %v1063, 0.0
      %vm1346 = vcmp.ge.f32.partialorder %v1066, 0.0
      %vm1347 = vcmp.ge.f32.partialorder %v1071, 0.0
      %vm1348 = vcmp.ge.f32.partialorder %v1074, 0.0
      %vm1349 = vcmp.ge.f32.partialorder %v1079, 0.0
      %vm1350 = vcmp.ge.f32.partialorder %v1082, 0.0
      %vm1351 = vcmp.ge.f32.partialorder %v1087, 0.0
      %vm1352 = vcmp.ge.f32.partialorder %v1090, 0.0
      %vm1353 = vcmp.ge.f32.partialorder %v1095, 0.0
      %vm1354 = vcmp.ge.f32.partialorder %v1098, 0.0
      %vm1355 = vcmp.ge.f32.partialorder %v1103, 0.0
      %vm1356 = vcmp.ge.f32.partialorder %v1106, 0.0
      %vm1357 = vcmp.ge.f32.partialorder %v1111, 0.0
      %vm1358 = vcmp.ge.f32.partialorder %v1114, 0.0
      %vm1359 = vcmp.ge.f32.partialorder %v1119, 0.0
      %vm1360 = vcmp.ge.f32.partialorder %v1122, 0.0
      %vm1361 = vcmp.ge.f32.partialorder %v1127, 0.0
      %vm1362 = vcmp.ge.f32.partialorder %v1130, 0.0
      %vm1363 = vcmp.ge.f32.partialorder %v1135, 0.0
      %vm1364 = vcmp.ge.f32.partialorder %v1138, 0.0
      %vm1365 = vcmp.ge.f32.partialorder %v1143, 0.0
      %vm1366 = vcmp.ge.f32.partialorder %v1146, 0.0
      %vm1367 = vcmp.ge.f32.partialorder %v1151, 0.0
      %vm1368 = vcmp.ge.f32.partialorder %v1154, 0.0
      %vm1369 = vcmp.ge.f32.partialorder %v1159, 0.0
      %vm1370 = vcmp.ge.f32.partialorder %v1162, 0.0
      %vm1371 = vcmp.ge.f32.partialorder %v1167, 0.0
      %vm1372 = vcmp.ge.f32.partialorder %v1170, 0.0
      %vm1373 = vcmp.ge.f32.partialorder %v1175, 0.0
      %vm1374 = vcmp.ge.f32.partialorder %v1178, 0.0
      %vm1375 = vcmp.ge.f32.partialorder %v1183, 0.0
      %vm1376 = vcmp.ge.f32.partialorder %v1186, 0.0
      %vm1377 = vcmp.ge.f32.partialorder %v1191, 0.0
      %vm1378 = vcmp.ge.f32.partialorder %v1194, 0.0
      %vm1379 = vcmp.ge.f32.partialorder %v1199, 0.0
      %vm1380 = vcmp.ge.f32.partialorder %v1202, 0.0
      %vm1381 = vcmp.ge.f32.partialorder %v1207, 0.0
      %vm1382 = vcmp.ge.f32.partialorder %v1210, 0.0
      %vm1383 = vcmp.ge.f32.partialorder %v1215, 0.0
      %vm1384 = vcmp.ge.f32.partialorder %v1218, 0.0
      %vm1385 = vcmp.ge.f32.partialorder %v1223, 0.0
      %vm1386 = vcmp.ge.f32.partialorder %v1226, 0.0
      %vm1387 = vcmp.ge.f32.partialorder %v1231, 0.0
      %vm1388 = vcmp.ge.f32.partialorder %v1234, 0.0
      %vm1389 = vcmp.ge.f32.partialorder %v1239, 0.0
      %vm1390 = vcmp.ge.f32.partialorder %v1242, 0.0
      %vm1391 = vcmp.ge.f32.partialorder %v1247, 0.0
      %vm1392 = vcmp.ge.f32.partialorder %v1250, 0.0
      %vm1393 = vcmp.ge.f32.partialorder %v1255, 0.0
      %vm1394 = vcmp.ge.f32.partialorder %v1258, 0.0
      %vm1395 = vcmp.ge.f32.partialorder %v1263, 0.0
      %vm1396 = vcmp.ge.f32.partialorder %v1266, 0.0
      %v1397 = vmul.f32 %v759, 0.2
      %v1398 = vmul.f32 %v762, 0.2
      %v1399 = vmul.f32 %v767, 0.2
      %v1400 = vmul.f32 %v770, 0.2
      %v1401 = vmul.f32 %v775, 0.2
      %v1402 = vmul.f32 %v778, 0.2
      %v1403 = vmul.f32 %v783, 0.2
      %v1404 = vmul.f32 %v786, 0.2
      %v1405 = vmul.f32 %v791, 0.2
      %v1406 = vmul.f32 %v794, 0.2
      %v1407 = vmul.f32 %v799, 0.2
      %v1408 = vmul.f32 %v802, 0.2
      %v1409 = vmul.f32 %v807, 0.2
      %v1410 = vmul.f32 %v810, 0.2
      %v1411 = vmul.f32 %v815, 0.2
      %v1412 = vmul.f32 %v818, 0.2
      %v1413 = vmul.f32 %v823, 0.2
      %v1414 = vmul.f32 %v826, 0.2
      %v1415 = vmul.f32 %v831, 0.2
      %v1416 = vmul.f32 %v834, 0.2
      %v1417 = vmul.f32 %v839, 0.2
      %v1418 = vmul.f32 %v842, 0.2
      %v1419 = vmul.f32 %v847, 0.2
      %v1420 = vmul.f32 %v850, 0.2
      %v1421 = vmul.f32 %v855, 0.2
      %v1422 = vmul.f32 %v858, 0.2
      %v1423 = vmul.f32 %v863, 0.2
      %v1424 = vmul.f32 %v866, 0.2
      %v1425 = vmul.f32 %v871, 0.2
      %v1426 = vmul.f32 %v874, 0.2
      %v1427 = vmul.f32 %v879, 0.2
      %v1428 = vmul.f32 %v882, 0.2
      %v1429 = vmul.f32 %v887, 0.2
      %v1430 = vmul.f32 %v890, 0.2
      %v1431 = vmul.f32 %v895, 0.2
      %v1432 = vmul.f32 %v898, 0.2
      %v1433 = vmul.f32 %v903, 0.2
      %v1434 = vmul.f32 %v906, 0.2
      %v1435 = vmul.f32 %v911, 0.2
      %v1436 = vmul.f32 %v914, 0.2
      %v1437 = vmul.f32 %v919, 0.2
      %v1438 = vmul.f32 %v922, 0.2
      %v1439 = vmul.f32 %v927, 0.2
      %v1440 = vmul.f32 %v930, 0.2
      %v1441 = vmul.f32 %v935, 0.2
      %v1442 = vmul.f32 %v938, 0.2
      %v1443 = vmul.f32 %v943, 0.2
      %v1444 = vmul.f32 %v946, 0.2
      %v1445 = vmul.f32 %v951, 0.2
      %v1446 = vmul.f32 %v954, 0.2
      %v1447 = vmul.f32 %v959, 0.2
      %v1448 = vmul.f32 %v962, 0.2
      %v1449 = vmul.f32 %v967, 0.2
      %v1450 = vmul.f32 %v970, 0.2
      %v1451 = vmul.f32 %v975, 0.2
      %v1452 = vmul.f32 %v978, 0.2
      %v1453 = vmul.f32 %v983, 0.2
      %v1454 = vmul.f32 %v986, 0.2
      %v1455 = vmul.f32 %v991, 0.2
      %v1456 = vmul.f32 %v994, 0.2
      %v1457 = vmul.f32 %v999, 0.2
      %v1458 = vmul.f32 %v1002, 0.2
      %v1459 = vmul.f32 %v1007, 0.2
      %v1460 = vmul.f32 %v1010, 0.2
      %v1461 = vmul.f32 %v1015, 0.2
      %v1462 = vmul.f32 %v1018, 0.2
      %v1463 = vmul.f32 %v1023, 0.2
      %v1464 = vmul.f32 %v1026, 0.2
      %v1465 = vmul.f32 %v1031, 0.2
      %v1466 = vmul.f32 %v1034, 0.2
      %v1467 = vmul.f32 %v1039, 0.2
      %v1468 = vmul.f32 %v1042, 0.2
      %v1469 = vmul.f32 %v1047, 0.2
      %v1470 = vmul.f32 %v1050, 0.2
      %v1471 = vmul.f32 %v1055, 0.2
      %v1472 = vmul.f32 %v1058, 0.2
      %v1473 = vmul.f32 %v1063, 0.2
      %v1474 = vmul.f32 %v1066, 0.2
      %v1475 = vmul.f32 %v1071, 0.2
      %v1476 = vmul.f32 %v1074, 0.2
      %v1477 = vmul.f32 %v1079, 0.2
      %v1478 = vmul.f32 %v1082, 0.2
      %v1479 = vmul.f32 %v1087, 0.2
      %v1480 = vmul.f32 %v1090, 0.2
      %v1481 = vmul.f32 %v1095, 0.2
      %v1482 = vmul.f32 %v1098, 0.2
      %v1483 = vmul.f32 %v1103, 0.2
      %v1484 = vmul.f32 %v1106, 0.2
      %v1485 = vmul.f32 %v1111, 0.2
      %v1486 = vmul.f32 %v1114, 0.2
      %v1487 = vmul.f32 %v1119, 0.2
      %v1488 = vmul.f32 %v1122, 0.2
      %v1489 = vmul.f32 %v1127, 0.2
      %v1490 = vmul.f32 %v1130, 0.2
      %v1491 = vmul.f32 %v1135, 0.2
      %v1492 = vmul.f32 %v1138, 0.2
      %v1493 = vmul.f32 %v1143, 0.2
      %v1494 = vmul.f32 %v1146, 0.2
      %v1495 = vmul.f32 %v1151, 0.2
      %v1496 = vmul.f32 %v1154, 0.2
      %v1497 = vmul.f32 %v1159, 0.2
      %v1498 = vmul.f32 %v1162, 0.2
      %v1499 = vmul.f32 %v1167, 0.2
      %v1500 = vmul.f32 %v1170, 0.2
      %v1501 = vmul.f32 %v1175, 0.2
      %v1502 = vmul.f32 %v1178, 0.2
      %v1503 = vmul.f32 %v1183, 0.2
      %v1504 = vmul.f32 %v1186, 0.2
      %v1505 = vmul.f32 %v1191, 0.2
      %v1506 = vmul.f32 %v1194, 0.2
      %v1507 = vmul.f32 %v1199, 0.2
      %v1508 = vmul.f32 %v1202, 0.2
      %v1509 = vmul.f32 %v1207, 0.2
      %v1510 = vmul.f32 %v1210, 0.2
      %v1511 = vmul.f32 %v1215, 0.2
      %v1512 = vmul.f32 %v1218, 0.2
      %v1513 = vmul.f32 %v1223, 0.2
      %v1514 = vmul.f32 %v1226, 0.2
      %v1515 = vmul.f32 %v1231, 0.2
      %v1516 = vmul.f32 %v1234, 0.2
      %v1517 = vmul.f32 %v1239, 0.2
      %v1518 = vmul.f32 %v1242, 0.2
      %v1519 = vmul.f32 %v1247, 0.2
      %v1520 = vmul.f32 %v1250, 0.2
      %v1521 = vmul.f32 %v1255, 0.2
      %v1522 = vmul.f32 %v1258, 0.2
      %v1523 = vmul.f32 %v1263, 0.2
      %v1524 = vmul.f32 %v1266, 0.2
      %v1525 = vsel %vm1269, %v759, %v1397
      %v1526 = vsel %vm1270, %v762, %v1398
      %v1527 = vsel %vm1271, %v767, %v1399
      %v1528 = vsel %vm1272, %v770, %v1400
      %v1529 = vsel %vm1273, %v775, %v1401
      %v1530 = vsel %vm1274, %v778, %v1402
      %v1531 = vsel %vm1275, %v783, %v1403
      %v1532 = vsel %vm1276, %v786, %v1404
      %v1533 = vsel %vm1277, %v791, %v1405
      %v1534 = vsel %vm1278, %v794, %v1406
      %v1535 = vsel %vm1279, %v799, %v1407
      %v1536 = vsel %vm1280, %v802, %v1408
      %v1537 = vsel %vm1281, %v807, %v1409
      %v1538 = vsel %vm1282, %v810, %v1410
      %v1539 = vsel %vm1283, %v815, %v1411
      %v1540 = vsel %vm1284, %v818, %v1412
      %v1541 = vsel %vm1285, %v823, %v1413
      %v1542 = vsel %vm1286, %v826, %v1414
      %v1543 = vsel %vm1287, %v831, %v1415
      %v1544 = vsel %vm1288, %v834, %v1416
      %v1545 = vsel %vm1289, %v839, %v1417
      %v1546 = vsel %vm1290, %v842, %v1418
      %v1547 = vsel %vm1291, %v847, %v1419
      %v1548 = vsel %vm1292, %v850, %v1420
      %v1549 = vsel %vm1293, %v855, %v1421
      %v1550 = vsel %vm1294, %v858, %v1422
      %v1551 = vsel %vm1295, %v863, %v1423
      %v1552 = vsel %vm1296, %v866, %v1424
      %v1553 = vsel %vm1297, %v871, %v1425
      %v1554 = vsel %vm1298, %v874, %v1426
      %v1555 = vsel %vm1299, %v879, %v1427
      %v1556 = vsel %vm1300, %v882, %v1428
      %v1557 = vsel %vm1301, %v887, %v1429
      %v1558 = vsel %vm1302, %v890, %v1430
      %v1559 = vsel %vm1303, %v895, %v1431
      %v1560 = vsel %vm1304, %v898, %v1432
      %v1561 = vsel %vm1305, %v903, %v1433
      %v1562 = vsel %vm1306, %v906, %v1434
      %v1563 = vsel %vm1307, %v911, %v1435
      %v1564 = vsel %vm1308, %v914, %v1436
      %v1565 = vsel %vm1309, %v919, %v1437
      %v1566 = vsel %vm1310, %v922, %v1438
      %v1567 = vsel %vm1311, %v927, %v1439
      %v1568 = vsel %vm1312, %v930, %v1440
      %v1569 = vsel %vm1313, %v935, %v1441
      %v1570 = vsel %vm1314, %v938, %v1442
      %v1571 = vsel %vm1315, %v943, %v1443
      %v1572 = vsel %vm1316, %v946, %v1444
      %v1573 = vsel %vm1317, %v951, %v1445
      %v1574 = vsel %vm1318, %v954, %v1446
      %v1575 = vsel %vm1319, %v959, %v1447
      %v1576 = vsel %vm1320, %v962, %v1448
      %v1577 = vsel %vm1321, %v967, %v1449
      %v1578 = vsel %vm1322, %v970, %v1450
      %v1579 = vsel %vm1323, %v975, %v1451
      %v1580 = vsel %vm1324, %v978, %v1452
      %v1581 = vsel %vm1325, %v983, %v1453
      %v1582 = vsel %vm1326, %v986, %v1454
      %v1583 = vsel %vm1327, %v991, %v1455
      %v1584 = vsel %vm1328, %v994, %v1456
      %v1585 = vsel %vm1329, %v999, %v1457
      %v1586 = vsel %vm1330, %v1002, %v1458
      %v1587 = vsel %vm1331, %v1007, %v1459
      %v1588 = vsel %vm1332, %v1010, %v1460
      %v1589 = vsel %vm1333, %v1015, %v1461
      %v1590 = vsel %vm1334, %v1018, %v1462
      %v1591 = vsel %vm1335, %v1023, %v1463
      %v1592 = vsel %vm1336, %v1026, %v1464
      %v1593 = vsel %vm1337, %v1031, %v1465
      %v1594 = vsel %vm1338, %v1034, %v1466
      %v1595 = vsel %vm1339, %v1039, %v1467
      %v1596 = vsel %vm1340, %v1042, %v1468
      %v1597 = vsel %vm1341, %v1047, %v1469
      %v1598 = vsel %vm1342, %v1050, %v1470
      %v1599 = vsel %vm1343, %v1055, %v1471
      %v1600 = vsel %vm1344, %v1058, %v1472
      %v1601 = vsel %vm1345, %v1063, %v1473
      %v1602 = vsel %vm1346, %v1066, %v1474
      %v1603 = vsel %vm1347, %v1071, %v1475
      %v1604 = vsel %vm1348, %v1074, %v1476
      %v1605 = vsel %vm1349, %v1079, %v1477
      %v1606 = vsel %vm1350, %v1082, %v1478
      %v1607 = vsel %vm1351, %v1087, %v1479
      %v1608 = vsel %vm1352, %v1090, %v1480
      %v1609 = vsel %vm1353, %v1095, %v1481
      %v1610 = vsel %vm1354, %v1098, %v1482
      %v1611 = vsel %vm1355, %v1103, %v1483
      %v1612 = vsel %vm1356, %v1106, %v1484
      %v1613 = vsel %vm1357, %v1111, %v1485
      %v1614 = vsel %vm1358, %v1114, %v1486
      %v1615 = vsel %vm1359, %v1119, %v1487
      %v1616 = vsel %vm1360, %v1122, %v1488
      %v1617 = vsel %vm1361, %v1127, %v1489
      %v1618 = vsel %vm1362, %v1130, %v1490
      %v1619 = vsel %vm1363, %v1135, %v1491
      %v1620 = vsel %vm1364, %v1138, %v1492
      %v1621 = vsel %vm1365, %v1143, %v1493
      %v1622 = vsel %vm1366, %v1146, %v1494
      %v1623 = vsel %vm1367, %v1151, %v1495
      %v1624 = vsel %vm1368, %v1154, %v1496
      %v1625 = vsel %vm1369, %v1159, %v1497
      %v1626 = vsel %vm1370, %v1162, %v1498
      %v1627 = vsel %vm1371, %v1167, %v1499
      %v1628 = vsel %vm1372, %v1170, %v1500
      %v1629 = vsel %vm1373, %v1175, %v1501
      %v1630 = vsel %vm1374, %v1178, %v1502
      %v1631 = vsel %vm1375, %v1183, %v1503
      %v1632 = vsel %vm1376, %v1186, %v1504
      %v1633 = vsel %vm1377, %v1191, %v1505
      %v1634 = vsel %vm1378, %v1194, %v1506
      %v1635 = vsel %vm1379, %v1199, %v1507
      %v1636 = vsel %vm1380, %v1202, %v1508
      %v1637 = vsel %vm1381, %v1207, %v1509
      %v1638 = vsel %vm1382, %v1210, %v1510
      %v1639 = vsel %vm1383, %v1215, %v1511
      %v1640 = vsel %vm1384, %v1218, %v1512
      %v1641 = vsel %vm1385, %v1223, %v1513
      %v1642 = vsel %vm1386, %v1226, %v1514
      %v1643 = vsel %vm1387, %v1231, %v1515
      %v1644 = vsel %vm1388, %v1234, %v1516
      %v1645 = vsel %vm1389, %v1239, %v1517
      %v1646 = vsel %vm1390, %v1242, %v1518
      %v1647 = vsel %vm1391, %v1247, %v1519
      %v1648 = vsel %vm1392, %v1250, %v1520
      %v1649 = vsel %vm1393, %v1255, %v1521
      %v1650 = vsel %vm1394, %v1258, %v1522
      %v1651 = vsel %vm1395, %v1263, %v1523
      %v1652 = vsel %vm1396, %v1266, %v1524
      %v1653 = vpack.c.bf16 %v1526, %v1525
      %v1654 = vpack.c.bf16 %v1528, %v1527
      %v1655 = vpack.c.bf16 %v1530, %v1529
      %v1656 = vpack.c.bf16 %v1532, %v1531
      %v1657 = vpack.c.bf16 %v1534, %v1533
      %v1658 = vpack.c.bf16 %v1536, %v1535
      %v1659 = vpack.c.bf16 %v1538, %v1537
      %v1660 = vpack.c.bf16 %v1540, %v1539
      %v1661 = vpack.c.bf16 %v1542, %v1541
      %v1662 = vpack.c.bf16 %v1544, %v1543
      %v1663 = vpack.c.bf16 %v1546, %v1545
      %v1664 = vpack.c.bf16 %v1548, %v1547
      %v1665 = vpack.c.bf16 %v1550, %v1549
      %v1666 = vpack.c.bf16 %v1552, %v1551
      %v1667 = vpack.c.bf16 %v1554, %v1553
      %v1668 = vpack.c.bf16 %v1556, %v1555
      %v1669 = vpack.c.bf16 %v1558, %v1557
      %v1670 = vpack.c.bf16 %v1560, %v1559
      %v1671 = vpack.c.bf16 %v1562, %v1561
      %v1672 = vpack.c.bf16 %v1564, %v1563
      %v1673 = vpack.c.bf16 %v1566, %v1565
      %v1674 = vpack.c.bf16 %v1568, %v1567
      %v1675 = vpack.c.bf16 %v1570, %v1569
      %v1676 = vpack.c.bf16 %v1572, %v1571
      %v1677 = vpack.c.bf16 %v1574, %v1573
      %v1678 = vpack.c.bf16 %v1576, %v1575
      %v1679 = vpack.c.bf16 %v1578, %v1577
      %v1680 = vpack.c.bf16 %v1580, %v1579
      %v1681 = vpack.c.bf16 %v1582, %v1581
      %v1682 = vpack.c.bf16 %v1584, %v1583
      %v1683 = vpack.c.bf16 %v1586, %v1585
      %v1684 = vpack.c.bf16 %v1588, %v1587
      %v1685 = vpack.c.bf16 %v1590, %v1589
      %v1686 = vpack.c.bf16 %v1592, %v1591
      %v1687 = vpack.c.bf16 %v1594, %v1593
      %v1688 = vpack.c.bf16 %v1596, %v1595
      %v1689 = vpack.c.bf16 %v1598, %v1597
      %v1690 = vpack.c.bf16 %v1600, %v1599
      %v1691 = vpack.c.bf16 %v1602, %v1601
      %v1692 = vpack.c.bf16 %v1604, %v1603
      %v1693 = vpack.c.bf16 %v1606, %v1605
      %v1694 = vpack.c.bf16 %v1608, %v1607
      %v1695 = vpack.c.bf16 %v1610, %v1609
      %v1696 = vpack.c.bf16 %v1612, %v1611
      %v1697 = vpack.c.bf16 %v1614, %v1613
      %v1698 = vpack.c.bf16 %v1616, %v1615
      %v1699 = vpack.c.bf16 %v1618, %v1617
      %v1700 = vpack.c.bf16 %v1620, %v1619
      %v1701 = vpack.c.bf16 %v1622, %v1621
      %v1702 = vpack.c.bf16 %v1624, %v1623
      %v1703 = vpack.c.bf16 %v1626, %v1625
      %v1704 = vpack.c.bf16 %v1628, %v1627
      %v1705 = vpack.c.bf16 %v1630, %v1629
      %v1706 = vpack.c.bf16 %v1632, %v1631
      %v1707 = vpack.c.bf16 %v1634, %v1633
      %v1708 = vpack.c.bf16 %v1636, %v1635
      %v1709 = vpack.c.bf16 %v1638, %v1637
      %v1710 = vpack.c.bf16 %v1640, %v1639
      %v1711 = vpack.c.bf16 %v1642, %v1641
      %v1712 = vpack.c.bf16 %v1644, %v1643
      %v1713 = vpack.c.bf16 %v1646, %v1645
      %v1714 = vpack.c.bf16 %v1648, %v1647
      %v1715 = vpack.c.bf16 %v1650, %v1649
      %v1716 = vpack.c.bf16 %v1652, %v1651
      %v1781 = vunpack.c.l.b16 %v1653
      %v1782 = vunpack.c.h.b16 %v1653
      %v1783 = vunpack.c.l.b16 %v1654
      %v1784 = vunpack.c.h.b16 %v1654
      %v1785 = vunpack.c.l.b16 %v1655
      %v1786 = vunpack.c.h.b16 %v1655
      %v1787 = vunpack.c.l.b16 %v1656
      %v1788 = vunpack.c.h.b16 %v1656
      %v1789 = vunpack.c.l.b16 %v1657
      %v1790 = vunpack.c.h.b16 %v1657
      %v1791 = vunpack.c.l.b16 %v1658
      %v1792 = vunpack.c.h.b16 %v1658
      %v1793 = vunpack.c.l.b16 %v1659
      %v1794 = vunpack.c.h.b16 %v1659
      %v1795 = vunpack.c.l.b16 %v1660
      %v1796 = vunpack.c.h.b16 %v1660
      %v1797 = vunpack.c.l.b16 %v1661
      %v1798 = vunpack.c.h.b16 %v1661
      %v1799 = vunpack.c.l.b16 %v1662
      %v1800 = vunpack.c.h.b16 %v1662
      %v1801 = vunpack.c.l.b16 %v1663
      %v1802 = vunpack.c.h.b16 %v1663
      %v1803 = vunpack.c.l.b16 %v1664
      %v1804 = vunpack.c.h.b16 %v1664
      %v1805 = vunpack.c.l.b16 %v1665
      %v1806 = vunpack.c.h.b16 %v1665
      %v1807 = vunpack.c.l.b16 %v1666
      %v1808 = vunpack.c.h.b16 %v1666
      %v1809 = vunpack.c.l.b16 %v1667
      %v1810 = vunpack.c.h.b16 %v1667
      %v1811 = vunpack.c.l.b16 %v1668
      %v1812 = vunpack.c.h.b16 %v1668
      %v1813 = vunpack.c.l.b16 %v1669
      %v1814 = vunpack.c.h.b16 %v1669
      %v1815 = vunpack.c.l.b16 %v1670
      %v1816 = vunpack.c.h.b16 %v1670
      %v1817 = vunpack.c.l.b16 %v1671
      %v1818 = vunpack.c.h.b16 %v1671
      %v1819 = vunpack.c.l.b16 %v1672
      %v1820 = vunpack.c.h.b16 %v1672
      %v1821 = vunpack.c.l.b16 %v1673
      %v1822 = vunpack.c.h.b16 %v1673
      %v1823 = vunpack.c.l.b16 %v1674
      %v1824 = vunpack.c.h.b16 %v1674
      %v1825 = vunpack.c.l.b16 %v1675
      %v1826 = vunpack.c.h.b16 %v1675
      %v1827 = vunpack.c.l.b16 %v1676
      %v1828 = vunpack.c.h.b16 %v1676
      %v1829 = vunpack.c.l.b16 %v1677
      %v1830 = vunpack.c.h.b16 %v1677
      %v1831 = vunpack.c.l.b16 %v1678
      %v1832 = vunpack.c.h.b16 %v1678
      %v1833 = vunpack.c.l.b16 %v1679
      %v1834 = vunpack.c.h.b16 %v1679
      %v1835 = vunpack.c.l.b16 %v1680
      %v1836 = vunpack.c.h.b16 %v1680
      %v1837 = vunpack.c.l.b16 %v1681
      %v1838 = vunpack.c.h.b16 %v1681
      %v1839 = vunpack.c.l.b16 %v1682
      %v1840 = vunpack.c.h.b16 %v1682
      %v1841 = vunpack.c.l.b16 %v1683
      %v1842 = vunpack.c.h.b16 %v1683
      %v1843 = vunpack.c.l.b16 %v1684
      %v1844 = vunpack.c.h.b16 %v1684
      %v1845 = vunpack.c.l.b16 %v1685
      %v1846 = vunpack.c.h.b16 %v1685
      %v1847 = vunpack.c.l.b16 %v1686
      %v1848 = vunpack.c.h.b16 %v1686
      %v1849 = vunpack.c.l.b16 %v1687
      %v1850 = vunpack.c.h.b16 %v1687
      %v1851 = vunpack.c.l.b16 %v1688
      %v1852 = vunpack.c.h.b16 %v1688
      %v1853 = vunpack.c.l.b16 %v1689
      %v1854 = vunpack.c.h.b16 %v1689
      %v1855 = vunpack.c.l.b16 %v1690
      %v1856 = vunpack.c.h.b16 %v1690
      %v1857 = vunpack.c.l.b16 %v1691
      %v1858 = vunpack.c.h.b16 %v1691
      %v1859 = vunpack.c.l.b16 %v1692
      %v1860 = vunpack.c.h.b16 %v1692
      %v1861 = vunpack.c.l.b16 %v1693
      %v1862 = vunpack.c.h.b16 %v1693
      %v1863 = vunpack.c.l.b16 %v1694
      %v1864 = vunpack.c.h.b16 %v1694
      %v1865 = vunpack.c.l.b16 %v1695
      %v1866 = vunpack.c.h.b16 %v1695
      %v1867 = vunpack.c.l.b16 %v1696
      %v1868 = vunpack.c.h.b16 %v1696
      %v1869 = vunpack.c.l.b16 %v1697
      %v1870 = vunpack.c.h.b16 %v1697
      %v1871 = vunpack.c.l.b16 %v1698
      %v1872 = vunpack.c.h.b16 %v1698
      %v1873 = vunpack.c.l.b16 %v1699
      %v1874 = vunpack.c.h.b16 %v1699
      %v1875 = vunpack.c.l.b16 %v1700
      %v1876 = vunpack.c.h.b16 %v1700
      %v1877 = vunpack.c.l.b16 %v1701
      %v1878 = vunpack.c.h.b16 %v1701
      %v1879 = vunpack.c.l.b16 %v1702
      %v1880 = vunpack.c.h.b16 %v1702
      %v1881 = vunpack.c.l.b16 %v1703
      %v1882 = vunpack.c.h.b16 %v1703
      %v1883 = vunpack.c.l.b16 %v1704
      %v1884 = vunpack.c.h.b16 %v1704
      %v1885 = vunpack.c.l.b16 %v1705
      %v1886 = vunpack.c.h.b16 %v1705
      %v1887 = vunpack.c.l.b16 %v1706
      %v1888 = vunpack.c.h.b16 %v1706
      %v1889 = vunpack.c.l.b16 %v1707
      %v1890 = vunpack.c.h.b16 %v1707
      %v1891 = vunpack.c.l.b16 %v1708
      %v1892 = vunpack.c.h.b16 %v1708
      %v1893 = vunpack.c.l.b16 %v1709
      %v1894 = vunpack.c.h.b16 %v1709
      %v1895 = vunpack.c.l.b16 %v1710
      %v1896 = vunpack.c.h.b16 %v1710
      %v1897 = vunpack.c.l.b16 %v1711
      %v1898 = vunpack.c.h.b16 %v1711
      %v1899 = vunpack.c.l.b16 %v1712
      %v1900 = vunpack.c.h.b16 %v1712
      %v1901 = vunpack.c.l.b16 %v1713
      %v1902 = vunpack.c.h.b16 %v1713
      %v1903 = vunpack.c.l.b16 %v1714
      %v1904 = vunpack.c.h.b16 %v1714
      %v1905 = vunpack.c.l.b16 %v1715
      %v1906 = vunpack.c.h.b16 %v1715
      %v1907 = vunpack.c.l.b16 %v1716
      %v1908 = vunpack.c.h.b16 %v1716
      %v1909 = vpack.c.b16 %v1781, %v1781
      %v1910 = vpack.c.b16 %v1782, %v1782
      %v1911 = vpack.c.b16 %v1783, %v1783
      %v1912 = vpack.c.b16 %v1784, %v1784
      %v1913 = vpack.c.b16 %v1785, %v1785
      %v1914 = vpack.c.b16 %v1786, %v1786
      %v1915 = vpack.c.b16 %v1787, %v1787
      %v1916 = vpack.c.b16 %v1788, %v1788
      %v1917 = vpack.c.b16 %v1789, %v1789
      %v1918 = vpack.c.b16 %v1790, %v1790
      %v1919 = vpack.c.b16 %v1791, %v1791
      %v1920 = vpack.c.b16 %v1792, %v1792
      %v1921 = vpack.c.b16 %v1793, %v1793
      %v1922 = vpack.c.b16 %v1794, %v1794
      %v1923 = vpack.c.b16 %v1795, %v1795
      %v1924 = vpack.c.b16 %v1796, %v1796
      %v1925 = vpack.c.b16 %v1797, %v1797
      %v1926 = vpack.c.b16 %v1798, %v1798
      %v1927 = vpack.c.b16 %v1799, %v1799
      %v1928 = vpack.c.b16 %v1800, %v1800
      %v1929 = vpack.c.b16 %v1801, %v1801
      %v1930 = vpack.c.b16 %v1802, %v1802
      %v1931 = vpack.c.b16 %v1803, %v1803
      %v1932 = vpack.c.b16 %v1804, %v1804
      %v1933 = vpack.c.b16 %v1805, %v1805
      %v1934 = vpack.c.b16 %v1806, %v1806
      %v1935 = vpack.c.b16 %v1807, %v1807
      %v1936 = vpack.c.b16 %v1808, %v1808
      %v1937 = vpack.c.b16 %v1809, %v1809
      %v1938 = vpack.c.b16 %v1810, %v1810
      %v1939 = vpack.c.b16 %v1811, %v1811
      %v1940 = vpack.c.b16 %v1812, %v1812
      %v1941 = vpack.c.b16 %v1813, %v1813
      %v1942 = vpack.c.b16 %v1814, %v1814
      %v1943 = vpack.c.b16 %v1815, %v1815
      %v1944 = vpack.c.b16 %v1816, %v1816
      %v1945 = vpack.c.b16 %v1817, %v1817
      %v1946 = vpack.c.b16 %v1818, %v1818
      %v1947 = vpack.c.b16 %v1819, %v1819
      %v1948 = vpack.c.b16 %v1820, %v1820
      %v1949 = vpack.c.b16 %v1821, %v1821
      %v1950 = vpack.c.b16 %v1822, %v1822
      %v1951 = vpack.c.b16 %v1823, %v1823
      %v1952 = vpack.c.b16 %v1824, %v1824
      %v1953 = vpack.c.b16 %v1825, %v1825
      %v1954 = vpack.c.b16 %v1826, %v1826
      %v1955 = vpack.c.b16 %v1827, %v1827
      %v1956 = vpack.c.b16 %v1828, %v1828
      %v1957 = vpack.c.b16 %v1829, %v1829
      %v1958 = vpack.c.b16 %v1830, %v1830
      %v1959 = vpack.c.b16 %v1831, %v1831
      %v1960 = vpack.c.b16 %v1832, %v1832
      %v1961 = vpack.c.b16 %v1833, %v1833
      %v1962 = vpack.c.b16 %v1834, %v1834
      %v1963 = vpack.c.b16 %v1835, %v1835
      %v1964 = vpack.c.b16 %v1836, %v1836
      %v1965 = vpack.c.b16 %v1837, %v1837
      %v1966 = vpack.c.b16 %v1838, %v1838
      %v1967 = vpack.c.b16 %v1839, %v1839
      %v1968 = vpack.c.b16 %v1840, %v1840
      %v1969 = vpack.c.b16 %v1841, %v1841
      %v1970 = vpack.c.b16 %v1842, %v1842
      %v1971 = vpack.c.b16 %v1843, %v1843
      %v1972 = vpack.c.b16 %v1844, %v1844
      %v1973 = vpack.c.b16 %v1845, %v1845
      %v1974 = vpack.c.b16 %v1846, %v1846
      %v1975 = vpack.c.b16 %v1847, %v1847
      %v1976 = vpack.c.b16 %v1848, %v1848
      %v1977 = vpack.c.b16 %v1849, %v1849
      %v1978 = vpack.c.b16 %v1850, %v1850
      %v1979 = vpack.c.b16 %v1851, %v1851
      %v1980 = vpack.c.b16 %v1852, %v1852
      %v1981 = vpack.c.b16 %v1853, %v1853
      %v1982 = vpack.c.b16 %v1854, %v1854
      %v1983 = vpack.c.b16 %v1855, %v1855
      %v1984 = vpack.c.b16 %v1856, %v1856
      %v1985 = vpack.c.b16 %v1857, %v1857
      %v1986 = vpack.c.b16 %v1858, %v1858
      %v1987 = vpack.c.b16 %v1859, %v1859
      %v1988 = vpack.c.b16 %v1860, %v1860
      %v1989 = vpack.c.b16 %v1861, %v1861
      %v1990 = vpack.c.b16 %v1862, %v1862
      %v1991 = vpack.c.b16 %v1863, %v1863
      %v1992 = vpack.c.b16 %v1864, %v1864
      %v1993 = vpack.c.b16 %v1865, %v1865
      %v1994 = vpack.c.b16 %v1866, %v1866
      %v1995 = vpack.c.b16 %v1867, %v1867
      %v1996 = vpack.c.b16 %v1868, %v1868
      %v1997 = vpack.c.b16 %v1869, %v1869
      %v1998 = vpack.c.b16 %v1870, %v1870
      %v1999 = vpack.c.b16 %v1871, %v1871
      %v2000 = vpack.c.b16 %v1872, %v1872
      %v2001 = vpack.c.b16 %v1873, %v1873
      %v2002 = vpack.c.b16 %v1874, %v1874
      %v2003 = vpack.c.b16 %v1875, %v1875
      %v2004 = vpack.c.b16 %v1876, %v1876
      %v2005 = vpack.c.b16 %v1877, %v1877
      %v2006 = vpack.c.b16 %v1878, %v1878
      %v2007 = vpack.c.b16 %v1879, %v1879
      %v2008 = vpack.c.b16 %v1880, %v1880
      %v2009 = vpack.c.b16 %v1881, %v1881
      %v2010 = vpack.c.b16 %v1882, %v1882
      %v2011 = vpack.c.b16 %v1883, %v1883
      %v2012 = vpack.c.b16 %v1884, %v1884
      %v2013 = vpack.c.b16 %v1885, %v1885
      %v2014 = vpack.c.b16 %v1886, %v1886
      %v2015 = vpack.c.b16 %v1887, %v1887
      %v2016 = vpack.c.b16 %v1888, %v1888
      %v2017 = vpack.c.b16 %v1889, %v1889
      %v2018 = vpack.c.b16 %v1890, %v1890
      %v2019 = vpack.c.b16 %v1891, %v1891
      %v2020 = vpack.c.b16 %v1892, %v1892
      %v2021 = vpack.c.b16 %v1893, %v1893
      %v2022 = vpack.c.b16 %v1894, %v1894
      %v2023 = vpack.c.b16 %v1895, %v1895
      %v2024 = vpack.c.b16 %v1896, %v1896
      %v2025 = vpack.c.b16 %v1897, %v1897
      %v2026 = vpack.c.b16 %v1898, %v1898
      %v2027 = vpack.c.b16 %v1899, %v1899
      %v2028 = vpack.c.b16 %v1900, %v1900
      %v2029 = vpack.c.b16 %v1901, %v1901
      %v2030 = vpack.c.b16 %v1902, %v1902
      %v2031 = vpack.c.b16 %v1903, %v1903
      %v2032 = vpack.c.b16 %v1904, %v1904
      %v2033 = vpack.c.b16 %v1905, %v1905
      %v2034 = vpack.c.b16 %v1906, %v1906
      %v2035 = vpack.c.b16 %v1907, %v1907
      %v2036 = vpack.c.b16 %v1908, %v1908
      %2165 = vst [vmem:[%s145] sm:$0xf] %v1909
      %2166 = vst [vmem:[%s145 + $0x4] sm:$0xf] %v1910
      %2167 = vst [vmem:[%s145 + $0x8] sm:$0xf] %v1911
      %2168 = vst [vmem:[%s145 + $0xc] sm:$0xf] %v1912
      %2169 = vst [vmem:[%s145 + $0x10] sm:$0xf] %v1913
      %2170 = vst [vmem:[%s145 + $0x14] sm:$0xf] %v1914
      %2171 = vst [vmem:[%s145 + $0x18] sm:$0xf] %v1915
      %2172 = vst [vmem:[%s145 + $0x1c] sm:$0xf] %v1916
      %2173 = vst [vmem:[%s145 + $0x20] sm:$0xf] %v1917
      %2174 = vst [vmem:[%s145 + $0x24] sm:$0xf] %v1918
      %2175 = vst [vmem:[%s145 + $0x28] sm:$0xf] %v1919
      %2176 = vst [vmem:[%s145 + $0x2c] sm:$0xf] %v1920
      %2177 = vst [vmem:[%s145 + $0x30] sm:$0xf] %v1921
      %2178 = vst [vmem:[%s145 + $0x34] sm:$0xf] %v1922
      %2179 = vst [vmem:[%s145 + $0x38] sm:$0xf] %v1923
      %2180 = vst [vmem:[%s145 + $0x3c] sm:$0xf] %v1924
      %2181 = vst [vmem:[%s145 + $0x40] sm:$0xf] %v1925
      %2182 = vst [vmem:[%s145 + $0x44] sm:$0xf] %v1926
      %2183 = vst [vmem:[%s145 + $0x48] sm:$0xf] %v1927
      %2184 = vst [vmem:[%s145 + $0x4c] sm:$0xf] %v1928
      %2185 = vst [vmem:[%s145 + $0x50] sm:$0xf] %v1929
      %2186 = vst [vmem:[%s145 + $0x54] sm:$0xf] %v1930
      %2187 = vst [vmem:[%s145 + $0x58] sm:$0xf] %v1931
      %2188 = vst [vmem:[%s145 + $0x5c] sm:$0xf] %v1932
      %2189 = vst [vmem:[%s145 + $0x60] sm:$0xf] %v1933
      %2190 = vst [vmem:[%s145 + $0x64] sm:$0xf] %v1934
      %2191 = vst [vmem:[%s145 + $0x68] sm:$0xf] %v1935
      %2192 = vst [vmem:[%s145 + $0x6c] sm:$0xf] %v1936
      %2193 = vst [vmem:[%s145 + $0x70] sm:$0xf] %v1937
      %2194 = vst [vmem:[%s145 + $0x74] sm:$0xf] %v1938
      %2195 = vst [vmem:[%s145 + $0x78] sm:$0xf] %v1939
      %2196 = vst [vmem:[%s145 + $0x7c] sm:$0xf] %v1940
      %2197 = vst [vmem:[%s145 + $0x80] sm:$0xf] %v1941
      %2198 = vst [vmem:[%s145 + $0x84] sm:$0xf] %v1942
      %2199 = vst [vmem:[%s145 + $0x88] sm:$0xf] %v1943
      %2200 = vst [vmem:[%s145 + $0x8c] sm:$0xf] %v1944
      %2201 = vst [vmem:[%s145 + $0x90] sm:$0xf] %v1945
      %2202 = vst [vmem:[%s145 + $0x94] sm:$0xf] %v1946
      %2203 = vst [vmem:[%s145 + $0x98] sm:$0xf] %v1947
      %2204 = vst [vmem:[%s145 + $0x9c] sm:$0xf] %v1948
      %2205 = vst [vmem:[%s145 + $0xa0] sm:$0xf] %v1949
      %2206 = vst [vmem:[%s145 + $0xa4] sm:$0xf] %v1950
      %2207 = vst [vmem:[%s145 + $0xa8] sm:$0xf] %v1951
      %2208 = vst [vmem:[%s145 + $0xac] sm:$0xf] %v1952
      %2209 = vst [vmem:[%s145 + $0xb0] sm:$0xf] %v1953
      %2210 = vst [vmem:[%s145 + $0xb4] sm:$0xf] %v1954
      %2211 = vst [vmem:[%s145 + $0xb8] sm:$0xf] %v1955
      %2212 = vst [vmem:[%s145 + $0xbc] sm:$0xf] %v1956
      %2213 = vst [vmem:[%s145 + $0xc0] sm:$0xf] %v1957
      %2214 = vst [vmem:[%s145 + $0xc4] sm:$0xf] %v1958
      %2215 = vst [vmem:[%s145 + $0xc8] sm:$0xf] %v1959
      %2216 = vst [vmem:[%s145 + $0xcc] sm:$0xf] %v1960
      %2217 = vst [vmem:[%s145 + $0xd0] sm:$0xf] %v1961
      %2218 = vst [vmem:[%s145 + $0xd4] sm:$0xf] %v1962
      %2219 = vst [vmem:[%s145 + $0xd8] sm:$0xf] %v1963
      %2220 = vst [vmem:[%s145 + $0xdc] sm:$0xf] %v1964
      %2221 = vst [vmem:[%s145 + $0xe0] sm:$0xf] %v1965
      %2222 = vst [vmem:[%s145 + $0xe4] sm:$0xf] %v1966
      %2223 = vst [vmem:[%s145 + $0xe8] sm:$0xf] %v1967
      %2224 = vst [vmem:[%s145 + $0xec] sm:$0xf] %v1968
      %2225 = vst [vmem:[%s145 + $0xf0] sm:$0xf] %v1969
      %2226 = vst [vmem:[%s145 + $0xf4] sm:$0xf] %v1970
      %2227 = vst [vmem:[%s145 + $0xf8] sm:$0xf] %v1971
      %2228 = vst [vmem:[%s145 + $0xfc] sm:$0xf] %v1972
      %2229 = vst [vmem:[%s145 + $0x100] sm:$0xf] %v1973
      %2230 = vst [vmem:[%s145 + $0x104] sm:$0xf] %v1974
      %2231 = vst [vmem:[%s145 + $0x108] sm:$0xf] %v1975
      %2232 = vst [vmem:[%s145 + $0x10c] sm:$0xf] %v1976
      %2233 = vst [vmem:[%s145 + $0x110] sm:$0xf] %v1977
      %2234 = vst [vmem:[%s145 + $0x114] sm:$0xf] %v1978
      %2235 = vst [vmem:[%s145 + $0x118] sm:$0xf] %v1979
      %2236 = vst [vmem:[%s145 + $0x11c] sm:$0xf] %v1980
      %2237 = vst [vmem:[%s145 + $0x120] sm:$0xf] %v1981
      %2238 = vst [vmem:[%s145 + $0x124] sm:$0xf] %v1982
      %2239 = vst [vmem:[%s145 + $0x128] sm:$0xf] %v1983
      %2240 = vst [vmem:[%s145 + $0x12c] sm:$0xf] %v1984
      %2241 = vst [vmem:[%s145 + $0x130] sm:$0xf] %v1985
      %2242 = vst [vmem:[%s145 + $0x134] sm:$0xf] %v1986
      %2243 = vst [vmem:[%s145 + $0x138] sm:$0xf] %v1987
      %2244 = vst [vmem:[%s145 + $0x13c] sm:$0xf] %v1988
      %2245 = vst [vmem:[%s145 + $0x140] sm:$0xf] %v1989
      %2246 = vst [vmem:[%s145 + $0x144] sm:$0xf] %v1990
      %2247 = vst [vmem:[%s145 + $0x148] sm:$0xf] %v1991
      %2248 = vst [vmem:[%s145 + $0x14c] sm:$0xf] %v1992
      %2249 = vst [vmem:[%s145 + $0x150] sm:$0xf] %v1993
      %2250 = vst [vmem:[%s145 + $0x154] sm:$0xf] %v1994
      %2251 = vst [vmem:[%s145 + $0x158] sm:$0xf] %v1995
      %2252 = vst [vmem:[%s145 + $0x15c] sm:$0xf] %v1996
      %2253 = vst [vmem:[%s145 + $0x160] sm:$0xf] %v1997
      %2254 = vst [vmem:[%s145 + $0x164] sm:$0xf] %v1998
      %2255 = vst [vmem:[%s145 + $0x168] sm:$0xf] %v1999
      %2256 = vst [vmem:[%s145 + $0x16c] sm:$0xf] %v2000
      %2257 = vst [vmem:[%s145 + $0x170] sm:$0xf] %v2001
      %2258 = vst [vmem:[%s145 + $0x174] sm:$0xf] %v2002
      %2259 = vst [vmem:[%s145 + $0x178] sm:$0xf] %v2003
      %2260 = vst [vmem:[%s145 + $0x17c] sm:$0xf] %v2004
      %2261 = vst [vmem:[%s145 + $0x180] sm:$0xf] %v2005
      %2262 = vst [vmem:[%s145 + $0x184] sm:$0xf] %v2006
      %2263 = vst [vmem:[%s145 + $0x188] sm:$0xf] %v2007
      %2264 = vst [vmem:[%s145 + $0x18c] sm:$0xf] %v2008
      %2265 = vst [vmem:[%s145 + $0x190] sm:$0xf] %v2009
      %2266 = vst [vmem:[%s145 + $0x194] sm:$0xf] %v2010
      %2267 = vst [vmem:[%s145 + $0x198] sm:$0xf] %v2011
      %2268 = vst [vmem:[%s145 + $0x19c] sm:$0xf] %v2012
      %2269 = vst [vmem:[%s145 + $0x1a0] sm:$0xf] %v2013
      %2270 = vst [vmem:[%s145 + $0x1a4] sm:$0xf] %v2014
      %2271 = vst [vmem:[%s145 + $0x1a8] sm:$0xf] %v2015
      %2272 = vst [vmem:[%s145 + $0x1ac] sm:$0xf] %v2016
      %2273 = vst [vmem:[%s145 + $0x1b0] sm:$0xf] %v2017
      %2274 = vst [vmem:[%s145 + $0x1b4] sm:$0xf] %v2018
      %2275 = vst [vmem:[%s145 + $0x1b8] sm:$0xf] %v2019
      %2276 = vst [vmem:[%s145 + $0x1bc] sm:$0xf] %v2020
      %2277 = vst [vmem:[%s145 + $0x1c0] sm:$0xf] %v2021
      %2278 = vst [vmem:[%s145 + $0x1c4] sm:$0xf] %v2022
      %2279 = vst [vmem:[%s145 + $0x1c8] sm:$0xf] %v2023
      %2280 = vst [vmem:[%s145 + $0x1cc] sm:$0xf] %v2024
      %2281 = vst [vmem:[%s145 + $0x1d0] sm:$0xf] %v2025
      %2282 = vst [vmem:[%s145 + $0x1d4] sm:$0xf] %v2026
      %2283 = vst [vmem:[%s145 + $0x1d8] sm:$0xf] %v2027
      %2284 = vst [vmem:[%s145 + $0x1dc] sm:$0xf] %v2028
      %2285 = vst [vmem:[%s145 + $0x1e0] sm:$0xf] %v2029
      %2286 = vst [vmem:[%s145 + $0x1e4] sm:$0xf] %v2030
      %2287 = vst [vmem:[%s145 + $0x1e8] sm:$0xf] %v2031
      %2288 = vst [vmem:[%s145 + $0x1ec] sm:$0xf] %v2032
      %2289 = vst [vmem:[%s145 + $0x1f0] sm:$0xf] %v2033
      %2290 = vst [vmem:[%s145 + $0x1f4] sm:$0xf] %v2034
      %2291 = vst [vmem:[%s145 + $0x1f8] sm:$0xf] %v2035
      %2292 = vst [vmem:[%s145 + $0x1fc] sm:$0xf] %v2036
      %s2293 = smul.u32 128, %s13
      %p2294 = scmp.lt.s32.totalorder %s2293, 255
      %s2295 = scalar_select %p2294, %s2293, 255
      %s2296 = smul.addr %s2295, 4
      %s2297 = scalar_lea.vmem %s2, %s2296
      // Predicated region
      $region29: #{descriminator_forward.5} parent=27 // pred_check
        %p2298 = pneg %p78
      $region30: #{descriminator_forward.5} parent=27 // pred_check_branch
        %2300 = sbr.rel (%p2298) target = $region32
      $region31: #{descriminator_forward.5} parent=27 // pred_region
        %s2301 = smul.u32 128, %s13
      $region32: #{descriminator_forward.5} parent=27 // pred_fallthru
        _
    $region28: #{descriminator_forward.5} parent=5 // pred_fallthru
      _
    %p2302 = scmp.le.s32.totalorder 2, %s8
    // Predicated region
    $region33: #{descriminator_forward.5} parent=5 // pred_check
      %p2303 = pneg %p2302
    $region34: #{descriminator_forward.5} parent=5 // pred_check_branch
      %2305 = sbr.rel (%p2303) target = $region36
    $region35: #{descriminator_forward.5} parent=5 // pred_region
      %s2306 = ssub.s32 %s8, 2
      // Predicated region
      $region37: #{descriminator_forward.5} parent=35 // pred_check
        %p2307 = pneg %p84
      $region38: #{descriminator_forward.5} parent=35 // pred_check_branch
        %2309 = sbr.rel (%p2307) target = $region40
      $region39: #{descriminator_forward.5} parent=35 // pred_region
        %s2310 = smul.u32 128, %s14
        %p2311 = scmp.lt.s32.totalorder %s2310, 255
        %s2312 = scalar_select %p2311, %s2310, 255
        %s2313 = smul.addr %s2312, 4
        %s2314 = scalar_lea.vmem %s2, %s2313
      $region40: #{descriminator_forward.5} parent=35 // pred_fallthru
        _
    $region36: #{descriminator_forward.5} parent=5 // pred_fallthru
      _
  $region6: #{descriminator_forward.5} parent=0 // loop_footer
    %s12 = sadd.s32 1, %s8
  $region7: #{descriminator_forward.5} parent=0 // loop_footer_branch
    %7 = sbr.rel target = $region3
  $region8: #{descriminator_forward.5} parent=0 // loop_exit
    _

// kernel: descriminator_forward.6
$region0: #{descriminator_forward.6}
  #allocation0 [shape = 'u32[]', space=smem, size = 0x4, offset = 0x4, fixed_abs, tag = 'smem constant byte address 0x4 - core index']
  #allocation1 [shape = 'u32[144,128]{1,0:T(1,128)}', space=vmem, size = 0x12000, scoped, tag = 'internal scratch']
  %s0 = inlined_call_operand.vmem [shape: bf16[450,128], index: 0, kind: input, shape index: {}]
  %s1 = inlined_call_operand.vmem [shape: bf16[128,128], index: 1, kind: input, shape index: {}]
  %s2 = inlined_call_operand.vmem [shape: bf16[450,128], index: 2, kind: output, shape index: {0}]
  %s3 = inlined_call_operand.vmem [shape: f32[1,128], index: 3, kind: output, shape index: {1}]
  %s4 = inlined_call_operand.vmem [shape: f32[1,128], index: 4, kind: output, shape index: {2}]
  %5 = xla_tuple %s2, %s3, %s4
  %s6 = sld [smem:[#allocation0]]
  $region34: #{descriminator_forward.6} parent=0
    _
  %s8 = ssub.s32 1, %s6
  %s9 = scalar_select 0, %s8, %s6
  // Predicated region
  $region2: #{descriminator_forward.6} parent=0 // pred_check
    _
  $region3: #{descriminator_forward.6} parent=0 // pred_check_branch
    %11 = sbr.rel (0) target = $region5
  $region4: #{descriminator_forward.6} parent=0 // pred_region
    _
  $region5: #{descriminator_forward.6} parent=0 // pred_fallthru
    _
  // Predicated region
  $region6: #{descriminator_forward.6} parent=0 // pred_check
    _
  $region7: #{descriminator_forward.6} parent=0 // pred_check_branch
    %13 = sbr.rel (0) target = $region9
  $region8: #{descriminator_forward.6} parent=0 // pred_region
    _
  $region9: #{descriminator_forward.6} parent=0 // pred_fallthru
    _
  %v15 = vld [vmem:[%s0] sm:$0xf]
  %v16 = vld [vmem:[%s0 + $0x4] sm:$0xf]
  %v17 = vld [vmem:[%s0 + $0x8] sm:$0xf]
  %v18 = vld [vmem:[%s0 + $0xc] sm:$0xf]
  %v19 = vld [vmem:[%s0 + $0x10] sm:$0xf]
  %v20 = vld [vmem:[%s0 + $0x14] sm:$0xf]
  %v21 = vld [vmem:[%s0 + $0x18] sm:$0xf]
  %v22 = vld [vmem:[%s0 + $0x1c] sm:$0xf]
  %v23 = vld [vmem:[%s0 + $0x20] sm:$0xf]
  %v24 = vld [vmem:[%s0 + $0x24] sm:$0xf]
  %v25 = vld [vmem:[%s0 + $0x28] sm:$0xf]
  %v26 = vld [vmem:[%s0 + $0x2c] sm:$0xf]
  %v27 = vld [vmem:[%s0 + $0x30] sm:$0xf]
  %v28 = vld [vmem:[%s0 + $0x34] sm:$0xf]
  %v29 = vld [vmem:[%s0 + $0x38] sm:$0xf]
  %v30 = vld [vmem:[%s0 + $0x3c] sm:$0xf]
  %v31 = vld [vmem:[%s0 + $0x40] sm:$0xf]
  %v32 = vld [vmem:[%s0 + $0x44] sm:$0xf]
  %v33 = vld [vmem:[%s0 + $0x48] sm:$0xf]
  %v34 = vld [vmem:[%s0 + $0x4c] sm:$0xf]
  %v35 = vld [vmem:[%s0 + $0x50] sm:$0xf]
  %v36 = vld [vmem:[%s0 + $0x54] sm:$0xf]
  %v37 = vld [vmem:[%s0 + $0x58] sm:$0xf]
  %v38 = vld [vmem:[%s0 + $0x5c] sm:$0xf]
  %v39 = vld [vmem:[%s0 + $0x60] sm:$0xf]
  %v40 = vld [vmem:[%s0 + $0x64] sm:$0xf]
  %v41 = vld [vmem:[%s0 + $0x68] sm:$0xf]
  %v42 = vld [vmem:[%s0 + $0x6c] sm:$0xf]
  %v43 = vld [vmem:[%s0 + $0x70] sm:$0xf]
  %v44 = vld [vmem:[%s0 + $0x74] sm:$0xf]
  %v45 = vld [vmem:[%s0 + $0x78] sm:$0xf]
  %v46 = vld [vmem:[%s0 + $0x7c] sm:$0xf]
  %v47 = vld [vmem:[%s0 + $0x80] sm:$0xf]
  %v48 = vld [vmem:[%s0 + $0x84] sm:$0xf]
  %v49 = vld [vmem:[%s0 + $0x88] sm:$0xf]
  %v50 = vld [vmem:[%s0 + $0x8c] sm:$0xf]
  %v51 = vld [vmem:[%s0 + $0x90] sm:$0xf]
  %v52 = vld [vmem:[%s0 + $0x94] sm:$0xf]
  %v53 = vld [vmem:[%s0 + $0x98] sm:$0xf]
  %v54 = vld [vmem:[%s0 + $0x9c] sm:$0xf]
  %v55 = vld [vmem:[%s0 + $0xa0] sm:$0xf]
  %v56 = vld [vmem:[%s0 + $0xa4] sm:$0xf]
  %v57 = vld [vmem:[%s0 + $0xa8] sm:$0xf]
  %v58 = vld [vmem:[%s0 + $0xac] sm:$0xf]
  %v59 = vld [vmem:[%s0 + $0xb0] sm:$0xf]
  %v60 = vld [vmem:[%s0 + $0xb4] sm:$0xf]
  %v61 = vld [vmem:[%s0 + $0xb8] sm:$0xf]
  %v62 = vld [vmem:[%s0 + $0xbc] sm:$0xf]
  %v63 = vld [vmem:[%s0 + $0xc0] sm:$0xf]
  %v64 = vld [vmem:[%s0 + $0xc4] sm:$0xf]
  %v65 = vld [vmem:[%s0 + $0xc8] sm:$0xf]
  %v66 = vld [vmem:[%s0 + $0xcc] sm:$0xf]
  %v67 = vld [vmem:[%s0 + $0xd0] sm:$0xf]
  %v68 = vld [vmem:[%s0 + $0xd4] sm:$0xf]
  %v69 = vld [vmem:[%s0 + $0xd8] sm:$0xf]
  %v70 = vld [vmem:[%s0 + $0xdc] sm:$0xf]
  %v71 = vld [vmem:[%s0 + $0xe0] sm:$0x1]
  %v72 = vld [vmem:[%s1] sm:$0xf]
  %v73 = vld [vmem:[%s1 + $0x4] sm:$0xf]
  %v74 = vld [vmem:[%s1 + $0x8] sm:$0xf]
  %v75 = vld [vmem:[%s1 + $0xc] sm:$0xf]
  %v76 = vld [vmem:[%s1 + $0x10] sm:$0xf]
  %v77 = vld [vmem:[%s1 + $0x14] sm:$0xf]
  %v78 = vld [vmem:[%s1 + $0x18] sm:$0xf]
  %v79 = vld [vmem:[%s1 + $0x1c] sm:$0xf]
  %v80 = vld [vmem:[%s1 + $0x20] sm:$0xf]
  %v81 = vld [vmem:[%s1 + $0x24] sm:$0xf]
  %v82 = vld [vmem:[%s1 + $0x28] sm:$0xf]
  %v83 = vld [vmem:[%s1 + $0x2c] sm:$0xf]
  %v84 = vld [vmem:[%s1 + $0x30] sm:$0xf]
  %v85 = vld [vmem:[%s1 + $0x34] sm:$0xf]
  %v86 = vld [vmem:[%s1 + $0x38] sm:$0xf]
  %v87 = vld [vmem:[%s1 + $0x3c] sm:$0xf]
  %v145 = vunpack.c.l.b16 %v15
  %v146 = vunpack.c.l.b16 %v16
  %v147 = vunpack.c.l.b16 %v17
  %v148 = vunpack.c.l.b16 %v18
  %v149 = vunpack.c.l.b16 %v19
  %v150 = vunpack.c.l.b16 %v20
  %v151 = vunpack.c.l.b16 %v21
  %v152 = vunpack.c.l.b16 %v22
  %v153 = vunpack.c.l.b16 %v23
  %v154 = vunpack.c.l.b16 %v24
  %v155 = vunpack.c.l.b16 %v25
  %v156 = vunpack.c.l.b16 %v26
  %v157 = vunpack.c.l.b16 %v27
  %v158 = vunpack.c.l.b16 %v28
  %v159 = vunpack.c.l.b16 %v29
  %v160 = vunpack.c.l.b16 %v30
  %v161 = vunpack.c.l.b16 %v31
  %v162 = vunpack.c.l.b16 %v32
  %v163 = vunpack.c.l.b16 %v33
  %v164 = vunpack.c.l.b16 %v34
  %v165 = vunpack.c.l.b16 %v35
  %v166 = vunpack.c.l.b16 %v36
  %v167 = vunpack.c.l.b16 %v37
  %v168 = vunpack.c.l.b16 %v38
  %v169 = vunpack.c.l.b16 %v39
  %v170 = vunpack.c.l.b16 %v40
  %v171 = vunpack.c.l.b16 %v41
  %v172 = vunpack.c.l.b16 %v42
  %v173 = vunpack.c.l.b16 %v43
  %v174 = vunpack.c.l.b16 %v44
  %v175 = vunpack.c.l.b16 %v45
  %v176 = vunpack.c.l.b16 %v46
  %v177 = vunpack.c.l.b16 %v47
  %v178 = vunpack.c.l.b16 %v48
  %v179 = vunpack.c.l.b16 %v49
  %v180 = vunpack.c.l.b16 %v50
  %v181 = vunpack.c.l.b16 %v51
  %v182 = vunpack.c.l.b16 %v52
  %v183 = vunpack.c.l.b16 %v53
  %v184 = vunpack.c.l.b16 %v54
  %v185 = vunpack.c.l.b16 %v55
  %v186 = vunpack.c.l.b16 %v56
  %v187 = vunpack.c.l.b16 %v57
  %v188 = vunpack.c.l.b16 %v58
  %v189 = vunpack.c.l.b16 %v59
  %v190 = vunpack.c.l.b16 %v60
  %v191 = vunpack.c.l.b16 %v61
  %v192 = vunpack.c.l.b16 %v62
  %v193 = vunpack.c.l.b16 %v63
  %v194 = vunpack.c.l.b16 %v64
  %v195 = vunpack.c.l.b16 %v65
  %v196 = vunpack.c.l.b16 %v66
  %v197 = vunpack.c.l.b16 %v67
  %v198 = vunpack.c.l.b16 %v68
  %v199 = vunpack.c.l.b16 %v69
  %v200 = vunpack.c.l.b16 %v70
  %v201 = vunpack.c.l.b16 %v71
  %v202 = vpack.c.b16 %v146, %v145
  %v203 = vpack.c.b16 %v148, %v147
  %v204 = vpack.c.b16 %v150, %v149
  %v205 = vpack.c.b16 %v152, %v151
  %v206 = vpack.c.b16 %v154, %v153
  %v207 = vpack.c.b16 %v156, %v155
  %v208 = vpack.c.b16 %v158, %v157
  %v209 = vpack.c.b16 %v160, %v159
  %v210 = vpack.c.b16 %v162, %v161
  %v211 = vpack.c.b16 %v164, %v163
  %v212 = vpack.c.b16 %v166, %v165
  %v213 = vpack.c.b16 %v168, %v167
  %v214 = vpack.c.b16 %v170, %v169
  %v215 = vpack.c.b16 %v172, %v171
  %v216 = vpack.c.b16 %v174, %v173
  %v217 = vpack.c.b16 %v176, %v175
  %v218 = vpack.c.b16 %v178, %v177
  %v219 = vpack.c.b16 %v180, %v179
  %v220 = vpack.c.b16 %v182, %v181
  %v221 = vpack.c.b16 %v184, %v183
  %v222 = vpack.c.b16 %v186, %v185
  %v223 = vpack.c.b16 %v188, %v187
  %v224 = vpack.c.b16 %v190, %v189
  %v225 = vpack.c.b16 %v192, %v191
  %v226 = vpack.c.b16 %v194, %v193
  %v227 = vpack.c.b16 %v196, %v195
  %v228 = vpack.c.b16 %v198, %v197
  %v229 = vpack.c.b16 %v200, %v199
  %v230 = vpack.c.b16 %v201, %v201
  %v276 = vunpack.c.l.b16 %v72
  %v277 = vunpack.c.l.b16 %v73
  %v278 = vunpack.c.l.b16 %v74
  %v279 = vunpack.c.l.b16 %v75
  %v280 = vunpack.c.l.b16 %v76
  %v281 = vunpack.c.l.b16 %v77
  %v282 = vunpack.c.l.b16 %v78
  %v283 = vunpack.c.l.b16 %v79
  %v284 = vunpack.c.l.b16 %v80
  %v285 = vunpack.c.l.b16 %v81
  %v286 = vunpack.c.l.b16 %v82
  %v287 = vunpack.c.l.b16 %v83
  %v288 = vunpack.c.l.b16 %v84
  %v289 = vunpack.c.l.b16 %v85
  %v290 = vunpack.c.l.b16 %v86
  %v291 = vunpack.c.l.b16 %v87
  %v292 = vpack.c.b16 %v277, %v276
  %v293 = vpack.c.b16 %v279, %v278
  %v294 = vpack.c.b16 %v281, %v280
  %v295 = vpack.c.b16 %v283, %v282
  %v296 = vpack.c.b16 %v285, %v284
  %v297 = vpack.c.b16 %v287, %v286
  %v298 = vpack.c.b16 %v289, %v288
  %v299 = vpack.c.b16 %v291, %v290
  %308 = vmatprep.subr.bf16.mxu0 0
  %309 = vmatpush1.bf16.msra.mxu0 %v299
  %310 = vmatprep.subr.bf16.mxu0 0
  %311 = vmatpush1.bf16.msra.mxu0 %v298
  %312 = vmatprep.subr.bf16.mxu0 0
  %313 = vmatpush1.bf16.msra.mxu0 %v297
  %314 = vmatprep.subr.bf16.mxu0 0
  %315 = vmatpush1.bf16.msra.mxu0 %v296
  %316 = vmatprep.subr.bf16.mxu0 0
  %317 = vmatpush1.bf16.msra.mxu0 %v295
  %318 = vmatprep.subr.bf16.mxu0 0
  %319 = vmatpush1.bf16.msra.mxu0 %v294
  %320 = vmatprep.subr.bf16.mxu0 0
  %321 = vmatpush1.bf16.msra.mxu0 %v293
  %322 = vmatprep.subr.bf16.mxu0 0
  %323 = vmatpush1.bf16.msra.mxu0 %v292
  %324 = vmatprep.subr.bf16.mxu0 0
  %325 = vmatpush2.bf16.msra.mxu0 0
  %326 = vmatprep.subr.bf16.mxu0 0
  %327 = vmatpush2.bf16.msra.mxu0 0
  %328 = vmatprep.subr.bf16.mxu0 0
  %329 = vmatpush2.bf16.msra.mxu0 0
  %330 = vmatprep.subr.bf16.mxu0 0
  %331 = vmatpush2.bf16.msra.mxu0 0
  %332 = vmatprep.subr.bf16.mxu0 0
  %333 = vmatpush2.bf16.msra.mxu0 0
  %334 = vmatprep.subr.bf16.mxu0 0
  %335 = vmatpush2.bf16.msra.mxu0 0
  %336 = vmatprep.subr.bf16.mxu0 0
  %337 = vmatpush2.bf16.msra.mxu0 0
  %338 = vmatprep.subr.bf16.mxu0 0
  %339 = vmatpush2.bf16.msra.mxu0 0
  %340 = vmatprep.mubr.bf16.mxu0 0
  %341 = vmatmul.mubr.bf16.gmra.mxu0 %v202
  %v342 = vpop.f32.mrf.mxu0
  %v343 = vadd.f32 0.0, %v342
  %v344 = vpop.f32.mrf.mxu0
  %v345 = vpop.f32.mrf.mxu0
  %v346 = vadd.f32 0.0, %v345
  %v347 = vpop.f32.mrf.mxu0
  %348 = vmatprep.mubr.bf16.mxu0 0
  %349 = vmatmul.mubr.bf16.gmra.mxu0 %v203
  %v350 = vpop.f32.mrf.mxu0
  %v351 = vadd.f32 0.0, %v350
  %v352 = vpop.f32.mrf.mxu0
  %v353 = vpop.f32.mrf.mxu0
  %v354 = vadd.f32 0.0, %v353
  %v355 = vpop.f32.mrf.mxu0
  %356 = vmatprep.mubr.bf16.mxu0 0
  %357 = vmatmul.mubr.bf16.gmra.mxu0 %v204
  %v358 = vpop.f32.mrf.mxu0
  %v359 = vadd.f32 0.0, %v358
  %v360 = vpop.f32.mrf.mxu0
  %v361 = vpop.f32.mrf.mxu0
  %v362 = vadd.f32 0.0, %v361
  %v363 = vpop.f32.mrf.mxu0
  %364 = vmatprep.mubr.bf16.mxu0 0
  %365 = vmatmul.mubr.bf16.gmra.mxu0 %v205
  %v366 = vpop.f32.mrf.mxu0
  %v367 = vadd.f32 0.0, %v366
  %v368 = vpop.f32.mrf.mxu0
  %v369 = vpop.f32.mrf.mxu0
  %v370 = vadd.f32 0.0, %v369
  %v371 = vpop.f32.mrf.mxu0
  %372 = vmatprep.mubr.bf16.mxu0 0
  %373 = vmatmul.mubr.bf16.gmra.mxu0 %v206
  %v374 = vpop.f32.mrf.mxu0
  %v375 = vadd.f32 0.0, %v374
  %v376 = vpop.f32.mrf.mxu0
  %v377 = vpop.f32.mrf.mxu0
  %v378 = vadd.f32 0.0, %v377
  %v379 = vpop.f32.mrf.mxu0
  %380 = vmatprep.mubr.bf16.mxu0 0
  %381 = vmatmul.mubr.bf16.gmra.mxu0 %v207
  %v382 = vpop.f32.mrf.mxu0
  %v383 = vadd.f32 0.0, %v382
  %v384 = vpop.f32.mrf.mxu0
  %v385 = vpop.f32.mrf.mxu0
  %v386 = vadd.f32 0.0, %v385
  %v387 = vpop.f32.mrf.mxu0
  %388 = vmatprep.mubr.bf16.mxu0 0
  %389 = vmatmul.mubr.bf16.gmra.mxu0 %v208
  %v390 = vpop.f32.mrf.mxu0
  %v391 = vadd.f32 0.0, %v390
  %v392 = vpop.f32.mrf.mxu0
  %v393 = vpop.f32.mrf.mxu0
  %v394 = vadd.f32 0.0, %v393
  %v395 = vpop.f32.mrf.mxu0
  %396 = vmatprep.mubr.bf16.mxu0 0
  %397 = vmatmul.mubr.bf16.gmra.mxu0 %v209
  %v398 = vpop.f32.mrf.mxu0
  %v399 = vadd.f32 0.0, %v398
  %v400 = vpop.f32.mrf.mxu0
  %v401 = vpop.f32.mrf.mxu0
  %v402 = vadd.f32 0.0, %v401
  %v403 = vpop.f32.mrf.mxu0
  %404 = vmatprep.mubr.bf16.mxu0 0
  %405 = vmatmul.mubr.bf16.gmra.mxu0 %v210
  %v406 = vpop.f32.mrf.mxu0
  %v407 = vadd.f32 0.0, %v406
  %v408 = vpop.f32.mrf.mxu0
  %v409 = vpop.f32.mrf.mxu0
  %v410 = vadd.f32 0.0, %v409
  %v411 = vpop.f32.mrf.mxu0
  %412 = vmatprep.mubr.bf16.mxu0 0
  %413 = vmatmul.mubr.bf16.gmra.mxu0 %v211
  %v414 = vpop.f32.mrf.mxu0
  %v415 = vadd.f32 0.0, %v414
  %v416 = vpop.f32.mrf.mxu0
  %v417 = vpop.f32.mrf.mxu0
  %v418 = vadd.f32 0.0, %v417
  %v419 = vpop.f32.mrf.mxu0
  %420 = vmatprep.mubr.bf16.mxu0 0
  %421 = vmatmul.mubr.bf16.gmra.mxu0 %v212
  %v422 = vpop.f32.mrf.mxu0
  %v423 = vadd.f32 0.0, %v422
  %v424 = vpop.f32.mrf.mxu0
  %v425 = vpop.f32.mrf.mxu0
  %v426 = vadd.f32 0.0, %v425
  %v427 = vpop.f32.mrf.mxu0
  %428 = vmatprep.mubr.bf16.mxu0 0
  %429 = vmatmul.mubr.bf16.gmra.mxu0 %v213
  %v430 = vpop.f32.mrf.mxu0
  %v431 = vadd.f32 0.0, %v430
  %v432 = vpop.f32.mrf.mxu0
  %v433 = vpop.f32.mrf.mxu0
  %v434 = vadd.f32 0.0, %v433
  %v435 = vpop.f32.mrf.mxu0
  %436 = vmatprep.mubr.bf16.mxu0 0
  %437 = vmatmul.mubr.bf16.gmra.mxu0 %v214
  %v438 = vpop.f32.mrf.mxu0
  %v439 = vadd.f32 0.0, %v438
  %v440 = vpop.f32.mrf.mxu0
  %v441 = vpop.f32.mrf.mxu0
  %v442 = vadd.f32 0.0, %v441
  %v443 = vpop.f32.mrf.mxu0
  %444 = vmatprep.mubr.bf16.mxu0 0
  %445 = vmatmul.mubr.bf16.gmra.mxu0 %v215
  %v446 = vpop.f32.mrf.mxu0
  %v447 = vadd.f32 0.0, %v446
  %v448 = vpop.f32.mrf.mxu0
  %v449 = vpop.f32.mrf.mxu0
  %v450 = vadd.f32 0.0, %v449
  %v451 = vpop.f32.mrf.mxu0
  %452 = vmatprep.mubr.bf16.mxu0 0
  %453 = vmatmul.mubr.bf16.gmra.mxu0 %v216
  %v454 = vpop.f32.mrf.mxu0
  %v455 = vadd.f32 0.0, %v454
  %v456 = vpop.f32.mrf.mxu0
  %v457 = vpop.f32.mrf.mxu0
  %v458 = vadd.f32 0.0, %v457
  %v459 = vpop.f32.mrf.mxu0
  %460 = vmatprep.mubr.bf16.mxu0 0
  %461 = vmatmul.mubr.bf16.gmra.mxu0 %v217
  %v462 = vpop.f32.mrf.mxu0
  %v463 = vadd.f32 0.0, %v462
  %v464 = vpop.f32.mrf.mxu0
  %v465 = vpop.f32.mrf.mxu0
  %v466 = vadd.f32 0.0, %v465
  %v467 = vpop.f32.mrf.mxu0
  %468 = vmatprep.mubr.bf16.mxu0 0
  %469 = vmatmul.mubr.bf16.gmra.mxu0 %v218
  %v470 = vpop.f32.mrf.mxu0
  %v471 = vadd.f32 0.0, %v470
  %v472 = vpop.f32.mrf.mxu0
  %v473 = vpop.f32.mrf.mxu0
  %v474 = vadd.f32 0.0, %v473
  %v475 = vpop.f32.mrf.mxu0
  %476 = vmatprep.mubr.bf16.mxu0 0
  %477 = vmatmul.mubr.bf16.gmra.mxu0 %v219
  %v478 = vpop.f32.mrf.mxu0
  %v479 = vadd.f32 0.0, %v478
  %v480 = vpop.f32.mrf.mxu0
  %v481 = vpop.f32.mrf.mxu0
  %v482 = vadd.f32 0.0, %v481
  %v483 = vpop.f32.mrf.mxu0
  %484 = vmatprep.mubr.bf16.mxu0 0
  %485 = vmatmul.mubr.bf16.gmra.mxu0 %v220
  %v486 = vpop.f32.mrf.mxu0
  %v487 = vadd.f32 0.0, %v486
  %v488 = vpop.f32.mrf.mxu0
  %v489 = vpop.f32.mrf.mxu0
  %v490 = vadd.f32 0.0, %v489
  %v491 = vpop.f32.mrf.mxu0
  %492 = vmatprep.mubr.bf16.mxu0 0
  %493 = vmatmul.mubr.bf16.gmra.mxu0 %v221
  %v494 = vpop.f32.mrf.mxu0
  %v495 = vadd.f32 0.0, %v494
  %v496 = vpop.f32.mrf.mxu0
  %v497 = vpop.f32.mrf.mxu0
  %v498 = vadd.f32 0.0, %v497
  %v499 = vpop.f32.mrf.mxu0
  %500 = vmatprep.mubr.bf16.mxu0 0
  %501 = vmatmul.mubr.bf16.gmra.mxu0 %v222
  %v502 = vpop.f32.mrf.mxu0
  %v503 = vadd.f32 0.0, %v502
  %v504 = vpop.f32.mrf.mxu0
  %v505 = vpop.f32.mrf.mxu0
  %v506 = vadd.f32 0.0, %v505
  %v507 = vpop.f32.mrf.mxu0
  %508 = vmatprep.mubr.bf16.mxu0 0
  %509 = vmatmul.mubr.bf16.gmra.mxu0 %v223
  %v510 = vpop.f32.mrf.mxu0
  %v511 = vadd.f32 0.0, %v510
  %v512 = vpop.f32.mrf.mxu0
  %v513 = vpop.f32.mrf.mxu0
  %v514 = vadd.f32 0.0, %v513
  %v515 = vpop.f32.mrf.mxu0
  %516 = vmatprep.mubr.bf16.mxu0 0
  %517 = vmatmul.mubr.bf16.gmra.mxu0 %v224
  %v518 = vpop.f32.mrf.mxu0
  %v519 = vadd.f32 0.0, %v518
  %v520 = vpop.f32.mrf.mxu0
  %v521 = vpop.f32.mrf.mxu0
  %v522 = vadd.f32 0.0, %v521
  %v523 = vpop.f32.mrf.mxu0
  %524 = vmatprep.mubr.bf16.mxu0 0
  %525 = vmatmul.mubr.bf16.gmra.mxu0 %v225
  %v526 = vpop.f32.mrf.mxu0
  %v527 = vadd.f32 0.0, %v526
  %v528 = vpop.f32.mrf.mxu0
  %v529 = vpop.f32.mrf.mxu0
  %v530 = vadd.f32 0.0, %v529
  %v531 = vpop.f32.mrf.mxu0
  %532 = vmatprep.mubr.bf16.mxu0 0
  %533 = vmatmul.mubr.bf16.gmra.mxu0 %v226
  %v534 = vpop.f32.mrf.mxu0
  %v535 = vadd.f32 0.0, %v534
  %v536 = vpop.f32.mrf.mxu0
  %v537 = vpop.f32.mrf.mxu0
  %v538 = vadd.f32 0.0, %v537
  %v539 = vpop.f32.mrf.mxu0
  %540 = vmatprep.mubr.bf16.mxu0 0
  %541 = vmatmul.mubr.bf16.gmra.mxu0 %v227
  %v542 = vpop.f32.mrf.mxu0
  %v543 = vadd.f32 0.0, %v542
  %v544 = vpop.f32.mrf.mxu0
  %v545 = vpop.f32.mrf.mxu0
  %v546 = vadd.f32 0.0, %v545
  %v547 = vpop.f32.mrf.mxu0
  %548 = vmatprep.mubr.bf16.mxu0 0
  %549 = vmatmul.mubr.bf16.gmra.mxu0 %v228
  %v550 = vpop.f32.mrf.mxu0
  %v551 = vadd.f32 0.0, %v550
  %v552 = vpop.f32.mrf.mxu0
  %v553 = vpop.f32.mrf.mxu0
  %v554 = vadd.f32 0.0, %v553
  %v555 = vpop.f32.mrf.mxu0
  %556 = vmatprep.mubr.bf16.mxu0 0
  %557 = vmatmul.mubr.bf16.gmra.mxu0 %v229
  %v558 = vpop.f32.mrf.mxu0
  %v559 = vadd.f32 0.0, %v558
  %v560 = vpop.f32.mrf.mxu0
  %v561 = vpop.f32.mrf.mxu0
  %v562 = vadd.f32 0.0, %v561
  %v563 = vpop.f32.mrf.mxu0
  %564 = vmatprep.mubr.bf16.mxu0 0
  %565 = vmatmul.mubr.bf16.gmra.mxu0 %v230
  %v566 = vpop.f32.mrf.mxu0
  %v567 = vadd.f32 0.0, %v566
  %v568 = vpop.f32.mrf.mxu0
  %v569 = vpop.f32.mrf.mxu0
  %v570 = vpop.f32.mrf.mxu0
  %571 = vdwg.mxu0
  %v572 = vpack.c.bf16 %v346, %v343
  %v573 = vpack.c.bf16 %v354, %v351
  %v574 = vpack.c.bf16 %v362, %v359
  %v575 = vpack.c.bf16 %v370, %v367
  %v576 = vpack.c.bf16 %v378, %v375
  %v577 = vpack.c.bf16 %v386, %v383
  %v578 = vpack.c.bf16 %v394, %v391
  %v579 = vpack.c.bf16 %v402, %v399
  %v580 = vpack.c.bf16 %v410, %v407
  %v581 = vpack.c.bf16 %v418, %v415
  %v582 = vpack.c.bf16 %v426, %v423
  %v583 = vpack.c.bf16 %v434, %v431
  %v584 = vpack.c.bf16 %v442, %v439
  %v585 = vpack.c.bf16 %v450, %v447
  %v586 = vpack.c.bf16 %v458, %v455
  %v587 = vpack.c.bf16 %v466, %v463
  %v588 = vpack.c.bf16 %v474, %v471
  %v589 = vpack.c.bf16 %v482, %v479
  %v590 = vpack.c.bf16 %v490, %v487
  %v591 = vpack.c.bf16 %v498, %v495
  %v592 = vpack.c.bf16 %v506, %v503
  %v593 = vpack.c.bf16 %v514, %v511
  %v594 = vpack.c.bf16 %v522, %v519
  %v595 = vpack.c.bf16 %v530, %v527
  %v596 = vpack.c.bf16 %v538, %v535
  %v597 = vpack.c.bf16 %v546, %v543
  %v598 = vpack.c.bf16 %v554, %v551
  %v599 = vpack.c.bf16 %v562, %v559
  %v600 = vpack.c.bf16 %v567, %v567
  %v630 = vunpack.c.l.b16 %v572
  %v631 = vunpack.c.h.b16 %v572
  %v632 = vunpack.c.l.b16 %v573
  %v633 = vunpack.c.h.b16 %v573
  %v634 = vunpack.c.l.b16 %v574
  %v635 = vunpack.c.h.b16 %v574
  %v636 = vunpack.c.l.b16 %v575
  %v637 = vunpack.c.h.b16 %v575
  %v638 = vunpack.c.l.b16 %v576
  %v639 = vunpack.c.h.b16 %v576
  %v640 = vunpack.c.l.b16 %v577
  %v641 = vunpack.c.h.b16 %v577
  %v642 = vunpack.c.l.b16 %v578
  %v643 = vunpack.c.h.b16 %v578
  %v644 = vunpack.c.l.b16 %v579
  %v645 = vunpack.c.h.b16 %v579
  %v646 = vunpack.c.l.b16 %v580
  %v647 = vunpack.c.h.b16 %v580
  %v648 = vunpack.c.l.b16 %v581
  %v649 = vunpack.c.h.b16 %v581
  %v650 = vunpack.c.l.b16 %v582
  %v651 = vunpack.c.h.b16 %v582
  %v652 = vunpack.c.l.b16 %v583
  %v653 = vunpack.c.h.b16 %v583
  %v654 = vunpack.c.l.b16 %v584
  %v655 = vunpack.c.h.b16 %v584
  %v656 = vunpack.c.l.b16 %v585
  %v657 = vunpack.c.h.b16 %v585
  %v658 = vunpack.c.l.b16 %v586
  %v659 = vunpack.c.h.b16 %v586
  %v660 = vunpack.c.l.b16 %v587
  %v661 = vunpack.c.h.b16 %v587
  %v662 = vunpack.c.l.b16 %v588
  %v663 = vunpack.c.h.b16 %v588
  %v664 = vunpack.c.l.b16 %v589
  %v665 = vunpack.c.h.b16 %v589
  %v666 = vunpack.c.l.b16 %v590
  %v667 = vunpack.c.h.b16 %v590
  %v668 = vunpack.c.l.b16 %v591
  %v669 = vunpack.c.h.b16 %v591
  %v670 = vunpack.c.l.b16 %v592
  %v671 = vunpack.c.h.b16 %v592
  %v672 = vunpack.c.l.b16 %v593
  %v673 = vunpack.c.h.b16 %v593
  %v674 = vunpack.c.l.b16 %v594
  %v675 = vunpack.c.h.b16 %v594
  %v676 = vunpack.c.l.b16 %v595
  %v677 = vunpack.c.h.b16 %v595
  %v678 = vunpack.c.l.b16 %v596
  %v679 = vunpack.c.h.b16 %v596
  %v680 = vunpack.c.l.b16 %v597
  %v681 = vunpack.c.h.b16 %v597
  %v682 = vunpack.c.l.b16 %v598
  %v683 = vunpack.c.h.b16 %v598
  %v684 = vunpack.c.l.b16 %v599
  %v685 = vunpack.c.h.b16 %v599
  %v686 = vunpack.c.l.b16 %v600
  %v687 = vpack.c.b16 %v630, %v630
  %v688 = vpack.c.b16 %v631, %v631
  %v689 = vpack.c.b16 %v632, %v632
  %v690 = vpack.c.b16 %v633, %v633
  %v691 = vpack.c.b16 %v634, %v634
  %v692 = vpack.c.b16 %v635, %v635
  %v693 = vpack.c.b16 %v636, %v636
  %v694 = vpack.c.b16 %v637, %v637
  %v695 = vpack.c.b16 %v638, %v638
  %v696 = vpack.c.b16 %v639, %v639
  %v697 = vpack.c.b16 %v640, %v640
  %v698 = vpack.c.b16 %v641, %v641
  %v699 = vpack.c.b16 %v642, %v642
  %v700 = vpack.c.b16 %v643, %v643
  %v701 = vpack.c.b16 %v644, %v644
  %v702 = vpack.c.b16 %v645, %v645
  %v703 = vpack.c.b16 %v646, %v646
  %v704 = vpack.c.b16 %v647, %v647
  %v705 = vpack.c.b16 %v648, %v648
  %v706 = vpack.c.b16 %v649, %v649
  %v707 = vpack.c.b16 %v650, %v650
  %v708 = vpack.c.b16 %v651, %v651
  %v709 = vpack.c.b16 %v652, %v652
  %v710 = vpack.c.b16 %v653, %v653
  %v711 = vpack.c.b16 %v654, %v654
  %v712 = vpack.c.b16 %v655, %v655
  %v713 = vpack.c.b16 %v656, %v656
  %v714 = vpack.c.b16 %v657, %v657
  %v715 = vpack.c.b16 %v658, %v658
  %v716 = vpack.c.b16 %v659, %v659
  %v717 = vpack.c.b16 %v660, %v660
  %v718 = vpack.c.b16 %v661, %v661
  %v719 = vpack.c.b16 %v662, %v662
  %v720 = vpack.c.b16 %v663, %v663
  %v721 = vpack.c.b16 %v664, %v664
  %v722 = vpack.c.b16 %v665, %v665
  %v723 = vpack.c.b16 %v666, %v666
  %v724 = vpack.c.b16 %v667, %v667
  %v725 = vpack.c.b16 %v668, %v668
  %v726 = vpack.c.b16 %v669, %v669
  %v727 = vpack.c.b16 %v670, %v670
  %v728 = vpack.c.b16 %v671, %v671
  %v729 = vpack.c.b16 %v672, %v672
  %v730 = vpack.c.b16 %v673, %v673
  %v731 = vpack.c.b16 %v674, %v674
  %v732 = vpack.c.b16 %v675, %v675
  %v733 = vpack.c.b16 %v676, %v676
  %v734 = vpack.c.b16 %v677, %v677
  %v735 = vpack.c.b16 %v678, %v678
  %v736 = vpack.c.b16 %v679, %v679
  %v737 = vpack.c.b16 %v680, %v680
  %v738 = vpack.c.b16 %v681, %v681
  %v739 = vpack.c.b16 %v682, %v682
  %v740 = vpack.c.b16 %v683, %v683
  %v741 = vpack.c.b16 %v684, %v684
  %v742 = vpack.c.b16 %v685, %v685
  %v743 = vpack.c.b16 %v686, %v686
  %801 = vst [vmem:[%s2] sm:$0xf] %v687
  %802 = vst [vmem:[%s2 + $0x4] sm:$0xf] %v688
  %803 = vst [vmem:[%s2 + $0x8] sm:$0xf] %v689
  %804 = vst [vmem:[%s2 + $0xc] sm:$0xf] %v690
  %805 = vst [vmem:[%s2 + $0x10] sm:$0xf] %v691
  %806 = vst [vmem:[%s2 + $0x14] sm:$0xf] %v692
  %807 = vst [vmem:[%s2 + $0x18] sm:$0xf] %v693
  %808 = vst [vmem:[%s2 + $0x1c] sm:$0xf] %v694
  %809 = vst [vmem:[%s2 + $0x20] sm:$0xf] %v695
  %810 = vst [vmem:[%s2 + $0x24] sm:$0xf] %v696
  %811 = vst [vmem:[%s2 + $0x28] sm:$0xf] %v697
  %812 = vst [vmem:[%s2 + $0x2c] sm:$0xf] %v698
  %813 = vst [vmem:[%s2 + $0x30] sm:$0xf] %v699
  %814 = vst [vmem:[%s2 + $0x34] sm:$0xf] %v700
  %815 = vst [vmem:[%s2 + $0x38] sm:$0xf] %v701
  %816 = vst [vmem:[%s2 + $0x3c] sm:$0xf] %v702
  %817 = vst [vmem:[%s2 + $0x40] sm:$0xf] %v703
  %818 = vst [vmem:[%s2 + $0x44] sm:$0xf] %v704
  %819 = vst [vmem:[%s2 + $0x48] sm:$0xf] %v705
  %820 = vst [vmem:[%s2 + $0x4c] sm:$0xf] %v706
  %821 = vst [vmem:[%s2 + $0x50] sm:$0xf] %v707
  %822 = vst [vmem:[%s2 + $0x54] sm:$0xf] %v708
  %823 = vst [vmem:[%s2 + $0x58] sm:$0xf] %v709
  %824 = vst [vmem:[%s2 + $0x5c] sm:$0xf] %v710
  %825 = vst [vmem:[%s2 + $0x60] sm:$0xf] %v711
  %826 = vst [vmem:[%s2 + $0x64] sm:$0xf] %v712
  %827 = vst [vmem:[%s2 + $0x68] sm:$0xf] %v713
  %828 = vst [vmem:[%s2 + $0x6c] sm:$0xf] %v714
  %829 = vst [vmem:[%s2 + $0x70] sm:$0xf] %v715
  %830 = vst [vmem:[%s2 + $0x74] sm:$0xf] %v716
  %831 = vst [vmem:[%s2 + $0x78] sm:$0xf] %v717
  %832 = vst [vmem:[%s2 + $0x7c] sm:$0xf] %v718
  %833 = vst [vmem:[%s2 + $0x80] sm:$0xf] %v719
  %834 = vst [vmem:[%s2 + $0x84] sm:$0xf] %v720
  %835 = vst [vmem:[%s2 + $0x88] sm:$0xf] %v721
  %836 = vst [vmem:[%s2 + $0x8c] sm:$0xf] %v722
  %837 = vst [vmem:[%s2 + $0x90] sm:$0xf] %v723
  %838 = vst [vmem:[%s2 + $0x94] sm:$0xf] %v724
  %839 = vst [vmem:[%s2 + $0x98] sm:$0xf] %v725
  %840 = vst [vmem:[%s2 + $0x9c] sm:$0xf] %v726
  %841 = vst [vmem:[%s2 + $0xa0] sm:$0xf] %v727
  %842 = vst [vmem:[%s2 + $0xa4] sm:$0xf] %v728
  %843 = vst [vmem:[%s2 + $0xa8] sm:$0xf] %v729
  %844 = vst [vmem:[%s2 + $0xac] sm:$0xf] %v730
  %845 = vst [vmem:[%s2 + $0xb0] sm:$0xf] %v731
  %846 = vst [vmem:[%s2 + $0xb4] sm:$0xf] %v732
  %847 = vst [vmem:[%s2 + $0xb8] sm:$0xf] %v733
  %848 = vst [vmem:[%s2 + $0xbc] sm:$0xf] %v734
  %849 = vst [vmem:[%s2 + $0xc0] sm:$0xf] %v735
  %850 = vst [vmem:[%s2 + $0xc4] sm:$0xf] %v736
  %851 = vst [vmem:[%s2 + $0xc8] sm:$0xf] %v737
  %852 = vst [vmem:[%s2 + $0xcc] sm:$0xf] %v738
  %853 = vst [vmem:[%s2 + $0xd0] sm:$0xf] %v739
  %854 = vst [vmem:[%s2 + $0xd4] sm:$0xf] %v740
  %855 = vst [vmem:[%s2 + $0xd8] sm:$0xf] %v741
  %856 = vst [vmem:[%s2 + $0xdc] sm:$0xf] %v742
  %857 = vst [vmem:[%s2 + $0xe0] sm:$0x1] %v743
  %v858 = vunpack.c.l.bf16 %v572
  %v859 = vunpack.c.h.bf16 %v572
  %v860 = vunpack.c.l.bf16 %v573
  %v861 = vunpack.c.h.bf16 %v573
  %v862 = vunpack.c.l.bf16 %v574
  %v863 = vunpack.c.h.bf16 %v574
  %v864 = vunpack.c.l.bf16 %v575
  %v865 = vunpack.c.h.bf16 %v575
  %v866 = vunpack.c.l.bf16 %v576
  %v867 = vunpack.c.h.bf16 %v576
  %v868 = vunpack.c.l.bf16 %v577
  %v869 = vunpack.c.h.bf16 %v577
  %v870 = vunpack.c.l.bf16 %v578
  %v871 = vunpack.c.h.bf16 %v578
  %v872 = vunpack.c.l.bf16 %v579
  %v873 = vunpack.c.h.bf16 %v579
  %v874 = vunpack.c.l.bf16 %v580
  %v875 = vunpack.c.h.bf16 %v580
  %v876 = vunpack.c.l.bf16 %v581
  %v877 = vunpack.c.h.bf16 %v581
  %v878 = vunpack.c.l.bf16 %v582
  %v879 = vunpack.c.h.bf16 %v582
  %v880 = vunpack.c.l.bf16 %v583
  %v881 = vunpack.c.h.bf16 %v583
  %v882 = vunpack.c.l.bf16 %v584
  %v883 = vunpack.c.h.bf16 %v584
  %v884 = vunpack.c.l.bf16 %v585
  %v885 = vunpack.c.h.bf16 %v585
  %v886 = vunpack.c.l.bf16 %v586
  %v887 = vunpack.c.h.bf16 %v586
  %v888 = vunpack.c.l.bf16 %v587
  %v889 = vunpack.c.h.bf16 %v587
  %v890 = vunpack.c.l.bf16 %v588
  %v891 = vunpack.c.h.bf16 %v588
  %v892 = vunpack.c.l.bf16 %v589
  %v893 = vunpack.c.h.bf16 %v589
  %v894 = vunpack.c.l.bf16 %v590
  %v895 = vunpack.c.h.bf16 %v590
  %v896 = vunpack.c.l.bf16 %v591
  %v897 = vunpack.c.h.bf16 %v591
  %v898 = vunpack.c.l.bf16 %v592
  %v899 = vunpack.c.h.bf16 %v592
  %v900 = vunpack.c.l.bf16 %v593
  %v901 = vunpack.c.h.bf16 %v593
  %v902 = vunpack.c.l.bf16 %v594
  %v903 = vunpack.c.h.bf16 %v594
  %v904 = vunpack.c.l.bf16 %v595
  %v905 = vunpack.c.h.bf16 %v595
  %v906 = vunpack.c.l.bf16 %v596
  %v907 = vunpack.c.h.bf16 %v596
  %v908 = vunpack.c.l.bf16 %v597
  %v909 = vunpack.c.h.bf16 %v597
  %v910 = vunpack.c.l.bf16 %v598
  %v911 = vunpack.c.h.bf16 %v598
  %v912 = vunpack.c.l.bf16 %v599
  %v913 = vunpack.c.h.bf16 %v599
  %v914 = vunpack.c.l.bf16 %v600
  %v915 = vadd.f32 %v858, %v859
  %v916 = vadd.f32 %v915, %v860
  %v917 = vadd.f32 %v916, %v861
  %v918 = vadd.f32 %v917, %v862
  %v919 = vadd.f32 %v918, %v863
  %v920 = vadd.f32 %v919, %v864
  %v921 = vadd.f32 %v920, %v865
  %v922 = vadd.f32 %v921, %v866
  %v923 = vadd.f32 %v922, %v867
  %v924 = vadd.f32 %v923, %v868
  %v925 = vadd.f32 %v924, %v869
  %v926 = vadd.f32 %v925, %v870
  %v927 = vadd.f32 %v926, %v871
  %v928 = vadd.f32 %v927, %v872
  %v929 = vadd.f32 %v928, %v873
  %v930 = vadd.f32 %v929, %v874
  %v931 = vadd.f32 %v930, %v875
  %v932 = vadd.f32 %v931, %v876
  %v933 = vadd.f32 %v932, %v877
  %v934 = vadd.f32 %v933, %v878
  %v935 = vadd.f32 %v934, %v879
  %v936 = vadd.f32 %v935, %v880
  %v937 = vadd.f32 %v936, %v881
  %v938 = vadd.f32 %v937, %v882
  %v939 = vadd.f32 %v938, %v883
  %v940 = vadd.f32 %v939, %v884
  %v941 = vadd.f32 %v940, %v885
  %v942 = vadd.f32 %v941, %v886
  %v943 = vadd.f32 %v942, %v887
  %v944 = vadd.f32 %v943, %v888
  %v945 = vadd.f32 %v944, %v889
  %v946 = vadd.f32 %v945, %v890
  %v947 = vadd.f32 %v946, %v891
  %v948 = vadd.f32 %v947, %v892
  %v949 = vadd.f32 %v948, %v893
  %v950 = vadd.f32 %v949, %v894
  %v951 = vadd.f32 %v950, %v895
  %v952 = vadd.f32 %v951, %v896
  %v953 = vadd.f32 %v952, %v897
  %v954 = vadd.f32 %v953, %v898
  %v955 = vadd.f32 %v954, %v899
  %v956 = vadd.f32 %v955, %v900
  %v957 = vadd.f32 %v956, %v901
  %v958 = vadd.f32 %v957, %v902
  %v959 = vadd.f32 %v958, %v903
  %v960 = vadd.f32 %v959, %v904
  %v961 = vadd.f32 %v960, %v905
  %v962 = vadd.f32 %v961, %v906
  %v963 = vadd.f32 %v962, %v907
  %v964 = vadd.f32 %v963, %v908
  %v965 = vadd.f32 %v964, %v909
  %v966 = vadd.f32 %v965, %v910
  %v967 = vadd.f32 %v966, %v911
  %v968 = vadd.f32 %v967, %v912
  %v969 = vadd.f32 %v968, %v913
  %vm970 = vcmask 1041408
  %v971 = vsel %vm970, %v914, 0.0
  %v972 = vadd.f32 %v969, %v971
  %v973 = vrot.slane %v972, 4
  %v974 = vadd.f32 %v972, %v973
  %v975 = vrot.slane %v974, 2
  %v976 = vadd.f32 %v974, %v975
  %v977 = vrot.slane %v976, 1
  %v978 = vadd.f32 %v976, %v977
  %979 = vst [vmem:[%s3] sm:$0x1] %v978
  %v980 = vmul.f32 %v858, %v858
  %v981 = vmul.f32 %v859, %v859
  %v982 = vmul.f32 %v860, %v860
  %v983 = vmul.f32 %v861, %v861
  %v984 = vmul.f32 %v862, %v862
  %v985 = vmul.f32 %v863, %v863
  %v986 = vmul.f32 %v864, %v864
  %v987 = vmul.f32 %v865, %v865
  %v988 = vmul.f32 %v866, %v866
  %v989 = vmul.f32 %v867, %v867
  %v990 = vmul.f32 %v868, %v868
  %v991 = vmul.f32 %v869, %v869
  %v992 = vmul.f32 %v870, %v870
  %v993 = vmul.f32 %v871, %v871
  %v994 = vmul.f32 %v872, %v872
  %v995 = vmul.f32 %v873, %v873
  %v996 = vmul.f32 %v874, %v874
  %v997 = vmul.f32 %v875, %v875
  %v998 = vmul.f32 %v876, %v876
  %v999 = vmul.f32 %v877, %v877
  %v1000 = vmul.f32 %v878, %v878
  %v1001 = vmul.f32 %v879, %v879
  %v1002 = vmul.f32 %v880, %v880
  %v1003 = vmul.f32 %v881, %v881
  %v1004 = vmul.f32 %v882, %v882
  %v1005 = vmul.f32 %v883, %v883
  %v1006 = vmul.f32 %v884, %v884
  %v1007 = vmul.f32 %v885, %v885
  %v1008 = vmul.f32 %v886, %v886
  %v1009 = vmul.f32 %v887, %v887
  %v1010 = vmul.f32 %v888, %v888
  %v1011 = vmul.f32 %v889, %v889
  %v1012 = vmul.f32 %v890, %v890
  %v1013 = vmul.f32 %v891, %v891
  %v1014 = vmul.f32 %v892, %v892
  %v1015 = vmul.f32 %v893, %v893
  %v1016 = vmul.f32 %v894, %v894
  %v1017 = vmul.f32 %v895, %v895
  %v1018 = vmul.f32 %v896, %v896
  %v1019 = vmul.f32 %v897, %v897
  %v1020 = vmul.f32 %v898, %v898
  %v1021 = vmul.f32 %v899, %v899
  %v1022 = vmul.f32 %v900, %v900
  %v1023 = vmul.f32 %v901, %v901
  %v1024 = vmul.f32 %v902, %v902
  %v1025 = vmul.f32 %v903, %v903
  %v1026 = vmul.f32 %v904, %v904
  %v1027 = vmul.f32 %v905, %v905
  %v1028 = vmul.f32 %v906, %v906
  %v1029 = vmul.f32 %v907, %v907
  %v1030 = vmul.f32 %v908, %v908
  %v1031 = vmul.f32 %v909, %v909
  %v1032 = vmul.f32 %v910, %v910
  %v1033 = vmul.f32 %v911, %v911
  %v1034 = vmul.f32 %v912, %v912
  %v1035 = vmul.f32 %v913, %v913
  %v1036 = vmul.f32 %v914, %v914
  %v1037 = vadd.f32 %v980, %v981
  %v1038 = vadd.f32 %v1037, %v982
  %v1039 = vadd.f32 %v1038, %v983
  %v1040 = vadd.f32 %v1039, %v984
  %v1041 = vadd.f32 %v1040, %v985
  %v1042 = vadd.f32 %v1041, %v986
  %v1043 = vadd.f32 %v1042, %v987
  %v1044 = vadd.f32 %v1043, %v988
  %v1045 = vadd.f32 %v1044, %v989
  %v1046 = vadd.f32 %v1045, %v990
  %v1047 = vadd.f32 %v1046, %v991
  %v1048 = vadd.f32 %v1047, %v992
  %v1049 = vadd.f32 %v1048, %v993
  %v1050 = vadd.f32 %v1049, %v994
  %v1051 = vadd.f32 %v1050, %v995
  %v1052 = vadd.f32 %v1051, %v996
  %v1053 = vadd.f32 %v1052, %v997
  %v1054 = vadd.f32 %v1053, %v998
  %v1055 = vadd.f32 %v1054, %v999
  %v1056 = vadd.f32 %v1055, %v1000
  %v1057 = vadd.f32 %v1056, %v1001
  %v1058 = vadd.f32 %v1057, %v1002
  %v1059 = vadd.f32 %v1058, %v1003
  %v1060 = vadd.f32 %v1059, %v1004
  %v1061 = vadd.f32 %v1060, %v1005
  %v1062 = vadd.f32 %v1061, %v1006
  %v1063 = vadd.f32 %v1062, %v1007
  %v1064 = vadd.f32 %v1063, %v1008
  %v1065 = vadd.f32 %v1064, %v1009
  %v1066 = vadd.f32 %v1065, %v1010
  %v1067 = vadd.f32 %v1066, %v1011
  %v1068 = vadd.f32 %v1067, %v1012
  %v1069 = vadd.f32 %v1068, %v1013
  %v1070 = vadd.f32 %v1069, %v1014
  %v1071 = vadd.f32 %v1070, %v1015
  %v1072 = vadd.f32 %v1071, %v1016
  %v1073 = vadd.f32 %v1072, %v1017
  %v1074 = vadd.f32 %v1073, %v1018
  %v1075 = vadd.f32 %v1074, %v1019
  %v1076 = vadd.f32 %v1075, %v1020
  %v1077 = vadd.f32 %v1076, %v1021
  %v1078 = vadd.f32 %v1077, %v1022
  %v1079 = vadd.f32 %v1078, %v1023
  %v1080 = vadd.f32 %v1079, %v1024
  %v1081 = vadd.f32 %v1080, %v1025
  %v1082 = vadd.f32 %v1081, %v1026
  %v1083 = vadd.f32 %v1082, %v1027
  %v1084 = vadd.f32 %v1083, %v1028
  %v1085 = vadd.f32 %v1084, %v1029
  %v1086 = vadd.f32 %v1085, %v1030
  %v1087 = vadd.f32 %v1086, %v1031
  %v1088 = vadd.f32 %v1087, %v1032
  %v1089 = vadd.f32 %v1088, %v1033
  %v1090 = vadd.f32 %v1089, %v1034
  %v1091 = vadd.f32 %v1090, %v1035
  %v1092 = vsel %vm970, %v1036, 0.0
  %v1093 = vadd.f32 %v1091, %v1092
  %v1094 = vrot.slane %v1093, 4
  %v1095 = vadd.f32 %v1093, %v1094
  %v1096 = vrot.slane %v1095, 2
  %v1097 = vadd.f32 %v1095, %v1096
  %v1098 = vrot.slane %v1097, 1
  %v1099 = vadd.f32 %v1097, %v1098
  %1100 = vst [vmem:[%s4] sm:$0x1] %v1099
  // Predicated region
  $region10: #{descriminator_forward.6} parent=0 // pred_check
    _
  $region11: #{descriminator_forward.6} parent=0 // pred_check_branch
    %1102 = sbr.rel (0) target = $region13
  $region12: #{descriminator_forward.6} parent=0 // pred_region
    _
  $region13: #{descriminator_forward.6} parent=0 // pred_fallthru
    _
  // Predicated region
  $region14: #{descriminator_forward.6} parent=0 // pred_check
    _
  $region15: #{descriminator_forward.6} parent=0 // pred_check_branch
    %1104 = sbr.rel (0) target = $region17
  $region16: #{descriminator_forward.6} parent=0 // pred_region
    _
  $region17: #{descriminator_forward.6} parent=0 // pred_fallthru
    _
  // Predicated region
  $region18: #{descriminator_forward.6} parent=0 // pred_check
    _
  $region19: #{descriminator_forward.6} parent=0 // pred_check_branch
    %1106 = sbr.rel (0) target = $region21
  $region20: #{descriminator_forward.6} parent=0 // pred_region
    _
  $region21: #{descriminator_forward.6} parent=0 // pred_fallthru
    _
  // Predicated region
  $region22: #{descriminator_forward.6} parent=0 // pred_check
    _
  $region23: #{descriminator_forward.6} parent=0 // pred_check_branch
    %1108 = sbr.rel (0) target = $region25
  $region24: #{descriminator_forward.6} parent=0 // pred_region
    _
  $region25: #{descriminator_forward.6} parent=0 // pred_fallthru
    _
  // Predicated region
  $region26: #{descriminator_forward.6} parent=0 // pred_check
    _
  $region27: #{descriminator_forward.6} parent=0 // pred_check_branch
    %1110 = sbr.rel (0) target = $region29
  $region28: #{descriminator_forward.6} parent=0 // pred_region
    _
  $region29: #{descriminator_forward.6} parent=0 // pred_fallthru
    _
  // Predicated region
  $region30: #{descriminator_forward.6} parent=0 // pred_check
    _
  $region31: #{descriminator_forward.6} parent=0 // pred_check_branch
    %1112 = sbr.rel (0) target = $region33
  $region32: #{descriminator_forward.6} parent=0 // pred_region
    _
  $region33: #{descriminator_forward.6} parent=0 // pred_fallthru
    _

// kernel: tile.33
$region0: #{tile.33}
  #allocation0 [shape = 's32[1]{0}', space=sflag, size = 0x4, scoped, tag = 'scoped memory for tile.33']
  %s0 = inlined_call_operand.vmem [shape: f32[16], index: 0, kind: input, shape index: {}]
  %s1 = inlined_call_operand.vmem [shape: f32[16,16], index: 1, kind: output, shape index: {}]
  // Predicated region
  $region2: #{tile.33} parent=0 // pred_check
    _
  $region3: #{tile.33} parent=0 // pred_check_branch
    %3 = sbr.rel (0) target = $region5
  $region4: #{tile.33} parent=0 // pred_region
    _
  $region5: #{tile.33} parent=0 // pred_fallthru
    _
  %v4 = vld [vmem:[%s0] ss:$0 sm:$0xff]
  %5 = vst [vmem:[%s1] sm:$0xff] %v4
  %s6 = scalar_lea.vmem %s1, 8
  %7 = vst [vmem:[%s6] sm:$0xff] %v4

// kernel: tile.34
$region0: #{tile.34}
  %s0 = inlined_call_operand.vmem [shape: f32[16,16], index: 0, kind: input, shape index: {}]
  %s1 = inlined_call_operand.vmem [shape: f32[1,256], index: 1, kind: output, shape index: {}]
  $region1: #{tile.34} parent=0
    #allocation0 [shape = 'u8[8192]{0}', space=vmem, size = 0x2000, scoped, tag = 'scoped mem for output reshape']
    %s2 = smov 3
    %v3 = vld [vmem:[%s0] ss:$8 sm:%s2]
    %vm4 = vcmask 130048
    %5 = vst.msk [vmem:[#allocation0] ss:$8 sm:$0x3] %vm4, %v3
    %s6 = scalar_lea.vmem %s0, 7
    %s7 = smov 3
    %v8 = vld [vmem:[%s6] ss:$8 sm:%s7]
    %9 = vrot.lane.b32.xlu0 %v8, 112
    %v10 = vpop.permute.xlu0 %9
    %vm11 = vcmask 1048448
    %12 = vst.msk [vmem:[#allocation0] ss:$8 sm:$0x3] %vm11, %v10
    %s13 = scalar_lea.vmem %s0, 6
    %s14 = smov 3
    %v15 = vld [vmem:[%s13] ss:$8 sm:%s14]
    %16 = vrot.lane.b32.xlu0 %v15, 96
    %v17 = vpop.permute.xlu0 %16
    %vm18 = vcmask 917248
    %19 = vst.msk [vmem:[#allocation0] ss:$8 sm:$0x3] %vm18, %v17
    %s20 = scalar_lea.vmem %s0, 5
    %s21 = smov 3
    %v22 = vld [vmem:[%s20] ss:$8 sm:%s21]
    %23 = vrot.lane.b32.xlu0 %v22, 80
    %v24 = vpop.permute.xlu0 %23
    %vm25 = vcmask 786048
    %26 = vst.msk [vmem:[#allocation0] ss:$8 sm:$0x3] %vm25, %v24
    %s27 = scalar_lea.vmem %s0, 4
    %s28 = smov 3
    %v29 = vld [vmem:[%s27] ss:$8 sm:%s28]
    %30 = vrot.lane.b32.xlu0 %v29, 64
    %v31 = vpop.permute.xlu0 %30
    %vm32 = vcmask 654848
    %33 = vst.msk [vmem:[#allocation0] ss:$8 sm:$0x3] %vm32, %v31
    %s34 = scalar_lea.vmem %s0, 3
    %s35 = smov 3
    %v36 = vld [vmem:[%s34] ss:$8 sm:%s35]
    %37 = vrot.lane.b32.xlu0 %v36, 48
    %v38 = vpop.permute.xlu0 %37
    %vm39 = vcmask 523648
    %40 = vst.msk [vmem:[#allocation0] ss:$8 sm:$0x3] %vm39, %v38
    %s41 = scalar_lea.vmem %s0, 2
    %s42 = smov 3
    %v43 = vld [vmem:[%s41] ss:$8 sm:%s42]
    %44 = vrot.lane.b32.xlu0 %v43, 32
    %v45 = vpop.permute.xlu0 %44
    %vm46 = vcmask 392448
    %47 = vst.msk [vmem:[#allocation0] ss:$8 sm:$0x3] %vm46, %v45
    %s48 = scalar_lea.vmem %s0, 1
    %s49 = smov 3
    %v50 = vld [vmem:[%s48] ss:$8 sm:%s49]
    %51 = vrot.lane.b32.xlu0 %v50, 16
    %v52 = vpop.permute.xlu0 %51
    %vm53 = vcmask 261248
    %54 = vst.msk [vmem:[#allocation0] ss:$8 sm:$0x3] %vm53, %v52
    %s56 = sshll.u32 1, 1
    %s57 = ssub.s32 %s56, 1
    %v59 = vld [vmem:[#allocation0] sm:%s57]
    %s60 = sshll.u32 1, 1
    %s61 = ssub.s32 %s60, 1
    %62 = vst [vmem:[%s1] sm:%s61] %v59
    %s63 = scalar_lea.vmem [#allocation0], 8
    %v64 = vld [vmem:[%s63] sm:%s57]
    %s65 = sshll.u32 1, 1
    %s66 = ssub.s32 %s65, 1
    %s67 = scalar_lea.vmem %s1, 1
    %68 = vst [vmem:[%s67] sm:%s66] %v64

// kernel: tile.43
$region0: #{tile.43}
  #allocation0 [shape = 's32[1]{0}', space=sflag, size = 0x4, scoped, tag = 'scoped memory for tile.43']
  %s0 = inlined_call_operand.vmem [shape: f32[32], index: 0, kind: input, shape index: {}]
  %s1 = inlined_call_operand.vmem [shape: f32[16,32], index: 1, kind: output, shape index: {}]
  // Predicated region
  $region2: #{tile.43} parent=0 // pred_check
    _
  $region3: #{tile.43} parent=0 // pred_check_branch
    %3 = sbr.rel (0) target = $region5
  $region4: #{tile.43} parent=0 // pred_region
    _
  $region5: #{tile.43} parent=0 // pred_fallthru
    _
  %v4 = vld [vmem:[%s0] ss:$0 sm:$0xff]
  %5 = vst [vmem:[%s1] sm:$0xff] %v4
  %s6 = scalar_lea.vmem %s1, 8
  %7 = vst [vmem:[%s6] sm:$0xff] %v4

// kernel: tile.44
$region0: #{tile.44}
  %s0 = inlined_call_operand.vmem [shape: f32[16,32], index: 0, kind: input, shape index: {}]
  %s1 = inlined_call_operand.vmem [shape: f32[1,512], index: 1, kind: output, shape index: {}]
  $region1: #{tile.44} parent=0
    #allocation0 [shape = 'u8[16384]{0}', space=vmem, size = 0x4000, scoped, tag = 'scoped mem for output reshape']
    %v2 = vld [vmem:[%s0] ss:$4 sm:$0xf]
    %vm3 = vcmask 261120
    %4 = vst.msk [vmem:[#allocation0] ss:$8 sm:$0xf] %vm3, %v2
    %s5 = scalar_lea.vmem %s0, 3
    %v6 = vld [vmem:[%s5] ss:$4 sm:$0xf]
    %7 = vrot.lane.b32.xlu0 %v6, 96
    %v8 = vpop.permute.xlu0 %7
    %vm9 = vcmask 1048320
    %10 = vst.msk [vmem:[#allocation0] ss:$8 sm:$0xf] %vm9, %v8
    %s11 = scalar_lea.vmem %s0, 2
    %v12 = vld [vmem:[%s11] ss:$4 sm:$0xf]
    %13 = vrot.lane.b32.xlu0 %v12, 64
    %v14 = vpop.permute.xlu0 %13
    %vm15 = vcmask 785920
    %16 = vst.msk [vmem:[#allocation0] ss:$8 sm:$0xf] %vm15, %v14
    %s17 = scalar_lea.vmem %s0, 1
    %v18 = vld [vmem:[%s17] ss:$4 sm:$0xf]
    %19 = vrot.lane.b32.xlu0 %v18, 32
    %v20 = vpop.permute.xlu0 %19
    %vm21 = vcmask 523520
    %22 = vst.msk [vmem:[#allocation0] ss:$8 sm:$0xf] %vm21, %v20
    %s24 = sshll.u32 1, 1
    %s25 = ssub.s32 %s24, 1
    %v27 = vld [vmem:[#allocation0] sm:%s25]
    %s28 = sshll.u32 1, 1
    %s29 = ssub.s32 %s28, 1
    %30 = vst [vmem:[%s1] sm:%s29] %v27
    %s31 = scalar_lea.vmem [#allocation0], 8
    %v32 = vld [vmem:[%s31] sm:%s25]
    %s33 = sshll.u32 1, 1
    %s34 = ssub.s32 %s33, 1
    %s35 = scalar_lea.vmem %s1, 1
    %36 = vst [vmem:[%s35] sm:%s34] %v32
    %s37 = scalar_lea.vmem [#allocation0], 16
    %v38 = vld [vmem:[%s37] sm:%s25]
    %s39 = sshll.u32 1, 1
    %s40 = ssub.s32 %s39, 1
    %s41 = smul.addr 1, 2
    %s42 = scalar_lea.vmem %s1, %s41
    %43 = vst [vmem:[%s42] sm:%s40] %v38
    %s44 = scalar_lea.vmem [#allocation0], 24
    %v45 = vld [vmem:[%s44] sm:%s25]
    %s46 = sshll.u32 1, 1
    %s47 = ssub.s32 %s46, 1
    %s48 = smul.addr 1, 3
    %s49 = scalar_lea.vmem %s1, %s48
    %50 = vst [vmem:[%s49] sm:%s47] %v45

// kernel: descriminator_forward.7
$region0: #{descriminator_forward.7}
  #allocation0 [shape = 'u32[]', space=smem, size = 0x4, offset = 0x4, fixed_abs, tag = 'smem constant byte address 0x4 - core index']
  #allocation1 [shape = 'u32[144,128]{1,0:T(1,128)}', space=vmem, size = 0x12000, scoped, tag = 'internal scratch']
  %s0 = inlined_call_operand.vmem [shape: bf16[72,256], index: 0, kind: input, shape index: {}]
  %s1 = inlined_call_operand.vmem [shape: bf16[256,128], index: 1, kind: input, shape index: {}]
  %s2 = inlined_call_operand.vmem [shape: f32[1,256], index: 2, kind: input, shape index: {}]
  %s3 = inlined_call_operand.vmem [shape: f32[1,256], index: 3, kind: input, shape index: {}]
  %s4 = inlined_call_operand.vmem [shape: bf16[72,128], index: 4, kind: output, shape index: {0}]
  %s5 = inlined_call_operand.vmem [shape: f32[1,128], index: 5, kind: output, shape index: {1}]
  %s6 = inlined_call_operand.vmem [shape: f32[1,128], index: 6, kind: output, shape index: {2}]
  %7 = xla_tuple %s4, %s5, %s6
  %s8 = sld [smem:[#allocation0]]
  $region42: #{descriminator_forward.7} parent=0
    _
  %s10 = ssub.s32 1, %s8
  %s11 = scalar_select 0, %s10, %s8
  // Predicated region
  $region2: #{descriminator_forward.7} parent=0 // pred_check
    _
  $region3: #{descriminator_forward.7} parent=0 // pred_check_branch
    %13 = sbr.rel (0) target = $region5
  $region4: #{descriminator_forward.7} parent=0 // pred_region
    _
  $region5: #{descriminator_forward.7} parent=0 // pred_fallthru
    _
  // Predicated region
  $region6: #{descriminator_forward.7} parent=0 // pred_check
    _
  $region7: #{descriminator_forward.7} parent=0 // pred_check_branch
    %15 = sbr.rel (0) target = $region9
  $region8: #{descriminator_forward.7} parent=0 // pred_region
    _
  $region9: #{descriminator_forward.7} parent=0 // pred_fallthru
    _
  // Predicated region
  $region10: #{descriminator_forward.7} parent=0 // pred_check
    _
  $region11: #{descriminator_forward.7} parent=0 // pred_check_branch
    %17 = sbr.rel (0) target = $region13
  $region12: #{descriminator_forward.7} parent=0 // pred_region
    _
  $region13: #{descriminator_forward.7} parent=0 // pred_fallthru
    _
  // Predicated region
  $region14: #{descriminator_forward.7} parent=0 // pred_check
    _
  $region15: #{descriminator_forward.7} parent=0 // pred_check_branch
    %19 = sbr.rel (0) target = $region17
  $region16: #{descriminator_forward.7} parent=0 // pred_region
    _
  $region17: #{descriminator_forward.7} parent=0 // pred_fallthru
    _
  %v21 = vld [vmem:[%s0] sm:$0xff]
  %v22 = vld [vmem:[%s0 + $0x8] sm:$0xff]
  %v23 = vld [vmem:[%s0 + $0x10] sm:$0xff]
  %v24 = vld [vmem:[%s0 + $0x18] sm:$0xff]
  %v25 = vld [vmem:[%s0 + $0x20] sm:$0xff]
  %v26 = vld [vmem:[%s0 + $0x28] sm:$0xff]
  %v27 = vld [vmem:[%s0 + $0x30] sm:$0xff]
  %v28 = vld [vmem:[%s0 + $0x38] sm:$0xff]
  %v29 = vld [vmem:[%s0 + $0x40] sm:$0xff]
  %v30 = vunpack.c.l.bf16 %v21
  %v31 = vunpack.c.h.bf16 %v21
  %v32 = vunpack.c.l.bf16 %v22
  %v33 = vunpack.c.h.bf16 %v22
  %v34 = vunpack.c.l.bf16 %v23
  %v35 = vunpack.c.h.bf16 %v23
  %v36 = vunpack.c.l.bf16 %v24
  %v37 = vunpack.c.h.bf16 %v24
  %v38 = vunpack.c.l.bf16 %v25
  %v39 = vunpack.c.h.bf16 %v25
  %v40 = vunpack.c.l.bf16 %v26
  %v41 = vunpack.c.h.bf16 %v26
  %v42 = vunpack.c.l.bf16 %v27
  %v43 = vunpack.c.h.bf16 %v27
  %v44 = vunpack.c.l.bf16 %v28
  %v45 = vunpack.c.h.bf16 %v28
  %v46 = vunpack.c.l.bf16 %v29
  %v47 = vunpack.c.h.bf16 %v29
  %v48 = vld [vmem:[%s2] sm:$0x3]
  %v50 = vlaneseq
  %v51 = vshrl.u32 %v50, 7
  %v52 = vsub.s32 0, %v51
  %v53 = vrot.slane %v48, %v52
  %v54 = vlaneseq
  %v55 = vshrl.u32 %v54, 7
  %v56 = vsub.s32 1, %v55
  %v57 = vrot.slane %v48, %v56
  %v60 = vmul.f32 %v30, %v53
  %v61 = vmul.f32 %v31, %v57
  %v62 = vmul.f32 %v32, %v53
  %v63 = vmul.f32 %v33, %v57
  %v64 = vmul.f32 %v34, %v53
  %v65 = vmul.f32 %v35, %v57
  %v66 = vmul.f32 %v36, %v53
  %v67 = vmul.f32 %v37, %v57
  %v68 = vmul.f32 %v38, %v53
  %v69 = vmul.f32 %v39, %v57
  %v70 = vmul.f32 %v40, %v53
  %v71 = vmul.f32 %v41, %v57
  %v72 = vmul.f32 %v42, %v53
  %v73 = vmul.f32 %v43, %v57
  %v74 = vmul.f32 %v44, %v53
  %v75 = vmul.f32 %v45, %v57
  %v76 = vmul.f32 %v46, %v53
  %v77 = vmul.f32 %v47, %v57
  %v78 = vld [vmem:[%s3] sm:$0x3]
  %v80 = vlaneseq
  %v81 = vshrl.u32 %v80, 7
  %v82 = vsub.s32 0, %v81
  %v83 = vrot.slane %v78, %v82
  %v84 = vlaneseq
  %v85 = vshrl.u32 %v84, 7
  %v86 = vsub.s32 1, %v85
  %v87 = vrot.slane %v78, %v86
  %v90 = vadd.f32 %v60, %v83
  %v91 = vadd.f32 %v61, %v87
  %v92 = vadd.f32 %v62, %v83
  %v93 = vadd.f32 %v63, %v87
  %v94 = vadd.f32 %v64, %v83
  %v95 = vadd.f32 %v65, %v87
  %v96 = vadd.f32 %v66, %v83
  %v97 = vadd.f32 %v67, %v87
  %v98 = vadd.f32 %v68, %v83
  %v99 = vadd.f32 %v69, %v87
  %v100 = vadd.f32 %v70, %v83
  %v101 = vadd.f32 %v71, %v87
  %v102 = vadd.f32 %v72, %v83
  %v103 = vadd.f32 %v73, %v87
  %v104 = vadd.f32 %v74, %v83
  %v105 = vadd.f32 %v75, %v87
  %v106 = vadd.f32 %v76, %v83
  %v107 = vadd.f32 %v77, %v87
  %vm108 = vcmp.ge.f32.partialorder %v90, 0.0
  %vm109 = vcmp.ge.f32.partialorder %v91, 0.0
  %vm110 = vcmp.ge.f32.partialorder %v92, 0.0
  %vm111 = vcmp.ge.f32.partialorder %v93, 0.0
  %vm112 = vcmp.ge.f32.partialorder %v94, 0.0
  %vm113 = vcmp.ge.f32.partialorder %v95, 0.0
  %vm114 = vcmp.ge.f32.partialorder %v96, 0.0
  %vm115 = vcmp.ge.f32.partialorder %v97, 0.0
  %vm116 = vcmp.ge.f32.partialorder %v98, 0.0
  %vm117 = vcmp.ge.f32.partialorder %v99, 0.0
  %vm118 = vcmp.ge.f32.partialorder %v100, 0.0
  %vm119 = vcmp.ge.f32.partialorder %v101, 0.0
  %vm120 = vcmp.ge.f32.partialorder %v102, 0.0
  %vm121 = vcmp.ge.f32.partialorder %v103, 0.0
  %vm122 = vcmp.ge.f32.partialorder %v104, 0.0
  %vm123 = vcmp.ge.f32.partialorder %v105, 0.0
  %vm124 = vcmp.ge.f32.partialorder %v106, 0.0
  %vm125 = vcmp.ge.f32.partialorder %v107, 0.0
  %v126 = vmul.f32 %v90, 0.2
  %v127 = vmul.f32 %v91, 0.2
  %v128 = vmul.f32 %v92, 0.2
  %v129 = vmul.f32 %v93, 0.2
  %v130 = vmul.f32 %v94, 0.2
  %v131 = vmul.f32 %v95, 0.2
  %v132 = vmul.f32 %v96, 0.2
  %v133 = vmul.f32 %v97, 0.2
  %v134 = vmul.f32 %v98, 0.2
  %v135 = vmul.f32 %v99, 0.2
  %v136 = vmul.f32 %v100, 0.2
  %v137 = vmul.f32 %v101, 0.2
  %v138 = vmul.f32 %v102, 0.2
  %v139 = vmul.f32 %v103, 0.2
  %v140 = vmul.f32 %v104, 0.2
  %v141 = vmul.f32 %v105, 0.2
  %v142 = vmul.f32 %v106, 0.2
  %v143 = vmul.f32 %v107, 0.2
  %v144 = vsel %vm108, %v90, %v126
  %v145 = vsel %vm109, %v91, %v127
  %v146 = vsel %vm110, %v92, %v128
  %v147 = vsel %vm111, %v93, %v129
  %v148 = vsel %vm112, %v94, %v130
  %v149 = vsel %vm113, %v95, %v131
  %v150 = vsel %vm114, %v96, %v132
  %v151 = vsel %vm115, %v97, %v133
  %v152 = vsel %vm116, %v98, %v134
  %v153 = vsel %vm117, %v99, %v135
  %v154 = vsel %vm118, %v100, %v136
  %v155 = vsel %vm119, %v101, %v137
  %v156 = vsel %vm120, %v102, %v138
  %v157 = vsel %vm121, %v103, %v139
  %v158 = vsel %vm122, %v104, %v140
  %v159 = vsel %vm123, %v105, %v141
  %v160 = vsel %vm124, %v106, %v142
  %v161 = vsel %vm125, %v107, %v143
  %v162 = vpack.c.bf16 %v146, %v144
  %v163 = vpack.c.bf16 %v147, %v145
  %v164 = vpack.c.bf16 %v150, %v148
  %v165 = vpack.c.bf16 %v151, %v149
  %v166 = vpack.c.bf16 %v154, %v152
  %v167 = vpack.c.bf16 %v155, %v153
  %v168 = vpack.c.bf16 %v158, %v156
  %v169 = vpack.c.bf16 %v159, %v157
  %v170 = vpack.c.bf16 %v160, %v160
  %v171 = vpack.c.bf16 %v161, %v161
  %v172 = vld [vmem:[%s1] sm:$0xf]
  %v173 = vld [vmem:[%s1 + $0x4] sm:$0xf]
  %v174 = vld [vmem:[%s1 + $0x8] sm:$0xf]
  %v175 = vld [vmem:[%s1 + $0xc] sm:$0xf]
  %v176 = vld [vmem:[%s1 + $0x10] sm:$0xf]
  %v177 = vld [vmem:[%s1 + $0x14] sm:$0xf]
  %v178 = vld [vmem:[%s1 + $0x18] sm:$0xf]
  %v179 = vld [vmem:[%s1 + $0x1c] sm:$0xf]
  %v180 = vld [vmem:[%s1 + $0x20] sm:$0xf]
  %v181 = vld [vmem:[%s1 + $0x24] sm:$0xf]
  %v182 = vld [vmem:[%s1 + $0x28] sm:$0xf]
  %v183 = vld [vmem:[%s1 + $0x2c] sm:$0xf]
  %v184 = vld [vmem:[%s1 + $0x30] sm:$0xf]
  %v185 = vld [vmem:[%s1 + $0x34] sm:$0xf]
  %v186 = vld [vmem:[%s1 + $0x38] sm:$0xf]
  %v187 = vld [vmem:[%s1 + $0x3c] sm:$0xf]
  %v188 = vld [vmem:[%s1 + $0x40] sm:$0xf]
  %v189 = vld [vmem:[%s1 + $0x44] sm:$0xf]
  %v190 = vld [vmem:[%s1 + $0x48] sm:$0xf]
  %v191 = vld [vmem:[%s1 + $0x4c] sm:$0xf]
  %v192 = vld [vmem:[%s1 + $0x50] sm:$0xf]
  %v193 = vld [vmem:[%s1 + $0x54] sm:$0xf]
  %v194 = vld [vmem:[%s1 + $0x58] sm:$0xf]
  %v195 = vld [vmem:[%s1 + $0x5c] sm:$0xf]
  %v196 = vld [vmem:[%s1 + $0x60] sm:$0xf]
  %v197 = vld [vmem:[%s1 + $0x64] sm:$0xf]
  %v198 = vld [vmem:[%s1 + $0x68] sm:$0xf]
  %v199 = vld [vmem:[%s1 + $0x6c] sm:$0xf]
  %v200 = vld [vmem:[%s1 + $0x70] sm:$0xf]
  %v201 = vld [vmem:[%s1 + $0x74] sm:$0xf]
  %v202 = vld [vmem:[%s1 + $0x78] sm:$0xf]
  %v203 = vld [vmem:[%s1 + $0x7c] sm:$0xf]
  %v236 = vunpack.c.l.b16 %v172
  %v237 = vunpack.c.l.b16 %v173
  %v238 = vunpack.c.l.b16 %v174
  %v239 = vunpack.c.l.b16 %v175
  %v240 = vunpack.c.l.b16 %v176
  %v241 = vunpack.c.l.b16 %v177
  %v242 = vunpack.c.l.b16 %v178
  %v243 = vunpack.c.l.b16 %v179
  %v244 = vunpack.c.l.b16 %v180
  %v245 = vunpack.c.l.b16 %v181
  %v246 = vunpack.c.l.b16 %v182
  %v247 = vunpack.c.l.b16 %v183
  %v248 = vunpack.c.l.b16 %v184
  %v249 = vunpack.c.l.b16 %v185
  %v250 = vunpack.c.l.b16 %v186
  %v251 = vunpack.c.l.b16 %v187
  %v252 = vunpack.c.l.b16 %v188
  %v253 = vunpack.c.l.b16 %v189
  %v254 = vunpack.c.l.b16 %v190
  %v255 = vunpack.c.l.b16 %v191
  %v256 = vunpack.c.l.b16 %v192
  %v257 = vunpack.c.l.b16 %v193
  %v258 = vunpack.c.l.b16 %v194
  %v259 = vunpack.c.l.b16 %v195
  %v260 = vunpack.c.l.b16 %v196
  %v261 = vunpack.c.l.b16 %v197
  %v262 = vunpack.c.l.b16 %v198
  %v263 = vunpack.c.l.b16 %v199
  %v264 = vunpack.c.l.b16 %v200
  %v265 = vunpack.c.l.b16 %v201
  %v266 = vunpack.c.l.b16 %v202
  %v267 = vunpack.c.l.b16 %v203
  %v268 = vpack.c.b16 %v237, %v236
  %v269 = vpack.c.b16 %v239, %v238
  %v270 = vpack.c.b16 %v241, %v240
  %v271 = vpack.c.b16 %v243, %v242
  %v272 = vpack.c.b16 %v245, %v244
  %v273 = vpack.c.b16 %v247, %v246
  %v274 = vpack.c.b16 %v249, %v248
  %v275 = vpack.c.b16 %v251, %v250
  %v276 = vpack.c.b16 %v253, %v252
  %v277 = vpack.c.b16 %v255, %v254
  %v278 = vpack.c.b16 %v257, %v256
  %v279 = vpack.c.b16 %v259, %v258
  %v280 = vpack.c.b16 %v261, %v260
  %v281 = vpack.c.b16 %v263, %v262
  %v282 = vpack.c.b16 %v265, %v264
  %v283 = vpack.c.b16 %v267, %v266
  %300 = vmatprep.subr.bf16.mxu0 0
  %301 = vmatpush1.bf16.msra.mxu0 %v275
  %302 = vmatprep.subr.bf16.mxu0 0
  %303 = vmatpush1.bf16.msra.mxu0 %v274
  %304 = vmatprep.subr.bf16.mxu0 0
  %305 = vmatpush1.bf16.msra.mxu0 %v273
  %306 = vmatprep.subr.bf16.mxu0 0
  %307 = vmatpush1.bf16.msra.mxu0 %v272
  %308 = vmatprep.subr.bf16.mxu0 0
  %309 = vmatpush1.bf16.msra.mxu0 %v271
  %310 = vmatprep.subr.bf16.mxu0 0
  %311 = vmatpush1.bf16.msra.mxu0 %v270
  %312 = vmatprep.subr.bf16.mxu0 0
  %313 = vmatpush1.bf16.msra.mxu0 %v269
  %314 = vmatprep.subr.bf16.mxu0 0
  %315 = vmatpush1.bf16.msra.mxu0 %v268
  %316 = vmatprep.subr.bf16.mxu0 0
  %317 = vmatpush2.bf16.msra.mxu0 %v283
  %318 = vmatprep.subr.bf16.mxu0 0
  %319 = vmatpush2.bf16.msra.mxu0 %v282
  %320 = vmatprep.subr.bf16.mxu0 0
  %321 = vmatpush2.bf16.msra.mxu0 %v281
  %322 = vmatprep.subr.bf16.mxu0 0
  %323 = vmatpush2.bf16.msra.mxu0 %v280
  %324 = vmatprep.subr.bf16.mxu0 0
  %325 = vmatpush2.bf16.msra.mxu0 %v279
  %326 = vmatprep.subr.bf16.mxu0 0
  %327 = vmatpush2.bf16.msra.mxu0 %v278
  %328 = vmatprep.subr.bf16.mxu0 0
  %329 = vmatpush2.bf16.msra.mxu0 %v277
  %330 = vmatprep.subr.bf16.mxu0 0
  %331 = vmatpush2.bf16.msra.mxu0 %v276
  %332 = vmatprep.mubr.bf16.mxu0 %v163
  %333 = vmatmul.mubr.bf16.gmra.mxu0 %v162
  %v334 = vpop.f32.mrf.mxu0
  %v335 = vadd.f32 0.0, %v334
  %v336 = vpop.f32.mrf.mxu0
  %v337 = vpop.f32.mrf.mxu0
  %v338 = vadd.f32 0.0, %v337
  %v339 = vpop.f32.mrf.mxu0
  %340 = vmatprep.mubr.bf16.mxu0 %v165
  %341 = vmatmul.mubr.bf16.gmra.mxu0 %v164
  %v342 = vpop.f32.mrf.mxu0
  %v343 = vadd.f32 0.0, %v342
  %v344 = vpop.f32.mrf.mxu0
  %v345 = vpop.f32.mrf.mxu0
  %v346 = vadd.f32 0.0, %v345
  %v347 = vpop.f32.mrf.mxu0
  %348 = vmatprep.mubr.bf16.mxu0 %v167
  %349 = vmatmul.mubr.bf16.gmra.mxu0 %v166
  %v350 = vpop.f32.mrf.mxu0
  %v351 = vadd.f32 0.0, %v350
  %v352 = vpop.f32.mrf.mxu0
  %v353 = vpop.f32.mrf.mxu0
  %v354 = vadd.f32 0.0, %v353
  %v355 = vpop.f32.mrf.mxu0
  %356 = vmatprep.mubr.bf16.mxu0 %v169
  %357 = vmatmul.mubr.bf16.gmra.mxu0 %v168
  %v358 = vpop.f32.mrf.mxu0
  %v359 = vadd.f32 0.0, %v358
  %v360 = vpop.f32.mrf.mxu0
  %v361 = vpop.f32.mrf.mxu0
  %v362 = vadd.f32 0.0, %v361
  %v363 = vpop.f32.mrf.mxu0
  %364 = vmatprep.mubr.bf16.mxu0 %v171
  %365 = vmatmul.mubr.bf16.gmra.mxu0 %v170
  %v366 = vpop.f32.mrf.mxu0
  %v367 = vadd.f32 0.0, %v366
  %v368 = vpop.f32.mrf.mxu0
  %v369 = vpop.f32.mrf.mxu0
  %v370 = vpop.f32.mrf.mxu0
  %371 = vdwg.mxu0
  %v372 = vpack.c.bf16 %v338, %v335
  %v373 = vpack.c.bf16 %v346, %v343
  %v374 = vpack.c.bf16 %v354, %v351
  %v375 = vpack.c.bf16 %v362, %v359
  %v376 = vpack.c.bf16 %v367, %v367
  %v382 = vunpack.c.l.b16 %v372
  %v383 = vunpack.c.h.b16 %v372
  %v384 = vunpack.c.l.b16 %v373
  %v385 = vunpack.c.h.b16 %v373
  %v386 = vunpack.c.l.b16 %v374
  %v387 = vunpack.c.h.b16 %v374
  %v388 = vunpack.c.l.b16 %v375
  %v389 = vunpack.c.h.b16 %v375
  %v390 = vunpack.c.l.b16 %v376
  %v391 = vpack.c.b16 %v382, %v382
  %v392 = vpack.c.b16 %v383, %v383
  %v393 = vpack.c.b16 %v384, %v384
  %v394 = vpack.c.b16 %v385, %v385
  %v395 = vpack.c.b16 %v386, %v386
  %v396 = vpack.c.b16 %v387, %v387
  %v397 = vpack.c.b16 %v388, %v388
  %v398 = vpack.c.b16 %v389, %v389
  %v399 = vpack.c.b16 %v390, %v390
  %409 = vst [vmem:[%s4] sm:$0xf] %v391
  %410 = vst [vmem:[%s4 + $0x4] sm:$0xf] %v392
  %411 = vst [vmem:[%s4 + $0x8] sm:$0xf] %v393
  %412 = vst [vmem:[%s4 + $0xc] sm:$0xf] %v394
  %413 = vst [vmem:[%s4 + $0x10] sm:$0xf] %v395
  %414 = vst [vmem:[%s4 + $0x14] sm:$0xf] %v396
  %415 = vst [vmem:[%s4 + $0x18] sm:$0xf] %v397
  %416 = vst [vmem:[%s4 + $0x1c] sm:$0xf] %v398
  %417 = vst [vmem:[%s4 + $0x20] sm:$0xf] %v399
  %v418 = vunpack.c.l.bf16 %v372
  %v419 = vunpack.c.h.bf16 %v372
  %v420 = vunpack.c.l.bf16 %v373
  %v421 = vunpack.c.h.bf16 %v373
  %v422 = vunpack.c.l.bf16 %v374
  %v423 = vunpack.c.h.bf16 %v374
  %v424 = vunpack.c.l.bf16 %v375
  %v425 = vunpack.c.h.bf16 %v375
  %v426 = vunpack.c.l.bf16 %v376
  %v427 = vadd.f32 %v418, %v419
  %v428 = vadd.f32 %v427, %v420
  %v429 = vadd.f32 %v428, %v421
  %v430 = vadd.f32 %v429, %v422
  %v431 = vadd.f32 %v430, %v423
  %v432 = vadd.f32 %v431, %v424
  %v433 = vadd.f32 %v432, %v425
  %v434 = vadd.f32 %v433, %v426
  %v435 = vrot.slane %v434, 4
  %v436 = vadd.f32 %v434, %v435
  %v437 = vrot.slane %v436, 2
  %v438 = vadd.f32 %v436, %v437
  %v439 = vrot.slane %v438, 1
  %v440 = vadd.f32 %v438, %v439
  %441 = vst [vmem:[%s5] sm:$0x1] %v440
  %v442 = vmul.f32 %v418, %v418
  %v443 = vmul.f32 %v419, %v419
  %v444 = vmul.f32 %v420, %v420
  %v445 = vmul.f32 %v421, %v421
  %v446 = vmul.f32 %v422, %v422
  %v447 = vmul.f32 %v423, %v423
  %v448 = vmul.f32 %v424, %v424
  %v449 = vmul.f32 %v425, %v425
  %v450 = vmul.f32 %v426, %v426
  %v451 = vadd.f32 %v442, %v443
  %v452 = vadd.f32 %v451, %v444
  %v453 = vadd.f32 %v452, %v445
  %v454 = vadd.f32 %v453, %v446
  %v455 = vadd.f32 %v454, %v447
  %v456 = vadd.f32 %v455, %v448
  %v457 = vadd.f32 %v456, %v449
  %v458 = vadd.f32 %v457, %v450
  %v459 = vrot.slane %v458, 4
  %v460 = vadd.f32 %v458, %v459
  %v461 = vrot.slane %v460, 2
  %v462 = vadd.f32 %v460, %v461
  %v463 = vrot.slane %v462, 1
  %v464 = vadd.f32 %v462, %v463
  %465 = vst [vmem:[%s6] sm:$0x1] %v464
  // Predicated region
  $region18: #{descriminator_forward.7} parent=0 // pred_check
    _
  $region19: #{descriminator_forward.7} parent=0 // pred_check_branch
    %467 = sbr.rel (0) target = $region21
  $region20: #{descriminator_forward.7} parent=0 // pred_region
    _
  $region21: #{descriminator_forward.7} parent=0 // pred_fallthru
    _
  // Predicated region
  $region22: #{descriminator_forward.7} parent=0 // pred_check
    _
  $region23: #{descriminator_forward.7} parent=0 // pred_check_branch
    %469 = sbr.rel (0) target = $region25
  $region24: #{descriminator_forward.7} parent=0 // pred_region
    _
  $region25: #{descriminator_forward.7} parent=0 // pred_fallthru
    _
  // Predicated region
  $region26: #{descriminator_forward.7} parent=0 // pred_check
    _
  $region27: #{descriminator_forward.7} parent=0 // pred_check_branch
    %471 = sbr.rel (0) target = $region29
  $region28: #{descriminator_forward.7} parent=0 // pred_region
    _
  $region29: #{descriminator_forward.7} parent=0 // pred_fallthru
    _
  // Predicated region
  $region30: #{descriminator_forward.7} parent=0 // pred_check
    _
  $region31: #{descriminator_forward.7} parent=0 // pred_check_branch
    %473 = sbr.rel (0) target = $region33
  $region32: #{descriminator_forward.7} parent=0 // pred_region
    _
  $region33: #{descriminator_forward.7} parent=0 // pred_fallthru
    _
  // Predicated region
  $region34: #{descriminator_forward.7} parent=0 // pred_check
    _
  $region35: #{descriminator_forward.7} parent=0 // pred_check_branch
    %475 = sbr.rel (0) target = $region37
  $region36: #{descriminator_forward.7} parent=0 // pred_region
    _
  $region37: #{descriminator_forward.7} parent=0 // pred_fallthru
    _
  // Predicated region
  $region38: #{descriminator_forward.7} parent=0 // pred_check
    _
  $region39: #{descriminator_forward.7} parent=0 // pred_check_branch
    %477 = sbr.rel (0) target = $region41
  $region40: #{descriminator_forward.7} parent=0 // pred_region
    _
  $region41: #{descriminator_forward.7} parent=0 // pred_fallthru
    _

// kernel: tile.53
$region0: #{tile.53}
  #allocation0 [shape = 's32[1]{0}', space=sflag, size = 0x4, scoped, tag = 'scoped memory for tile.53']
  %s0 = inlined_call_operand.vmem [shape: f32[64], index: 0, kind: input, shape index: {}]
  %s1 = inlined_call_operand.vmem [shape: f32[16,64], index: 1, kind: output, shape index: {}]
  // Predicated region
  $region2: #{tile.53} parent=0 // pred_check
    _
  $region3: #{tile.53} parent=0 // pred_check_branch
    %3 = sbr.rel (0) target = $region5
  $region4: #{tile.53} parent=0 // pred_region
    _
  $region5: #{tile.53} parent=0 // pred_fallthru
    _
  %v4 = vld [vmem:[%s0] ss:$0 sm:$0xff]
  %5 = vst [vmem:[%s1] sm:$0xff] %v4
  %s6 = scalar_lea.vmem %s1, 8
  %7 = vst [vmem:[%s6] sm:$0xff] %v4

// kernel: tile.54
$region0: #{tile.54}
  %s0 = inlined_call_operand.vmem [shape: f32[16,64], index: 0, kind: input, shape index: {}]
  %s1 = inlined_call_operand.vmem [shape: f32[1,1024], index: 1, kind: output, shape index: {}]
  $region1: #{tile.54} parent=0
    #allocation0 [shape = 'u8[32768]{0}', space=vmem, size = 0x8000, scoped, tag = 'scoped mem for output reshape']
    %v2 = vld [vmem:[%s0] ss:$2 sm:$0xff]
    %vm3 = vcmask 523264
    %4 = vst.msk [vmem:[#allocation0] ss:$8 sm:$0xf] %vm3, %v2
    %5 = vst.msk [vmem:[#allocation0] ss:$8 sm:$0xf0] %vm3, %v2
    %s6 = scalar_lea.vmem %s0, 1
    %v7 = vld [vmem:[%s6] ss:$2 sm:$0xff]
    %8 = vrot.lane.b32.xlu0 %v7, 64
    %v9 = vpop.permute.xlu0 %8
    %vm10 = vcmask 1048064
    %11 = vst.msk [vmem:[#allocation0] ss:$8 sm:$0xf] %vm10, %v9
    %12 = vst.msk [vmem:[#allocation0] ss:$8 sm:$0xf0] %vm10, %v9
    %s14 = sshll.u32 1, 1
    %s15 = ssub.s32 %s14, 1
    %v17 = vld [vmem:[#allocation0] sm:%s15]
    %s18 = sshll.u32 1, 1
    %s19 = ssub.s32 %s18, 1
    %20 = vst [vmem:[%s1] sm:%s19] %v17
    %s21 = scalar_lea.vmem [#allocation0], 8
    %v22 = vld [vmem:[%s21] sm:%s15]
    %s23 = sshll.u32 1, 1
    %s24 = ssub.s32 %s23, 1
    %s25 = scalar_lea.vmem %s1, 1
    %26 = vst [vmem:[%s25] sm:%s24] %v22
    %s27 = scalar_lea.vmem [#allocation0], 16
    %v28 = vld [vmem:[%s27] sm:%s15]
    %s29 = sshll.u32 1, 1
    %s30 = ssub.s32 %s29, 1
    %s31 = smul.addr 1, 2
    %s32 = scalar_lea.vmem %s1, %s31
    %33 = vst [vmem:[%s32] sm:%s30] %v28
    %s34 = scalar_lea.vmem [#allocation0], 24
    %v35 = vld [vmem:[%s34] sm:%s15]
    %s36 = sshll.u32 1, 1
    %s37 = ssub.s32 %s36, 1
    %s38 = smul.addr 1, 3
    %s39 = scalar_lea.vmem %s1, %s38
    %40 = vst [vmem:[%s39] sm:%s37] %v35
    %s41 = scalar_lea.vmem [#allocation0], 32
    %v42 = vld [vmem:[%s41] sm:%s15]
    %s43 = sshll.u32 1, 1
    %s44 = ssub.s32 %s43, 1
    %s45 = smul.addr 1, 4
    %s46 = scalar_lea.vmem %s1, %s45
    %47 = vst [vmem:[%s46] sm:%s44] %v42
    %s48 = scalar_lea.vmem [#allocation0], 40
    %v49 = vld [vmem:[%s48] sm:%s15]
    %s50 = sshll.u32 1, 1
    %s51 = ssub.s32 %s50, 1
    %s52 = smul.addr 1, 5
    %s53 = scalar_lea.vmem %s1, %s52
    %54 = vst [vmem:[%s53] sm:%s51] %v49
    %s55 = scalar_lea.vmem [#allocation0], 48
    %v56 = vld [vmem:[%s55] sm:%s15]
    %s57 = sshll.u32 1, 1
    %s58 = ssub.s32 %s57, 1
    %s59 = smul.addr 1, 6
    %s60 = scalar_lea.vmem %s1, %s59
    %61 = vst [vmem:[%s60] sm:%s58] %v56
    %s62 = scalar_lea.vmem [#allocation0], 56
    %v63 = vld [vmem:[%s62] sm:%s15]
    %s64 = sshll.u32 1, 1
    %s65 = ssub.s32 %s64, 1
    %s66 = smul.addr 1, 7
    %s67 = scalar_lea.vmem %s1, %s66
    %68 = vst [vmem:[%s67] sm:%s65] %v63

// kernel: descriminator_forward.8
$region0: #{descriminator_forward.8}
  #allocation0 [shape = 'u32[]', space=smem, size = 0x4, offset = 0x4, fixed_abs, tag = 'smem constant byte address 0x4 - core index']
  #allocation1 [shape = 'u32[144,128]{1,0:T(1,128)}', space=vmem, size = 0x12000, scoped, tag = 'internal scratch']
  %s0 = inlined_call_operand.vmem [shape: bf16[18,512], index: 0, kind: input, shape index: {}]
  %s1 = inlined_call_operand.vmem [shape: bf16[512,128], index: 1, kind: input, shape index: {}]
  %s2 = inlined_call_operand.vmem [shape: f32[1,512], index: 2, kind: input, shape index: {}]
  %s3 = inlined_call_operand.vmem [shape: f32[1,512], index: 3, kind: input, shape index: {}]
  %s4 = inlined_call_operand.vmem [shape: bf16[18,128], index: 4, kind: output, shape index: {0}]
  %s5 = inlined_call_operand.vmem [shape: f32[1,128], index: 5, kind: output, shape index: {1}]
  %s6 = inlined_call_operand.vmem [shape: f32[1,128], index: 6, kind: output, shape index: {2}]
  %7 = xla_tuple %s4, %s5, %s6
  %s8 = sld [smem:[#allocation0]]
  $region42: #{descriminator_forward.8} parent=0
    _
  %s10 = ssub.s32 1, %s8
  %s11 = scalar_select 0, %s10, %s8
  // Predicated region
  $region2: #{descriminator_forward.8} parent=0 // pred_check
    _
  $region3: #{descriminator_forward.8} parent=0 // pred_check_branch
    %13 = sbr.rel (0) target = $region5
  $region4: #{descriminator_forward.8} parent=0 // pred_region
    _
  $region5: #{descriminator_forward.8} parent=0 // pred_fallthru
    _
  // Predicated region
  $region6: #{descriminator_forward.8} parent=0 // pred_check
    _
  $region7: #{descriminator_forward.8} parent=0 // pred_check_branch
    %15 = sbr.rel (0) target = $region9
  $region8: #{descriminator_forward.8} parent=0 // pred_region
    _
  $region9: #{descriminator_forward.8} parent=0 // pred_fallthru
    _
  // Predicated region
  $region10: #{descriminator_forward.8} parent=0 // pred_check
    _
  $region11: #{descriminator_forward.8} parent=0 // pred_check_branch
    %17 = sbr.rel (0) target = $region13
  $region12: #{descriminator_forward.8} parent=0 // pred_region
    _
  $region13: #{descriminator_forward.8} parent=0 // pred_fallthru
    _
  // Predicated region
  $region14: #{descriminator_forward.8} parent=0 // pred_check
    _
  $region15: #{descriminator_forward.8} parent=0 // pred_check_branch
    %19 = sbr.rel (0) target = $region17
  $region16: #{descriminator_forward.8} parent=0 // pred_region
    _
  $region17: #{descriminator_forward.8} parent=0 // pred_fallthru
    _
  %v21 = vld [vmem:[%s0] sm:$0xff]
  %v22 = vld [vmem:[%s0 + $0x8] sm:$0xff]
  %v23 = vld [vmem:[%s0 + $0x10] sm:$0xff]
  %v24 = vld [vmem:[%s0 + $0x18] sm:$0xff]
  %v25 = vld [vmem:[%s0 + $0x20] sm:$0x11]
  %v26 = vld [vmem:[%s0 + $0x28] sm:$0x11]
  %v27 = vunpack.c.l.bf16 %v21
  %v28 = vunpack.c.h.bf16 %v21
  %v29 = vunpack.c.l.bf16 %v22
  %v30 = vunpack.c.h.bf16 %v22
  %v31 = vunpack.c.l.bf16 %v23
  %v32 = vunpack.c.h.bf16 %v23
  %v33 = vunpack.c.l.bf16 %v24
  %v34 = vunpack.c.h.bf16 %v24
  %v35 = vunpack.c.l.bf16 %v25
  %v36 = vunpack.c.h.bf16 %v25
  %v37 = vunpack.c.l.bf16 %v26
  %v38 = vunpack.c.h.bf16 %v26
  %v39 = vld [vmem:[%s2] sm:$0xf]
  %v41 = vlaneseq
  %v42 = vshrl.u32 %v41, 7
  %v43 = vsub.s32 0, %v42
  %v44 = vrot.slane %v39, %v43
  %v45 = vlaneseq
  %v46 = vshrl.u32 %v45, 7
  %v47 = vsub.s32 1, %v46
  %v48 = vrot.slane %v39, %v47
  %v49 = vlaneseq
  %v50 = vshrl.u32 %v49, 7
  %v51 = vsub.s32 2, %v50
  %v52 = vrot.slane %v39, %v51
  %v53 = vlaneseq
  %v54 = vshrl.u32 %v53, 7
  %v55 = vsub.s32 3, %v54
  %v56 = vrot.slane %v39, %v55
  %v61 = vmul.f32 %v27, %v44
  %v62 = vmul.f32 %v28, %v48
  %v63 = vmul.f32 %v29, %v52
  %v64 = vmul.f32 %v30, %v56
  %v65 = vmul.f32 %v31, %v44
  %v66 = vmul.f32 %v32, %v48
  %v67 = vmul.f32 %v33, %v52
  %v68 = vmul.f32 %v34, %v56
  %v69 = vmul.f32 %v35, %v44
  %v70 = vmul.f32 %v36, %v48
  %v71 = vmul.f32 %v37, %v52
  %v72 = vmul.f32 %v38, %v56
  %v73 = vld [vmem:[%s3] sm:$0xf]
  %v75 = vlaneseq
  %v76 = vshrl.u32 %v75, 7
  %v77 = vsub.s32 0, %v76
  %v78 = vrot.slane %v73, %v77
  %v79 = vlaneseq
  %v80 = vshrl.u32 %v79, 7
  %v81 = vsub.s32 1, %v80
  %v82 = vrot.slane %v73, %v81
  %v83 = vlaneseq
  %v84 = vshrl.u32 %v83, 7
  %v85 = vsub.s32 2, %v84
  %v86 = vrot.slane %v73, %v85
  %v87 = vlaneseq
  %v88 = vshrl.u32 %v87, 7
  %v89 = vsub.s32 3, %v88
  %v90 = vrot.slane %v73, %v89
  %v95 = vadd.f32 %v61, %v78
  %v96 = vadd.f32 %v62, %v82
  %v97 = vadd.f32 %v63, %v86
  %v98 = vadd.f32 %v64, %v90
  %v99 = vadd.f32 %v65, %v78
  %v100 = vadd.f32 %v66, %v82
  %v101 = vadd.f32 %v67, %v86
  %v102 = vadd.f32 %v68, %v90
  %v103 = vadd.f32 %v69, %v78
  %v104 = vadd.f32 %v70, %v82
  %v105 = vadd.f32 %v71, %v86
  %v106 = vadd.f32 %v72, %v90
  %vm107 = vcmp.ge.f32.partialorder %v95, 0.0
  %vm108 = vcmp.ge.f32.partialorder %v96, 0.0
  %vm109 = vcmp.ge.f32.partialorder %v97, 0.0
  %vm110 = vcmp.ge.f32.partialorder %v98, 0.0
  %vm111 = vcmp.ge.f32.partialorder %v99, 0.0
  %vm112 = vcmp.ge.f32.partialorder %v100, 0.0
  %vm113 = vcmp.ge.f32.partialorder %v101, 0.0
  %vm114 = vcmp.ge.f32.partialorder %v102, 0.0
  %vm115 = vcmp.ge.f32.partialorder %v103, 0.0
  %vm116 = vcmp.ge.f32.partialorder %v104, 0.0
  %vm117 = vcmp.ge.f32.partialorder %v105, 0.0
  %vm118 = vcmp.ge.f32.partialorder %v106, 0.0
  %v119 = vmul.f32 %v95, 0.2
  %v120 = vmul.f32 %v96, 0.2
  %v121 = vmul.f32 %v97, 0.2
  %v122 = vmul.f32 %v98, 0.2
  %v123 = vmul.f32 %v99, 0.2
  %v124 = vmul.f32 %v100, 0.2
  %v125 = vmul.f32 %v101, 0.2
  %v126 = vmul.f32 %v102, 0.2
  %v127 = vmul.f32 %v103, 0.2
  %v128 = vmul.f32 %v104, 0.2
  %v129 = vmul.f32 %v105, 0.2
  %v130 = vmul.f32 %v106, 0.2
  %v131 = vsel %vm107, %v95, %v119
  %v132 = vsel %vm108, %v96, %v120
  %v133 = vsel %vm109, %v97, %v121
  %v134 = vsel %vm110, %v98, %v122
  %v135 = vsel %vm111, %v99, %v123
  %v136 = vsel %vm112, %v100, %v124
  %v137 = vsel %vm113, %v101, %v125
  %v138 = vsel %vm114, %v102, %v126
  %v139 = vsel %vm115, %v103, %v127
  %v140 = vsel %vm116, %v104, %v128
  %v141 = vsel %vm117, %v105, %v129
  %v142 = vsel %vm118, %v106, %v130
  %v143 = vpack.c.bf16 %v135, %v131
  %v144 = vpack.c.bf16 %v136, %v132
  %v145 = vpack.c.bf16 %v137, %v133
  %v146 = vpack.c.bf16 %v138, %v134
  %v147 = vpack.c.bf16 %v139, %v139
  %v148 = vpack.c.bf16 %v140, %v140
  %v149 = vpack.c.bf16 %v141, %v141
  %v150 = vpack.c.bf16 %v142, %v142
  %v151 = vld [vmem:[%s1] sm:$0xf]
  %v152 = vld [vmem:[%s1 + $0x4] sm:$0xf]
  %v153 = vld [vmem:[%s1 + $0x8] sm:$0xf]
  %v154 = vld [vmem:[%s1 + $0xc] sm:$0xf]
  %v155 = vld [vmem:[%s1 + $0x10] sm:$0xf]
  %v156 = vld [vmem:[%s1 + $0x14] sm:$0xf]
  %v157 = vld [vmem:[%s1 + $0x18] sm:$0xf]
  %v158 = vld [vmem:[%s1 + $0x1c] sm:$0xf]
  %v159 = vld [vmem:[%s1 + $0x20] sm:$0xf]
  %v160 = vld [vmem:[%s1 + $0x24] sm:$0xf]
  %v161 = vld [vmem:[%s1 + $0x28] sm:$0xf]
  %v162 = vld [vmem:[%s1 + $0x2c] sm:$0xf]
  %v163 = vld [vmem:[%s1 + $0x30] sm:$0xf]
  %v164 = vld [vmem:[%s1 + $0x34] sm:$0xf]
  %v165 = vld [vmem:[%s1 + $0x38] sm:$0xf]
  %v166 = vld [vmem:[%s1 + $0x3c] sm:$0xf]
  %v167 = vld [vmem:[%s1 + $0x40] sm:$0xf]
  %v168 = vld [vmem:[%s1 + $0x44] sm:$0xf]
  %v169 = vld [vmem:[%s1 + $0x48] sm:$0xf]
  %v170 = vld [vmem:[%s1 + $0x4c] sm:$0xf]
  %v171 = vld [vmem:[%s1 + $0x50] sm:$0xf]
  %v172 = vld [vmem:[%s1 + $0x54] sm:$0xf]
  %v173 = vld [vmem:[%s1 + $0x58] sm:$0xf]
  %v174 = vld [vmem:[%s1 + $0x5c] sm:$0xf]
  %v175 = vld [vmem:[%s1 + $0x60] sm:$0xf]
  %v176 = vld [vmem:[%s1 + $0x64] sm:$0xf]
  %v177 = vld [vmem:[%s1 + $0x68] sm:$0xf]
  %v178 = vld [vmem:[%s1 + $0x6c] sm:$0xf]
  %v179 = vld [vmem:[%s1 + $0x70] sm:$0xf]
  %v180 = vld [vmem:[%s1 + $0x74] sm:$0xf]
  %v181 = vld [vmem:[%s1 + $0x78] sm:$0xf]
  %v182 = vld [vmem:[%s1 + $0x7c] sm:$0xf]
  %v183 = vld [vmem:[%s1 + $0x80] sm:$0xf]
  %v184 = vld [vmem:[%s1 + $0x84] sm:$0xf]
  %v185 = vld [vmem:[%s1 + $0x88] sm:$0xf]
  %v186 = vld [vmem:[%s1 + $0x8c] sm:$0xf]
  %v187 = vld [vmem:[%s1 + $0x90] sm:$0xf]
  %v188 = vld [vmem:[%s1 + $0x94] sm:$0xf]
  %v189 = vld [vmem:[%s1 + $0x98] sm:$0xf]
  %v190 = vld [vmem:[%s1 + $0x9c] sm:$0xf]
  %v191 = vld [vmem:[%s1 + $0xa0] sm:$0xf]
  %v192 = vld [vmem:[%s1 + $0xa4] sm:$0xf]
  %v193 = vld [vmem:[%s1 + $0xa8] sm:$0xf]
  %v194 = vld [vmem:[%s1 + $0xac] sm:$0xf]
  %v195 = vld [vmem:[%s1 + $0xb0] sm:$0xf]
  %v196 = vld [vmem:[%s1 + $0xb4] sm:$0xf]
  %v197 = vld [vmem:[%s1 + $0xb8] sm:$0xf]
  %v198 = vld [vmem:[%s1 + $0xbc] sm:$0xf]
  %v199 = vld [vmem:[%s1 + $0xc0] sm:$0xf]
  %v200 = vld [vmem:[%s1 + $0xc4] sm:$0xf]
  %v201 = vld [vmem:[%s1 + $0xc8] sm:$0xf]
  %v202 = vld [vmem:[%s1 + $0xcc] sm:$0xf]
  %v203 = vld [vmem:[%s1 + $0xd0] sm:$0xf]
  %v204 = vld [vmem:[%s1 + $0xd4] sm:$0xf]
  %v205 = vld [vmem:[%s1 + $0xd8] sm:$0xf]
  %v206 = vld [vmem:[%s1 + $0xdc] sm:$0xf]
  %v207 = vld [vmem:[%s1 + $0xe0] sm:$0xf]
  %v208 = vld [vmem:[%s1 + $0xe4] sm:$0xf]
  %v209 = vld [vmem:[%s1 + $0xe8] sm:$0xf]
  %v210 = vld [vmem:[%s1 + $0xec] sm:$0xf]
  %v211 = vld [vmem:[%s1 + $0xf0] sm:$0xf]
  %v212 = vld [vmem:[%s1 + $0xf4] sm:$0xf]
  %v213 = vld [vmem:[%s1 + $0xf8] sm:$0xf]
  %v214 = vld [vmem:[%s1 + $0xfc] sm:$0xf]
  %v279 = vunpack.c.l.b16 %v151
  %v280 = vunpack.c.l.b16 %v152
  %v281 = vunpack.c.l.b16 %v153
  %v282 = vunpack.c.l.b16 %v154
  %v283 = vunpack.c.l.b16 %v155
  %v284 = vunpack.c.l.b16 %v156
  %v285 = vunpack.c.l.b16 %v157
  %v286 = vunpack.c.l.b16 %v158
  %v287 = vunpack.c.l.b16 %v159
  %v288 = vunpack.c.l.b16 %v160
  %v289 = vunpack.c.l.b16 %v161
  %v290 = vunpack.c.l.b16 %v162
  %v291 = vunpack.c.l.b16 %v163
  %v292 = vunpack.c.l.b16 %v164
  %v293 = vunpack.c.l.b16 %v165
  %v294 = vunpack.c.l.b16 %v166
  %v295 = vunpack.c.l.b16 %v167
  %v296 = vunpack.c.l.b16 %v168
  %v297 = vunpack.c.l.b16 %v169
  %v298 = vunpack.c.l.b16 %v170
  %v299 = vunpack.c.l.b16 %v171
  %v300 = vunpack.c.l.b16 %v172
  %v301 = vunpack.c.l.b16 %v173
  %v302 = vunpack.c.l.b16 %v174
  %v303 = vunpack.c.l.b16 %v175
  %v304 = vunpack.c.l.b16 %v176
  %v305 = vunpack.c.l.b16 %v177
  %v306 = vunpack.c.l.b16 %v178
  %v307 = vunpack.c.l.b16 %v179
  %v308 = vunpack.c.l.b16 %v180
  %v309 = vunpack.c.l.b16 %v181
  %v310 = vunpack.c.l.b16 %v182
  %v311 = vunpack.c.l.b16 %v183
  %v312 = vunpack.c.l.b16 %v184
  %v313 = vunpack.c.l.b16 %v185
  %v314 = vunpack.c.l.b16 %v186
  %v315 = vunpack.c.l.b16 %v187
  %v316 = vunpack.c.l.b16 %v188
  %v317 = vunpack.c.l.b16 %v189
  %v318 = vunpack.c.l.b16 %v190
  %v319 = vunpack.c.l.b16 %v191
  %v320 = vunpack.c.l.b16 %v192
  %v321 = vunpack.c.l.b16 %v193
  %v322 = vunpack.c.l.b16 %v194
  %v323 = vunpack.c.l.b16 %v195
  %v324 = vunpack.c.l.b16 %v196
  %v325 = vunpack.c.l.b16 %v197
  %v326 = vunpack.c.l.b16 %v198
  %v327 = vunpack.c.l.b16 %v199
  %v328 = vunpack.c.l.b16 %v200
  %v329 = vunpack.c.l.b16 %v201
  %v330 = vunpack.c.l.b16 %v202
  %v331 = vunpack.c.l.b16 %v203
  %v332 = vunpack.c.l.b16 %v204
  %v333 = vunpack.c.l.b16 %v205
  %v334 = vunpack.c.l.b16 %v206
  %v335 = vunpack.c.l.b16 %v207
  %v336 = vunpack.c.l.b16 %v208
  %v337 = vunpack.c.l.b16 %v209
  %v338 = vunpack.c.l.b16 %v210
  %v339 = vunpack.c.l.b16 %v211
  %v340 = vunpack.c.l.b16 %v212
  %v341 = vunpack.c.l.b16 %v213
  %v342 = vunpack.c.l.b16 %v214
  %v343 = vpack.c.b16 %v280, %v279
  %v344 = vpack.c.b16 %v282, %v281
  %v345 = vpack.c.b16 %v284, %v283
  %v346 = vpack.c.b16 %v286, %v285
  %v347 = vpack.c.b16 %v288, %v287
  %v348 = vpack.c.b16 %v290, %v289
  %v349 = vpack.c.b16 %v292, %v291
  %v350 = vpack.c.b16 %v294, %v293
  %v351 = vpack.c.b16 %v296, %v295
  %v352 = vpack.c.b16 %v298, %v297
  %v353 = vpack.c.b16 %v300, %v299
  %v354 = vpack.c.b16 %v302, %v301
  %v355 = vpack.c.b16 %v304, %v303
  %v356 = vpack.c.b16 %v306, %v305
  %v357 = vpack.c.b16 %v308, %v307
  %v358 = vpack.c.b16 %v310, %v309
  %v359 = vpack.c.b16 %v312, %v311
  %v360 = vpack.c.b16 %v314, %v313
  %v361 = vpack.c.b16 %v316, %v315
  %v362 = vpack.c.b16 %v318, %v317
  %v363 = vpack.c.b16 %v320, %v319
  %v364 = vpack.c.b16 %v322, %v321
  %v365 = vpack.c.b16 %v324, %v323
  %v366 = vpack.c.b16 %v326, %v325
  %v367 = vpack.c.b16 %v328, %v327
  %v368 = vpack.c.b16 %v330, %v329
  %v369 = vpack.c.b16 %v332, %v331
  %v370 = vpack.c.b16 %v334, %v333
  %v371 = vpack.c.b16 %v336, %v335
  %v372 = vpack.c.b16 %v338, %v337
  %v373 = vpack.c.b16 %v340, %v339
  %v374 = vpack.c.b16 %v342, %v341
  %407 = vmatprep.subr.bf16.mxu0 0
  %408 = vmatpush1.bf16.msra.mxu0 %v350
  %409 = vmatprep.subr.bf16.mxu0 0
  %410 = vmatpush1.bf16.msra.mxu0 %v349
  %411 = vmatprep.subr.bf16.mxu0 0
  %412 = vmatpush1.bf16.msra.mxu0 %v348
  %413 = vmatprep.subr.bf16.mxu0 0
  %414 = vmatpush1.bf16.msra.mxu0 %v347
  %415 = vmatprep.subr.bf16.mxu0 0
  %416 = vmatpush1.bf16.msra.mxu0 %v346
  %417 = vmatprep.subr.bf16.mxu0 0
  %418 = vmatpush1.bf16.msra.mxu0 %v345
  %419 = vmatprep.subr.bf16.mxu0 0
  %420 = vmatpush1.bf16.msra.mxu0 %v344
  %421 = vmatprep.subr.bf16.mxu0 0
  %422 = vmatpush1.bf16.msra.mxu0 %v343
  %423 = vmatprep.subr.bf16.mxu0 0
  %424 = vmatpush2.bf16.msra.mxu0 %v358
  %425 = vmatprep.subr.bf16.mxu0 0
  %426 = vmatpush2.bf16.msra.mxu0 %v357
  %427 = vmatprep.subr.bf16.mxu0 0
  %428 = vmatpush2.bf16.msra.mxu0 %v356
  %429 = vmatprep.subr.bf16.mxu0 0
  %430 = vmatpush2.bf16.msra.mxu0 %v355
  %431 = vmatprep.subr.bf16.mxu0 0
  %432 = vmatpush2.bf16.msra.mxu0 %v354
  %433 = vmatprep.subr.bf16.mxu0 0
  %434 = vmatpush2.bf16.msra.mxu0 %v353
  %435 = vmatprep.subr.bf16.mxu0 0
  %436 = vmatpush2.bf16.msra.mxu0 %v352
  %437 = vmatprep.subr.bf16.mxu0 0
  %438 = vmatpush2.bf16.msra.mxu0 %v351
  %439 = vmatprep.mubr.bf16.mxu0 %v144
  %440 = vmatmul.mubr.bf16.gmra.mxu0 %v143
  %v441 = vpop.f32.mrf.mxu0
  %v442 = vadd.f32 0.0, %v441
  %v443 = vpop.f32.mrf.mxu0
  %v444 = vpop.f32.mrf.mxu0
  %v445 = vadd.f32 0.0, %v444
  %v446 = vpop.f32.mrf.mxu0
  %447 = vmatprep.mubr.bf16.mxu0 %v148
  %448 = vmatmul.mubr.bf16.gmra.mxu0 %v147
  %v449 = vpop.f32.mrf.mxu0
  %v450 = vadd.f32 0.0, %v449
  %v451 = vpop.f32.mrf.mxu0
  %v452 = vpop.f32.mrf.mxu0
  %v453 = vpop.f32.mrf.mxu0
  %454 = vdwg.mxu0
  %455 = vmatprep.subr.bf16.mxu0 0
  %456 = vmatpush1.bf16.msra.mxu0 %v366
  %457 = vmatprep.subr.bf16.mxu0 0
  %458 = vmatpush1.bf16.msra.mxu0 %v365
  %459 = vmatprep.subr.bf16.mxu0 0
  %460 = vmatpush1.bf16.msra.mxu0 %v364
  %461 = vmatprep.subr.bf16.mxu0 0
  %462 = vmatpush1.bf16.msra.mxu0 %v363
  %463 = vmatprep.subr.bf16.mxu0 0
  %464 = vmatpush1.bf16.msra.mxu0 %v362
  %465 = vmatprep.subr.bf16.mxu0 0
  %466 = vmatpush1.bf16.msra.mxu0 %v361
  %467 = vmatprep.subr.bf16.mxu0 0
  %468 = vmatpush1.bf16.msra.mxu0 %v360
  %469 = vmatprep.subr.bf16.mxu0 0
  %470 = vmatpush1.bf16.msra.mxu0 %v359
  %471 = vmatprep.subr.bf16.mxu0 0
  %472 = vmatpush2.bf16.msra.mxu0 %v374
  %473 = vmatprep.subr.bf16.mxu0 0
  %474 = vmatpush2.bf16.msra.mxu0 %v373
  %475 = vmatprep.subr.bf16.mxu0 0
  %476 = vmatpush2.bf16.msra.mxu0 %v372
  %477 = vmatprep.subr.bf16.mxu0 0
  %478 = vmatpush2.bf16.msra.mxu0 %v371
  %479 = vmatprep.subr.bf16.mxu0 0
  %480 = vmatpush2.bf16.msra.mxu0 %v370
  %481 = vmatprep.subr.bf16.mxu0 0
  %482 = vmatpush2.bf16.msra.mxu0 %v369
  %483 = vmatprep.subr.bf16.mxu0 0
  %484 = vmatpush2.bf16.msra.mxu0 %v368
  %485 = vmatprep.subr.bf16.mxu0 0
  %486 = vmatpush2.bf16.msra.mxu0 %v367
  %487 = vmatprep.mubr.bf16.mxu0 %v146
  %488 = vmatmul.mubr.bf16.gmra.mxu0 %v145
  %v489 = vpop.f32.mrf.mxu0
  %v490 = vadd.f32 %v442, %v489
  %v491 = vpop.f32.mrf.mxu0
  %v492 = vpop.f32.mrf.mxu0
  %v493 = vadd.f32 %v445, %v492
  %v494 = vpop.f32.mrf.mxu0
  %495 = vmatprep.mubr.bf16.mxu0 %v150
  %496 = vmatmul.mubr.bf16.gmra.mxu0 %v149
  %v497 = vpop.f32.mrf.mxu0
  %v498 = vadd.f32 %v450, %v497
  %v499 = vpop.f32.mrf.mxu0
  %v500 = vpop.f32.mrf.mxu0
  %v501 = vpop.f32.mrf.mxu0
  %502 = vdwg.mxu0
  %v503 = vpack.c.bf16 %v493, %v490
  %v504 = vpack.c.bf16 %v498, %v498
  %v507 = vunpack.c.l.b16 %v503
  %v508 = vunpack.c.h.b16 %v503
  %v509 = vunpack.c.l.b16 %v504
  %v510 = vpack.c.b16 %v507, %v507
  %v511 = vpack.c.b16 %v508, %v508
  %v512 = vpack.c.b16 %v509, %v509
  %516 = vst [vmem:[%s4] sm:$0xf] %v510
  %517 = vst [vmem:[%s4 + $0x4] sm:$0xf] %v511
  %518 = vst [vmem:[%s4 + $0x8] sm:$0x1] %v512
  %v519 = vunpack.c.l.bf16 %v503
  %v520 = vunpack.c.h.bf16 %v503
  %v521 = vunpack.c.l.bf16 %v504
  %v522 = vadd.f32 %v519, %v520
  %vm523 = vcmask 1041408
  %v524 = vsel %vm523, %v521, 0.0
  %v525 = vadd.f32 %v522, %v524
  %v526 = vrot.slane %v525, 4
  %v527 = vadd.f32 %v525, %v526
  %v528 = vrot.slane %v527, 2
  %v529 = vadd.f32 %v527, %v528
  %v530 = vrot.slane %v529, 1
  %v531 = vadd.f32 %v529, %v530
  %532 = vst [vmem:[%s5] sm:$0x1] %v531
  %v533 = vmul.f32 %v519, %v519
  %v534 = vmul.f32 %v520, %v520
  %v535 = vmul.f32 %v521, %v521
  %v536 = vadd.f32 %v533, %v534
  %v537 = vsel %vm523, %v535, 0.0
  %v538 = vadd.f32 %v536, %v537
  %v539 = vrot.slane %v538, 4
  %v540 = vadd.f32 %v538, %v539
  %v541 = vrot.slane %v540, 2
  %v542 = vadd.f32 %v540, %v541
  %v543 = vrot.slane %v542, 1
  %v544 = vadd.f32 %v542, %v543
  %545 = vst [vmem:[%s6] sm:$0x1] %v544
  // Predicated region
  $region18: #{descriminator_forward.8} parent=0 // pred_check
    _
  $region19: #{descriminator_forward.8} parent=0 // pred_check_branch
    %547 = sbr.rel (0) target = $region21
  $region20: #{descriminator_forward.8} parent=0 // pred_region
    _
  $region21: #{descriminator_forward.8} parent=0 // pred_fallthru
    _
  // Predicated region
  $region22: #{descriminator_forward.8} parent=0 // pred_check
    _
  $region23: #{descriminator_forward.8} parent=0 // pred_check_branch
    %549 = sbr.rel (0) target = $region25
  $region24: #{descriminator_forward.8} parent=0 // pred_region
    _
  $region25: #{descriminator_forward.8} parent=0 // pred_fallthru
    _
  // Predicated region
  $region26: #{descriminator_forward.8} parent=0 // pred_check
    _
  $region27: #{descriminator_forward.8} parent=0 // pred_check_branch
    %551 = sbr.rel (0) target = $region29
  $region28: #{descriminator_forward.8} parent=0 // pred_region
    _
  $region29: #{descriminator_forward.8} parent=0 // pred_fallthru
    _
  // Predicated region
  $region30: #{descriminator_forward.8} parent=0 // pred_check
    _
  $region31: #{descriminator_forward.8} parent=0 // pred_check_branch
    %553 = sbr.rel (0) target = $region33
  $region32: #{descriminator_forward.8} parent=0 // pred_region
    _
  $region33: #{descriminator_forward.8} parent=0 // pred_fallthru
    _
  // Predicated region
  $region34: #{descriminator_forward.8} parent=0 // pred_check
    _
  $region35: #{descriminator_forward.8} parent=0 // pred_check_branch
    %555 = sbr.rel (0) target = $region37
  $region36: #{descriminator_forward.8} parent=0 // pred_region
    _
  $region37: #{descriminator_forward.8} parent=0 // pred_fallthru
    _
  // Predicated region
  $region38: #{descriminator_forward.8} parent=0 // pred_check
    _
  $region39: #{descriminator_forward.8} parent=0 // pred_check_branch
    %557 = sbr.rel (0) target = $region41
  $region40: #{descriminator_forward.8} parent=0 // pred_region
    _
  $region41: #{descriminator_forward.8} parent=0 // pred_fallthru
    _

// kernel: descriminator_forward.9
$region0: #{descriminator_forward.9}
  #allocation0 [shape = 'u32[]', space=smem, size = 0x4, offset = 0x4, fixed_abs, tag = 'smem constant byte address 0x4 - core index']
  #allocation1 [shape = 'u32[144,128]{1,0:T(1,128)}', space=vmem, size = 0x12000, scoped, tag = 'internal scratch']
  %s0 = inlined_call_operand.vmem [shape: bf16[8,1024], index: 0, kind: input, shape index: {}]
  %s1 = inlined_call_operand.vmem [shape: bf16[1024,128], index: 1, kind: input, shape index: {}]
  %s2 = inlined_call_operand.vmem [shape: f32[1,1024], index: 2, kind: input, shape index: {}]
  %s3 = inlined_call_operand.vmem [shape: f32[1,1024], index: 3, kind: input, shape index: {}]
  %s4 = inlined_call_operand.vmem [shape: f32[1,128], index: 4, kind: input, shape index: {}]
  %s5 = inlined_call_operand.vmem [shape: f32[8,128], index: 5, kind: output, shape index: {}]
  %s6 = sld [smem:[#allocation0]]
  $region30: #{descriminator_forward.9} parent=0
    _
  %s8 = ssub.s32 1, %s6
  %s9 = scalar_select 0, %s8, %s6
  // Predicated region
  $region2: #{descriminator_forward.9} parent=0 // pred_check
    _
  $region3: #{descriminator_forward.9} parent=0 // pred_check_branch
    %11 = sbr.rel (0) target = $region5
  $region4: #{descriminator_forward.9} parent=0 // pred_region
    _
  $region5: #{descriminator_forward.9} parent=0 // pred_fallthru
    _
  // Predicated region
  $region6: #{descriminator_forward.9} parent=0 // pred_check
    _
  $region7: #{descriminator_forward.9} parent=0 // pred_check_branch
    %13 = sbr.rel (0) target = $region9
  $region8: #{descriminator_forward.9} parent=0 // pred_region
    _
  $region9: #{descriminator_forward.9} parent=0 // pred_fallthru
    _
  // Predicated region
  $region10: #{descriminator_forward.9} parent=0 // pred_check
    _
  $region11: #{descriminator_forward.9} parent=0 // pred_check_branch
    %15 = sbr.rel (0) target = $region13
  $region12: #{descriminator_forward.9} parent=0 // pred_region
    _
  $region13: #{descriminator_forward.9} parent=0 // pred_fallthru
    _
  // Predicated region
  $region14: #{descriminator_forward.9} parent=0 // pred_check
    _
  $region15: #{descriminator_forward.9} parent=0 // pred_check_branch
    %17 = sbr.rel (0) target = $region17
  $region16: #{descriminator_forward.9} parent=0 // pred_region
    _
  $region17: #{descriminator_forward.9} parent=0 // pred_fallthru
    _
  // Predicated region
  $region18: #{descriminator_forward.9} parent=0 // pred_check
    _
  $region19: #{descriminator_forward.9} parent=0 // pred_check_branch
    %19 = sbr.rel (0) target = $region21
  $region20: #{descriminator_forward.9} parent=0 // pred_region
    _
  $region21: #{descriminator_forward.9} parent=0 // pred_fallthru
    _
  %v21 = vld [vmem:[%s0] sm:$0xff]
  %v22 = vld [vmem:[%s0 + $0x8] sm:$0xff]
  %v23 = vld [vmem:[%s0 + $0x10] sm:$0xff]
  %v24 = vld [vmem:[%s0 + $0x18] sm:$0xff]
  %v25 = vunpack.c.l.bf16 %v21
  %v26 = vunpack.c.h.bf16 %v21
  %v27 = vunpack.c.l.bf16 %v22
  %v28 = vunpack.c.h.bf16 %v22
  %v29 = vunpack.c.l.bf16 %v23
  %v30 = vunpack.c.h.bf16 %v23
  %v31 = vunpack.c.l.bf16 %v24
  %v32 = vunpack.c.h.bf16 %v24
  %v33 = vld [vmem:[%s2] sm:$0xff]
  %v35 = vlaneseq
  %v36 = vshrl.u32 %v35, 7
  %v37 = vsub.s32 0, %v36
  %v38 = vrot.slane %v33, %v37
  %v39 = vlaneseq
  %v40 = vshrl.u32 %v39, 7
  %v41 = vsub.s32 1, %v40
  %v42 = vrot.slane %v33, %v41
  %v43 = vlaneseq
  %v44 = vshrl.u32 %v43, 7
  %v45 = vsub.s32 2, %v44
  %v46 = vrot.slane %v33, %v45
  %v47 = vlaneseq
  %v48 = vshrl.u32 %v47, 7
  %v49 = vsub.s32 3, %v48
  %v50 = vrot.slane %v33, %v49
  %v51 = vlaneseq
  %v52 = vshrl.u32 %v51, 7
  %v53 = vsub.s32 4, %v52
  %v54 = vrot.slane %v33, %v53
  %v55 = vlaneseq
  %v56 = vshrl.u32 %v55, 7
  %v57 = vsub.s32 5, %v56
  %v58 = vrot.slane %v33, %v57
  %v59 = vlaneseq
  %v60 = vshrl.u32 %v59, 7
  %v61 = vsub.s32 6, %v60
  %v62 = vrot.slane %v33, %v61
  %v63 = vlaneseq
  %v64 = vshrl.u32 %v63, 7
  %v65 = vsub.s32 7, %v64
  %v66 = vrot.slane %v33, %v65
  %v75 = vmul.f32 %v25, %v38
  %v76 = vmul.f32 %v26, %v42
  %v77 = vmul.f32 %v27, %v46
  %v78 = vmul.f32 %v28, %v50
  %v79 = vmul.f32 %v29, %v54
  %v80 = vmul.f32 %v30, %v58
  %v81 = vmul.f32 %v31, %v62
  %v82 = vmul.f32 %v32, %v66
  %v83 = vld [vmem:[%s3] sm:$0xff]
  %v85 = vlaneseq
  %v86 = vshrl.u32 %v85, 7
  %v87 = vsub.s32 0, %v86
  %v88 = vrot.slane %v83, %v87
  %v89 = vlaneseq
  %v90 = vshrl.u32 %v89, 7
  %v91 = vsub.s32 1, %v90
  %v92 = vrot.slane %v83, %v91
  %v93 = vlaneseq
  %v94 = vshrl.u32 %v93, 7
  %v95 = vsub.s32 2, %v94
  %v96 = vrot.slane %v83, %v95
  %v97 = vlaneseq
  %v98 = vshrl.u32 %v97, 7
  %v99 = vsub.s32 3, %v98
  %v100 = vrot.slane %v83, %v99
  %v101 = vlaneseq
  %v102 = vshrl.u32 %v101, 7
  %v103 = vsub.s32 4, %v102
  %v104 = vrot.slane %v83, %v103
  %v105 = vlaneseq
  %v106 = vshrl.u32 %v105, 7
  %v107 = vsub.s32 5, %v106
  %v108 = vrot.slane %v83, %v107
  %v109 = vlaneseq
  %v110 = vshrl.u32 %v109, 7
  %v111 = vsub.s32 6, %v110
  %v112 = vrot.slane %v83, %v111
  %v113 = vlaneseq
  %v114 = vshrl.u32 %v113, 7
  %v115 = vsub.s32 7, %v114
  %v116 = vrot.slane %v83, %v115
  %v125 = vadd.f32 %v75, %v88
  %v126 = vadd.f32 %v76, %v92
  %v127 = vadd.f32 %v77, %v96
  %v128 = vadd.f32 %v78, %v100
  %v129 = vadd.f32 %v79, %v104
  %v130 = vadd.f32 %v80, %v108
  %v131 = vadd.f32 %v81, %v112
  %v132 = vadd.f32 %v82, %v116
  %vm133 = vcmp.ge.f32.partialorder %v125, 0.0
  %vm134 = vcmp.ge.f32.partialorder %v126, 0.0
  %vm135 = vcmp.ge.f32.partialorder %v127, 0.0
  %vm136 = vcmp.ge.f32.partialorder %v128, 0.0
  %vm137 = vcmp.ge.f32.partialorder %v129, 0.0
  %vm138 = vcmp.ge.f32.partialorder %v130, 0.0
  %vm139 = vcmp.ge.f32.partialorder %v131, 0.0
  %vm140 = vcmp.ge.f32.partialorder %v132, 0.0
  %v141 = vmul.f32 %v125, 0.2
  %v142 = vmul.f32 %v126, 0.2
  %v143 = vmul.f32 %v127, 0.2
  %v144 = vmul.f32 %v128, 0.2
  %v145 = vmul.f32 %v129, 0.2
  %v146 = vmul.f32 %v130, 0.2
  %v147 = vmul.f32 %v131, 0.2
  %v148 = vmul.f32 %v132, 0.2
  %v149 = vsel %vm133, %v125, %v141
  %v150 = vsel %vm134, %v126, %v142
  %v151 = vsel %vm135, %v127, %v143
  %v152 = vsel %vm136, %v128, %v144
  %v153 = vsel %vm137, %v129, %v145
  %v154 = vsel %vm138, %v130, %v146
  %v155 = vsel %vm139, %v131, %v147
  %v156 = vsel %vm140, %v132, %v148
  %v157 = vpack.c.bf16 %v149, %v149
  %v158 = vpack.c.bf16 %v150, %v150
  %v159 = vpack.c.bf16 %v151, %v151
  %v160 = vpack.c.bf16 %v152, %v152
  %v161 = vpack.c.bf16 %v153, %v153
  %v162 = vpack.c.bf16 %v154, %v154
  %v163 = vpack.c.bf16 %v155, %v155
  %v164 = vpack.c.bf16 %v156, %v156
  %v165 = vld [vmem:[%s1] sm:$0xf]
  %v166 = vld [vmem:[%s1 + $0x4] sm:$0xf]
  %v167 = vld [vmem:[%s1 + $0x8] sm:$0xf]
  %v168 = vld [vmem:[%s1 + $0xc] sm:$0xf]
  %v169 = vld [vmem:[%s1 + $0x10] sm:$0xf]
  %v170 = vld [vmem:[%s1 + $0x14] sm:$0xf]
  %v171 = vld [vmem:[%s1 + $0x18] sm:$0xf]
  %v172 = vld [vmem:[%s1 + $0x1c] sm:$0xf]
  %v173 = vld [vmem:[%s1 + $0x20] sm:$0xf]
  %v174 = vld [vmem:[%s1 + $0x24] sm:$0xf]
  %v175 = vld [vmem:[%s1 + $0x28] sm:$0xf]
  %v176 = vld [vmem:[%s1 + $0x2c] sm:$0xf]
  %v177 = vld [vmem:[%s1 + $0x30] sm:$0xf]
  %v178 = vld [vmem:[%s1 + $0x34] sm:$0xf]
  %v179 = vld [vmem:[%s1 + $0x38] sm:$0xf]
  %v180 = vld [vmem:[%s1 + $0x3c] sm:$0xf]
  %v181 = vld [vmem:[%s1 + $0x40] sm:$0xf]
  %v182 = vld [vmem:[%s1 + $0x44] sm:$0xf]
  %v183 = vld [vmem:[%s1 + $0x48] sm:$0xf]
  %v184 = vld [vmem:[%s1 + $0x4c] sm:$0xf]
  %v185 = vld [vmem:[%s1 + $0x50] sm:$0xf]
  %v186 = vld [vmem:[%s1 + $0x54] sm:$0xf]
  %v187 = vld [vmem:[%s1 + $0x58] sm:$0xf]
  %v188 = vld [vmem:[%s1 + $0x5c] sm:$0xf]
  %v189 = vld [vmem:[%s1 + $0x60] sm:$0xf]
  %v190 = vld [vmem:[%s1 + $0x64] sm:$0xf]
  %v191 = vld [vmem:[%s1 + $0x68] sm:$0xf]
  %v192 = vld [vmem:[%s1 + $0x6c] sm:$0xf]
  %v193 = vld [vmem:[%s1 + $0x70] sm:$0xf]
  %v194 = vld [vmem:[%s1 + $0x74] sm:$0xf]
  %v195 = vld [vmem:[%s1 + $0x78] sm:$0xf]
  %v196 = vld [vmem:[%s1 + $0x7c] sm:$0xf]
  %v197 = vld [vmem:[%s1 + $0x80] sm:$0xf]
  %v198 = vld [vmem:[%s1 + $0x84] sm:$0xf]
  %v199 = vld [vmem:[%s1 + $0x88] sm:$0xf]
  %v200 = vld [vmem:[%s1 + $0x8c] sm:$0xf]
  %v201 = vld [vmem:[%s1 + $0x90] sm:$0xf]
  %v202 = vld [vmem:[%s1 + $0x94] sm:$0xf]
  %v203 = vld [vmem:[%s1 + $0x98] sm:$0xf]
  %v204 = vld [vmem:[%s1 + $0x9c] sm:$0xf]
  %v205 = vld [vmem:[%s1 + $0xa0] sm:$0xf]
  %v206 = vld [vmem:[%s1 + $0xa4] sm:$0xf]
  %v207 = vld [vmem:[%s1 + $0xa8] sm:$0xf]
  %v208 = vld [vmem:[%s1 + $0xac] sm:$0xf]
  %v209 = vld [vmem:[%s1 + $0xb0] sm:$0xf]
  %v210 = vld [vmem:[%s1 + $0xb4] sm:$0xf]
  %v211 = vld [vmem:[%s1 + $0xb8] sm:$0xf]
  %v212 = vld [vmem:[%s1 + $0xbc] sm:$0xf]
  %v213 = vld [vmem:[%s1 + $0xc0] sm:$0xf]
  %v214 = vld [vmem:[%s1 + $0xc4] sm:$0xf]
  %v215 = vld [vmem:[%s1 + $0xc8] sm:$0xf]
  %v216 = vld [vmem:[%s1 + $0xcc] sm:$0xf]
  %v217 = vld [vmem:[%s1 + $0xd0] sm:$0xf]
  %v218 = vld [vmem:[%s1 + $0xd4] sm:$0xf]
  %v219 = vld [vmem:[%s1 + $0xd8] sm:$0xf]
  %v220 = vld [vmem:[%s1 + $0xdc] sm:$0xf]
  %v221 = vld [vmem:[%s1 + $0xe0] sm:$0xf]
  %v222 = vld [vmem:[%s1 + $0xe4] sm:$0xf]
  %v223 = vld [vmem:[%s1 + $0xe8] sm:$0xf]
  %v224 = vld [vmem:[%s1 + $0xec] sm:$0xf]
  %v225 = vld [vmem:[%s1 + $0xf0] sm:$0xf]
  %v226 = vld [vmem:[%s1 + $0xf4] sm:$0xf]
  %v227 = vld [vmem:[%s1 + $0xf8] sm:$0xf]
  %v228 = vld [vmem:[%s1 + $0xfc] sm:$0xf]
  %v229 = vld [vmem:[%s1 + $0x100] sm:$0xf]
  %v230 = vld [vmem:[%s1 + $0x104] sm:$0xf]
  %v231 = vld [vmem:[%s1 + $0x108] sm:$0xf]
  %v232 = vld [vmem:[%s1 + $0x10c] sm:$0xf]
  %v233 = vld [vmem:[%s1 + $0x110] sm:$0xf]
  %v234 = vld [vmem:[%s1 + $0x114] sm:$0xf]
  %v235 = vld [vmem:[%s1 + $0x118] sm:$0xf]
  %v236 = vld [vmem:[%s1 + $0x11c] sm:$0xf]
  %v237 = vld [vmem:[%s1 + $0x120] sm:$0xf]
  %v238 = vld [vmem:[%s1 + $0x124] sm:$0xf]
  %v239 = vld [vmem:[%s1 + $0x128] sm:$0xf]
  %v240 = vld [vmem:[%s1 + $0x12c] sm:$0xf]
  %v241 = vld [vmem:[%s1 + $0x130] sm:$0xf]
  %v242 = vld [vmem:[%s1 + $0x134] sm:$0xf]
  %v243 = vld [vmem:[%s1 + $0x138] sm:$0xf]
  %v244 = vld [vmem:[%s1 + $0x13c] sm:$0xf]
  %v245 = vld [vmem:[%s1 + $0x140] sm:$0xf]
  %v246 = vld [vmem:[%s1 + $0x144] sm:$0xf]
  %v247 = vld [vmem:[%s1 + $0x148] sm:$0xf]
  %v248 = vld [vmem:[%s1 + $0x14c] sm:$0xf]
  %v249 = vld [vmem:[%s1 + $0x150] sm:$0xf]
  %v250 = vld [vmem:[%s1 + $0x154] sm:$0xf]
  %v251 = vld [vmem:[%s1 + $0x158] sm:$0xf]
  %v252 = vld [vmem:[%s1 + $0x15c] sm:$0xf]
  %v253 = vld [vmem:[%s1 + $0x160] sm:$0xf]
  %v254 = vld [vmem:[%s1 + $0x164] sm:$0xf]
  %v255 = vld [vmem:[%s1 + $0x168] sm:$0xf]
  %v256 = vld [vmem:[%s1 + $0x16c] sm:$0xf]
  %v257 = vld [vmem:[%s1 + $0x170] sm:$0xf]
  %v258 = vld [vmem:[%s1 + $0x174] sm:$0xf]
  %v259 = vld [vmem:[%s1 + $0x178] sm:$0xf]
  %v260 = vld [vmem:[%s1 + $0x17c] sm:$0xf]
  %v261 = vld [vmem:[%s1 + $0x180] sm:$0xf]
  %v262 = vld [vmem:[%s1 + $0x184] sm:$0xf]
  %v263 = vld [vmem:[%s1 + $0x188] sm:$0xf]
  %v264 = vld [vmem:[%s1 + $0x18c] sm:$0xf]
  %v265 = vld [vmem:[%s1 + $0x190] sm:$0xf]
  %v266 = vld [vmem:[%s1 + $0x194] sm:$0xf]
  %v267 = vld [vmem:[%s1 + $0x198] sm:$0xf]
  %v268 = vld [vmem:[%s1 + $0x19c] sm:$0xf]
  %v269 = vld [vmem:[%s1 + $0x1a0] sm:$0xf]
  %v270 = vld [vmem:[%s1 + $0x1a4] sm:$0xf]
  %v271 = vld [vmem:[%s1 + $0x1a8] sm:$0xf]
  %v272 = vld [vmem:[%s1 + $0x1ac] sm:$0xf]
  %v273 = vld [vmem:[%s1 + $0x1b0] sm:$0xf]
  %v274 = vld [vmem:[%s1 + $0x1b4] sm:$0xf]
  %v275 = vld [vmem:[%s1 + $0x1b8] sm:$0xf]
  %v276 = vld [vmem:[%s1 + $0x1bc] sm:$0xf]
  %v277 = vld [vmem:[%s1 + $0x1c0] sm:$0xf]
  %v278 = vld [vmem:[%s1 + $0x1c4] sm:$0xf]
  %v279 = vld [vmem:[%s1 + $0x1c8] sm:$0xf]
  %v280 = vld [vmem:[%s1 + $0x1cc] sm:$0xf]
  %v281 = vld [vmem:[%s1 + $0x1d0] sm:$0xf]
  %v282 = vld [vmem:[%s1 + $0x1d4] sm:$0xf]
  %v283 = vld [vmem:[%s1 + $0x1d8] sm:$0xf]
  %v284 = vld [vmem:[%s1 + $0x1dc] sm:$0xf]
  %v285 = vld [vmem:[%s1 + $0x1e0] sm:$0xf]
  %v286 = vld [vmem:[%s1 + $0x1e4] sm:$0xf]
  %v287 = vld [vmem:[%s1 + $0x1e8] sm:$0xf]
  %v288 = vld [vmem:[%s1 + $0x1ec] sm:$0xf]
  %v289 = vld [vmem:[%s1 + $0x1f0] sm:$0xf]
  %v290 = vld [vmem:[%s1 + $0x1f4] sm:$0xf]
  %v291 = vld [vmem:[%s1 + $0x1f8] sm:$0xf]
  %v292 = vld [vmem:[%s1 + $0x1fc] sm:$0xf]
  %v293 = vld [vmem:[%s4] sm:$0x1]
  %v295 = vlaneseq
  %v296 = vshrl.u32 %v295, 7
  %v297 = vsub.s32 0, %v296
  %v298 = vrot.slane %v293, %v297
  %v428 = vunpack.c.l.b16 %v165
  %v429 = vunpack.c.l.b16 %v166
  %v430 = vunpack.c.l.b16 %v167
  %v431 = vunpack.c.l.b16 %v168
  %v432 = vunpack.c.l.b16 %v169
  %v433 = vunpack.c.l.b16 %v170
  %v434 = vunpack.c.l.b16 %v171
  %v435 = vunpack.c.l.b16 %v172
  %v436 = vunpack.c.l.b16 %v173
  %v437 = vunpack.c.l.b16 %v174
  %v438 = vunpack.c.l.b16 %v175
  %v439 = vunpack.c.l.b16 %v176
  %v440 = vunpack.c.l.b16 %v177
  %v441 = vunpack.c.l.b16 %v178
  %v442 = vunpack.c.l.b16 %v179
  %v443 = vunpack.c.l.b16 %v180
  %v444 = vunpack.c.l.b16 %v181
  %v445 = vunpack.c.l.b16 %v182
  %v446 = vunpack.c.l.b16 %v183
  %v447 = vunpack.c.l.b16 %v184
  %v448 = vunpack.c.l.b16 %v185
  %v449 = vunpack.c.l.b16 %v186
  %v450 = vunpack.c.l.b16 %v187
  %v451 = vunpack.c.l.b16 %v188
  %v452 = vunpack.c.l.b16 %v189
  %v453 = vunpack.c.l.b16 %v190
  %v454 = vunpack.c.l.b16 %v191
  %v455 = vunpack.c.l.b16 %v192
  %v456 = vunpack.c.l.b16 %v193
  %v457 = vunpack.c.l.b16 %v194
  %v458 = vunpack.c.l.b16 %v195
  %v459 = vunpack.c.l.b16 %v196
  %v460 = vunpack.c.l.b16 %v197
  %v461 = vunpack.c.l.b16 %v198
  %v462 = vunpack.c.l.b16 %v199
  %v463 = vunpack.c.l.b16 %v200
  %v464 = vunpack.c.l.b16 %v201
  %v465 = vunpack.c.l.b16 %v202
  %v466 = vunpack.c.l.b16 %v203
  %v467 = vunpack.c.l.b16 %v204
  %v468 = vunpack.c.l.b16 %v205
  %v469 = vunpack.c.l.b16 %v206
  %v470 = vunpack.c.l.b16 %v207
  %v471 = vunpack.c.l.b16 %v208
  %v472 = vunpack.c.l.b16 %v209
  %v473 = vunpack.c.l.b16 %v210
  %v474 = vunpack.c.l.b16 %v211
  %v475 = vunpack.c.l.b16 %v212
  %v476 = vunpack.c.l.b16 %v213
  %v477 = vunpack.c.l.b16 %v214
  %v478 = vunpack.c.l.b16 %v215
  %v479 = vunpack.c.l.b16 %v216
  %v480 = vunpack.c.l.b16 %v217
  %v481 = vunpack.c.l.b16 %v218
  %v482 = vunpack.c.l.b16 %v219
  %v483 = vunpack.c.l.b16 %v220
  %v484 = vunpack.c.l.b16 %v221
  %v485 = vunpack.c.l.b16 %v222
  %v486 = vunpack.c.l.b16 %v223
  %v487 = vunpack.c.l.b16 %v224
  %v488 = vunpack.c.l.b16 %v225
  %v489 = vunpack.c.l.b16 %v226
  %v490 = vunpack.c.l.b16 %v227
  %v491 = vunpack.c.l.b16 %v228
  %v492 = vunpack.c.l.b16 %v229
  %v493 = vunpack.c.l.b16 %v230
  %v494 = vunpack.c.l.b16 %v231
  %v495 = vunpack.c.l.b16 %v232
  %v496 = vunpack.c.l.b16 %v233
  %v497 = vunpack.c.l.b16 %v234
  %v498 = vunpack.c.l.b16 %v235
  %v499 = vunpack.c.l.b16 %v236
  %v500 = vunpack.c.l.b16 %v237
  %v501 = vunpack.c.l.b16 %v238
  %v502 = vunpack.c.l.b16 %v239
  %v503 = vunpack.c.l.b16 %v240
  %v504 = vunpack.c.l.b16 %v241
  %v505 = vunpack.c.l.b16 %v242
  %v506 = vunpack.c.l.b16 %v243
  %v507 = vunpack.c.l.b16 %v244
  %v508 = vunpack.c.l.b16 %v245
  %v509 = vunpack.c.l.b16 %v246
  %v510 = vunpack.c.l.b16 %v247
  %v511 = vunpack.c.l.b16 %v248
  %v512 = vunpack.c.l.b16 %v249
  %v513 = vunpack.c.l.b16 %v250
  %v514 = vunpack.c.l.b16 %v251
  %v515 = vunpack.c.l.b16 %v252
  %v516 = vunpack.c.l.b16 %v253
  %v517 = vunpack.c.l.b16 %v254
  %v518 = vunpack.c.l.b16 %v255
  %v519 = vunpack.c.l.b16 %v256
  %v520 = vunpack.c.l.b16 %v257
  %v521 = vunpack.c.l.b16 %v258
  %v522 = vunpack.c.l.b16 %v259
  %v523 = vunpack.c.l.b16 %v260
  %v524 = vunpack.c.l.b16 %v261
  %v525 = vunpack.c.l.b16 %v262
  %v526 = vunpack.c.l.b16 %v263
  %v527 = vunpack.c.l.b16 %v264
  %v528 = vunpack.c.l.b16 %v265
  %v529 = vunpack.c.l.b16 %v266
  %v530 = vunpack.c.l.b16 %v267
  %v531 = vunpack.c.l.b16 %v268
  %v532 = vunpack.c.l.b16 %v269
  %v533 = vunpack.c.l.b16 %v270
  %v534 = vunpack.c.l.b16 %v271
  %v535 = vunpack.c.l.b16 %v272
  %v536 = vunpack.c.l.b16 %v273
  %v537 = vunpack.c.l.b16 %v274
  %v538 = vunpack.c.l.b16 %v275
  %v539 = vunpack.c.l.b16 %v276
  %v540 = vunpack.c.l.b16 %v277
  %v541 = vunpack.c.l.b16 %v278
  %v542 = vunpack.c.l.b16 %v279
  %v543 = vunpack.c.l.b16 %v280
  %v544 = vunpack.c.l.b16 %v281
  %v545 = vunpack.c.l.b16 %v282
  %v546 = vunpack.c.l.b16 %v283
  %v547 = vunpack.c.l.b16 %v284
  %v548 = vunpack.c.l.b16 %v285
  %v549 = vunpack.c.l.b16 %v286
  %v550 = vunpack.c.l.b16 %v287
  %v551 = vunpack.c.l.b16 %v288
  %v552 = vunpack.c.l.b16 %v289
  %v553 = vunpack.c.l.b16 %v290
  %v554 = vunpack.c.l.b16 %v291
  %v555 = vunpack.c.l.b16 %v292
  %v556 = vpack.c.b16 %v429, %v428
  %v557 = vpack.c.b16 %v431, %v430
  %v558 = vpack.c.b16 %v433, %v432
  %v559 = vpack.c.b16 %v435, %v434
  %v560 = vpack.c.b16 %v437, %v436
  %v561 = vpack.c.b16 %v439, %v438
  %v562 = vpack.c.b16 %v441, %v440
  %v563 = vpack.c.b16 %v443, %v442
  %v564 = vpack.c.b16 %v445, %v444
  %v565 = vpack.c.b16 %v447, %v446
  %v566 = vpack.c.b16 %v449, %v448
  %v567 = vpack.c.b16 %v451, %v450
  %v568 = vpack.c.b16 %v453, %v452
  %v569 = vpack.c.b16 %v455, %v454
  %v570 = vpack.c.b16 %v457, %v456
  %v571 = vpack.c.b16 %v459, %v458
  %v572 = vpack.c.b16 %v461, %v460
  %v573 = vpack.c.b16 %v463, %v462
  %v574 = vpack.c.b16 %v465, %v464
  %v575 = vpack.c.b16 %v467, %v466
  %v576 = vpack.c.b16 %v469, %v468
  %v577 = vpack.c.b16 %v471, %v470
  %v578 = vpack.c.b16 %v473, %v472
  %v579 = vpack.c.b16 %v475, %v474
  %v580 = vpack.c.b16 %v477, %v476
  %v581 = vpack.c.b16 %v479, %v478
  %v582 = vpack.c.b16 %v481, %v480
  %v583 = vpack.c.b16 %v483, %v482
  %v584 = vpack.c.b16 %v485, %v484
  %v585 = vpack.c.b16 %v487, %v486
  %v586 = vpack.c.b16 %v489, %v488
  %v587 = vpack.c.b16 %v491, %v490
  %v588 = vpack.c.b16 %v493, %v492
  %v589 = vpack.c.b16 %v495, %v494
  %v590 = vpack.c.b16 %v497, %v496
  %v591 = vpack.c.b16 %v499, %v498
  %v592 = vpack.c.b16 %v501, %v500
  %v593 = vpack.c.b16 %v503, %v502
  %v594 = vpack.c.b16 %v505, %v504
  %v595 = vpack.c.b16 %v507, %v506
  %v596 = vpack.c.b16 %v509, %v508
  %v597 = vpack.c.b16 %v511, %v510
  %v598 = vpack.c.b16 %v513, %v512
  %v599 = vpack.c.b16 %v515, %v514
  %v600 = vpack.c.b16 %v517, %v516
  %v601 = vpack.c.b16 %v519, %v518
  %v602 = vpack.c.b16 %v521, %v520
  %v603 = vpack.c.b16 %v523, %v522
  %v604 = vpack.c.b16 %v525, %v524
  %v605 = vpack.c.b16 %v527, %v526
  %v606 = vpack.c.b16 %v529, %v528
  %v607 = vpack.c.b16 %v531, %v530
  %v608 = vpack.c.b16 %v533, %v532
  %v609 = vpack.c.b16 %v535, %v534
  %v610 = vpack.c.b16 %v537, %v536
  %v611 = vpack.c.b16 %v539, %v538
  %v612 = vpack.c.b16 %v541, %v540
  %v613 = vpack.c.b16 %v543, %v542
  %v614 = vpack.c.b16 %v545, %v544
  %v615 = vpack.c.b16 %v547, %v546
  %v616 = vpack.c.b16 %v549, %v548
  %v617 = vpack.c.b16 %v551, %v550
  %v618 = vpack.c.b16 %v553, %v552
  %v619 = vpack.c.b16 %v555, %v554
  %684 = vmatprep.subr.bf16.mxu0 0
  %685 = vmatpush1.bf16.msra.mxu0 %v563
  %686 = vmatprep.subr.bf16.mxu0 0
  %687 = vmatpush1.bf16.msra.mxu0 %v562
  %688 = vmatprep.subr.bf16.mxu0 0
  %689 = vmatpush1.bf16.msra.mxu0 %v561
  %690 = vmatprep.subr.bf16.mxu0 0
  %691 = vmatpush1.bf16.msra.mxu0 %v560
  %692 = vmatprep.subr.bf16.mxu0 0
  %693 = vmatpush1.bf16.msra.mxu0 %v559
  %694 = vmatprep.subr.bf16.mxu0 0
  %695 = vmatpush1.bf16.msra.mxu0 %v558
  %696 = vmatprep.subr.bf16.mxu0 0
  %697 = vmatpush1.bf16.msra.mxu0 %v557
  %698 = vmatprep.subr.bf16.mxu0 0
  %699 = vmatpush1.bf16.msra.mxu0 %v556
  %700 = vmatprep.subr.bf16.mxu0 0
  %701 = vmatpush2.bf16.msra.mxu0 %v571
  %702 = vmatprep.subr.bf16.mxu0 0
  %703 = vmatpush2.bf16.msra.mxu0 %v570
  %704 = vmatprep.subr.bf16.mxu0 0
  %705 = vmatpush2.bf16.msra.mxu0 %v569
  %706 = vmatprep.subr.bf16.mxu0 0
  %707 = vmatpush2.bf16.msra.mxu0 %v568
  %708 = vmatprep.subr.bf16.mxu0 0
  %709 = vmatpush2.bf16.msra.mxu0 %v567
  %710 = vmatprep.subr.bf16.mxu0 0
  %711 = vmatpush2.bf16.msra.mxu0 %v566
  %712 = vmatprep.subr.bf16.mxu0 0
  %713 = vmatpush2.bf16.msra.mxu0 %v565
  %714 = vmatprep.subr.bf16.mxu0 0
  %715 = vmatpush2.bf16.msra.mxu0 %v564
  %716 = vmatprep.mubr.bf16.mxu0 %v158
  %717 = vmatmul.mubr.bf16.gmra.mxu0 %v157
  %v718 = vpop.f32.mrf.mxu0
  %v719 = vadd.f32 %v298, %v718
  %v720 = vpop.f32.mrf.mxu0
  %v721 = vpop.f32.mrf.mxu0
  %v722 = vpop.f32.mrf.mxu0
  %723 = vdwg.mxu0
  %724 = vmatprep.subr.bf16.mxu0 0
  %725 = vmatpush1.bf16.msra.mxu0 %v579
  %726 = vmatprep.subr.bf16.mxu0 0
  %727 = vmatpush1.bf16.msra.mxu0 %v578
  %728 = vmatprep.subr.bf16.mxu0 0
  %729 = vmatpush1.bf16.msra.mxu0 %v577
  %730 = vmatprep.subr.bf16.mxu0 0
  %731 = vmatpush1.bf16.msra.mxu0 %v576
  %732 = vmatprep.subr.bf16.mxu0 0
  %733 = vmatpush1.bf16.msra.mxu0 %v575
  %734 = vmatprep.subr.bf16.mxu0 0
  %735 = vmatpush1.bf16.msra.mxu0 %v574
  %736 = vmatprep.subr.bf16.mxu0 0
  %737 = vmatpush1.bf16.msra.mxu0 %v573
  %738 = vmatprep.subr.bf16.mxu0 0
  %739 = vmatpush1.bf16.msra.mxu0 %v572
  %740 = vmatprep.subr.bf16.mxu0 0
  %741 = vmatpush2.bf16.msra.mxu0 %v587
  %742 = vmatprep.subr.bf16.mxu0 0
  %743 = vmatpush2.bf16.msra.mxu0 %v586
  %744 = vmatprep.subr.bf16.mxu0 0
  %745 = vmatpush2.bf16.msra.mxu0 %v585
  %746 = vmatprep.subr.bf16.mxu0 0
  %747 = vmatpush2.bf16.msra.mxu0 %v584
  %748 = vmatprep.subr.bf16.mxu0 0
  %749 = vmatpush2.bf16.msra.mxu0 %v583
  %750 = vmatprep.subr.bf16.mxu0 0
  %751 = vmatpush2.bf16.msra.mxu0 %v582
  %752 = vmatprep.subr.bf16.mxu0 0
  %753 = vmatpush2.bf16.msra.mxu0 %v581
  %754 = vmatprep.subr.bf16.mxu0 0
  %755 = vmatpush2.bf16.msra.mxu0 %v580
  %756 = vmatprep.mubr.bf16.mxu0 %v160
  %757 = vmatmul.mubr.bf16.gmra.mxu0 %v159
  %v758 = vpop.f32.mrf.mxu0
  %v759 = vadd.f32 %v719, %v758
  %v760 = vpop.f32.mrf.mxu0
  %v761 = vpop.f32.mrf.mxu0
  %v762 = vpop.f32.mrf.mxu0
  %763 = vdwg.mxu0
  %764 = vmatprep.subr.bf16.mxu0 0
  %765 = vmatpush1.bf16.msra.mxu0 %v595
  %766 = vmatprep.subr.bf16.mxu0 0
  %767 = vmatpush1.bf16.msra.mxu0 %v594
  %768 = vmatprep.subr.bf16.mxu0 0
  %769 = vmatpush1.bf16.msra.mxu0 %v593
  %770 = vmatprep.subr.bf16.mxu0 0
  %771 = vmatpush1.bf16.msra.mxu0 %v592
  %772 = vmatprep.subr.bf16.mxu0 0
  %773 = vmatpush1.bf16.msra.mxu0 %v591
  %774 = vmatprep.subr.bf16.mxu0 0
  %775 = vmatpush1.bf16.msra.mxu0 %v590
  %776 = vmatprep.subr.bf16.mxu0 0
  %777 = vmatpush1.bf16.msra.mxu0 %v589
  %778 = vmatprep.subr.bf16.mxu0 0
  %779 = vmatpush1.bf16.msra.mxu0 %v588
  %780 = vmatprep.subr.bf16.mxu0 0
  %781 = vmatpush2.bf16.msra.mxu0 %v603
  %782 = vmatprep.subr.bf16.mxu0 0
  %783 = vmatpush2.bf16.msra.mxu0 %v602
  %784 = vmatprep.subr.bf16.mxu0 0
  %785 = vmatpush2.bf16.msra.mxu0 %v601
  %786 = vmatprep.subr.bf16.mxu0 0
  %787 = vmatpush2.bf16.msra.mxu0 %v600
  %788 = vmatprep.subr.bf16.mxu0 0
  %789 = vmatpush2.bf16.msra.mxu0 %v599
  %790 = vmatprep.subr.bf16.mxu0 0
  %791 = vmatpush2.bf16.msra.mxu0 %v598
  %792 = vmatprep.subr.bf16.mxu0 0
  %793 = vmatpush2.bf16.msra.mxu0 %v597
  %794 = vmatprep.subr.bf16.mxu0 0
  %795 = vmatpush2.bf16.msra.mxu0 %v596
  %796 = vmatprep.mubr.bf16.mxu0 %v162
  %797 = vmatmul.mubr.bf16.gmra.mxu0 %v161
  %v798 = vpop.f32.mrf.mxu0
  %v799 = vadd.f32 %v759, %v798
  %v800 = vpop.f32.mrf.mxu0
  %v801 = vpop.f32.mrf.mxu0
  %v802 = vpop.f32.mrf.mxu0
  %803 = vdwg.mxu0
  %804 = vmatprep.subr.bf16.mxu0 0
  %805 = vmatpush1.bf16.msra.mxu0 %v611
  %806 = vmatprep.subr.bf16.mxu0 0
  %807 = vmatpush1.bf16.msra.mxu0 %v610
  %808 = vmatprep.subr.bf16.mxu0 0
  %809 = vmatpush1.bf16.msra.mxu0 %v609
  %810 = vmatprep.subr.bf16.mxu0 0
  %811 = vmatpush1.bf16.msra.mxu0 %v608
  %812 = vmatprep.subr.bf16.mxu0 0
  %813 = vmatpush1.bf16.msra.mxu0 %v607
  %814 = vmatprep.subr.bf16.mxu0 0
  %815 = vmatpush1.bf16.msra.mxu0 %v606
  %816 = vmatprep.subr.bf16.mxu0 0
  %817 = vmatpush1.bf16.msra.mxu0 %v605
  %818 = vmatprep.subr.bf16.mxu0 0
  %819 = vmatpush1.bf16.msra.mxu0 %v604
  %820 = vmatprep.subr.bf16.mxu0 0
  %821 = vmatpush2.bf16.msra.mxu0 %v619
  %822 = vmatprep.subr.bf16.mxu0 0
  %823 = vmatpush2.bf16.msra.mxu0 %v618
  %824 = vmatprep.subr.bf16.mxu0 0
  %825 = vmatpush2.bf16.msra.mxu0 %v617
  %826 = vmatprep.subr.bf16.mxu0 0
  %827 = vmatpush2.bf16.msra.mxu0 %v616
  %828 = vmatprep.subr.bf16.mxu0 0
  %829 = vmatpush2.bf16.msra.mxu0 %v615
  %830 = vmatprep.subr.bf16.mxu0 0
  %831 = vmatpush2.bf16.msra.mxu0 %v614
  %832 = vmatprep.subr.bf16.mxu0 0
  %833 = vmatpush2.bf16.msra.mxu0 %v613
  %834 = vmatprep.subr.bf16.mxu0 0
  %835 = vmatpush2.bf16.msra.mxu0 %v612
  %836 = vmatprep.mubr.bf16.mxu0 %v164
  %837 = vmatmul.mubr.bf16.gmra.mxu0 %v163
  %v838 = vpop.f32.mrf.mxu0
  %v839 = vadd.f32 %v799, %v838
  %v840 = vpop.f32.mrf.mxu0
  %v841 = vpop.f32.mrf.mxu0
  %v842 = vpop.f32.mrf.mxu0
  %843 = vdwg.mxu0
  %844 = vst [vmem:[%s5] sm:$0xff] %v839
  // Predicated region
  $region22: #{descriminator_forward.9} parent=0 // pred_check
    _
  $region23: #{descriminator_forward.9} parent=0 // pred_check_branch
    %846 = sbr.rel (0) target = $region25
  $region24: #{descriminator_forward.9} parent=0 // pred_region
    _
  $region25: #{descriminator_forward.9} parent=0 // pred_fallthru
    _
  // Predicated region
  $region26: #{descriminator_forward.9} parent=0 // pred_check
    _
  $region27: #{descriminator_forward.9} parent=0 // pred_check_branch
    %848 = sbr.rel (0) target = $region29
  $region28: #{descriminator_forward.9} parent=0 // pred_region
    _
  $region29: #{descriminator_forward.9} parent=0 // pred_fallthru
    _

</llo_original>
